<compile_context>
chip_gen: v5e
topology: v5e:2x2
jax: 0.10.0
libtpu: 0.0.40
codegen_flags: <defaults>
</compile_context>

<pallas_src>
import numpy as np

import jax
import jax.numpy as jnp
from jax.experimental import pallas as pl
from jax.experimental.pallas import tpu as pltpu


# ---------------------------------------------------------------------------
# Fused kernel: whole forward pass for one sample per grid step.
# Activation layout: 2-D (rows = H on sublanes, lanes = W*C).
# ---------------------------------------------------------------------------
def _fused_net_kernel(x_ref, m1_ref, m2e_ref, m2o_ref, sel_ref, m3_ref,
                      m40_ref, m41_ref, m42_ref, m5_ref, o_ref):
    f32, bf16 = jnp.float32, jnp.bfloat16

    def conv(x, m_ref, n_kh, oh):
        """KHxKW 'valid' conv as a sum over kernel rows of 2-D MXU matmuls."""
        xb = x.astype(bf16)
        acc = jnp.dot(xb[0:oh, :], m_ref[0], preferred_element_type=f32)
        for r in range(1, n_kh):
            acc = acc + jnp.dot(xb[r:r + oh, :], m_ref[r],
                                preferred_element_type=f32)
        return acc

    relu = lambda v: jnp.maximum(v, 0.0)

    x0 = x_ref[0]                                          # (28, 28)   H x W*1
    x1 = relu(conv(x0, m1_ref, 3, 26))                     # (26, 208)  26 x 26*8
    x2e = relu(conv(x1, m2e_ref, 3, 24))                   # (24, 192)  even conv2 cols
    x2o = relu(conv(x1, m2o_ref, 3, 24))                   # (24, 192)  odd  conv2 cols

    # Fused MaxPool2d(2, 2): column pairs were split even/odd above; row pairs
    # via adjacent-row max followed by a 0/1 row-selection matmul.
    colmax = jnp.maximum(x2e, x2o)                         # (24, 192)
    rowmax = jnp.maximum(colmax[0:23, :], colmax[1:24, :])  # (23, 192)
    pooled = jnp.dot(sel_ref[...], rowmax.astype(bf16),
                     preferred_element_type=f32)           # (12, 192)  12 x 12*16

    x3 = relu(jnp.dot(pooled.astype(bf16), m3_ref[...],
                      preferred_element_type=f32))         # (12, 96)   12 x 12*8
    x4 = relu(conv(x3, m40_ref, 3, 10))                    # (10, 120)  10 x 10*12
    x4 = relu(conv(x4, m41_ref, 3, 8))                     # (8, 128)   8 x 8*16
    x4 = relu(conv(x4, m42_ref, 3, 6))                     # (6, 120)   6 x 6*20
    logits = conv(x4, m5_ref, 6, 1)                        # (1, 16)

    # Fused, numerically stable log_softmax epilogue (f32).
    mx = jnp.max(logits, axis=-1, keepdims=True)
    z = logits - mx
    lse = jnp.log(jnp.sum(jnp.exp(z), axis=-1, keepdims=True))
    o_ref[0] = (z - lse).astype(o_ref.dtype)


# ---------------------------------------------------------------------------
# One-time host-side weight packing (banded / "Toeplitz" im2col-free layout)
# ---------------------------------------------------------------------------
def _pack_conv(w, w_in):
    """Pack a PyTorch-layout conv weight (Cout, Cin, KH, KW) into KH banded
    matrices M[kh] of shape (W_in*Cin, OW*Cout) such that, with the activation
    laid out as (H, W*Cin):  out[oh, ow*Cout+co] = sum_kh x[oh+kh, :] @ M[kh]."""
    w = np.asarray(w, dtype=np.float32)
    cout, cin, n_kh, n_kw = w.shape
    ow = w_in - n_kw + 1
    m = np.zeros((n_kh, w_in * cin, ow * cout), dtype=np.float32)
    for kh in range(n_kh):
        for o in range(ow):
            for kw in range(n_kw):
                wc = o + kw
                m[kh, wc * cin:(wc + 1) * cin,
                  o * cout:(o + 1) * cout] = w[:, :, kh, kw].T
    return m


def pack_params(params):
    """Pack all weights once, at init time, into the kernel's GEMM layouts (bf16)."""
    m1 = _pack_conv(params["conv1"], 28)               # (3, 28, 208)
    m2 = _pack_conv(params["conv2"], 26)               # (3, 208, 384)
    m2 = m2.reshape(3, 208, 24, 16)
    m2e = m2[:, :, 0::2, :].reshape(3, 208, 192)       # even conv2 output columns
    m2o = m2[:, :, 1::2, :].reshape(3, 208, 192)       # odd  conv2 output columns
    m3 = _pack_conv(params["conv3"], 12)[0]            # (192, 96)
    m40 = _pack_conv(params["conv4_0"], 12)            # (3, 96, 120)
    m41 = _pack_conv(params["conv4_1"], 10)            # (3, 120, 128)
    m42 = _pack_conv(params["conv4_2"], 8)              # (3, 128, 120)
    m5 = _pack_conv(params["conv5"], 6)                 # (6, 120, 16)
    sel = np.zeros((12, 23), dtype=np.float32)           # 0/1 row-pool selection
    sel[np.arange(12), 2 * np.arange(12)] = 1.0
    cast = lambda a: jnp.asarray(a, dtype=jnp.bfloat16)
    return {"m1": cast(m1), "m2e": cast(m2e), "m2o": cast(m2o), "sel": cast(sel),
            "m3": cast(m3), "m40": cast(m40), "m41": cast(m41), "m42": cast(m42),
            "m5": cast(m5)}


# ---------------------------------------------------------------------------
# pallas_call wrapper
# ---------------------------------------------------------------------------
def _resident_spec(arr):
    """Full-array block with a constant index map: stays resident in VMEM."""
    shape = arr.shape
    n = len(shape)

    def idx(b):
        return (0,) * n

    return pl.BlockSpec(shape, idx)


def net_forward(packed, x_nchw):
    """x_nchw: (B, 1, 28, 28) float32 (PyTorch NCHW). Returns (B, 16) log-probs."""
    B = x_nchw.shape[0]
    x = x_nchw[:, 0, :, :].astype(jnp.float32)   # (B, 28, 28) == per-sample (H, W*Cin)
    w_names = ("m1", "m2e", "m2o", "sel", "m3", "m40", "m41", "m42", "m5")
    ws = [packed[k] for k in w_names]
    out = pl.pallas_call(
        _fused_net_kernel,
        out_shape=jax.ShapeDtypeStruct((B, 1, 16), jnp.float32),
        grid=(B,),
        in_specs=[pl.BlockSpec((1, 28, 28), lambda b: (b, 0, 0))]
                 + [_resident_spec(w) for w in ws],
        out_specs=pl.BlockSpec((1, 1, 16), lambda b: (b, 0, 0)),
        compiler_params=pltpu.CompilerParams(
            dimension_semantics=("parallel",)),
    )(x, *ws)
    return out.reshape(B, 16)


# ---------------------------------------------------------------------------
# Parameters (deterministic, PyTorch-default-like uniform init, bias=False)
# ---------------------------------------------------------------------------
def init_params(key):
    shapes = {
        "conv1": (8, 1, 3, 3),
        "conv2": (16, 8, 3, 3),
        "conv3": (8, 16, 1, 1),
        "conv4_0": (12, 8, 3, 3),
        "conv4_1": (16, 12, 3, 3),
        "conv4_2": (20, 16, 3, 3),
        "conv5": (16, 20, 6, 6),
    }
    params = {}
    keys = jax.random.split(key, len(shapes))
    for k, (name, shp) in zip(keys, shapes.items()):
        fan_in = shp[1] * shp[2] * shp[3]
        bound = 1.0 / float(np.sqrt(fan_in))
        params[name] = jax.random.uniform(
            k, shp, dtype=jnp.float32, minval=-bound, maxval=bound)
    return params


# ---------------------------------------------------------------------------
# Pure-JAX reference (only used as a numerical cross-check in __main__)
# ---------------------------------------------------------------------------
def _reference_forward(params, x_nchw):
    def conv(x, w):
        return jax.lax.conv_general_dilated(
            x, jnp.transpose(w, (2, 3, 1, 0)), (1, 1), "VALID",
            dimension_numbers=("NHWC", "HWIO", "NHWC"))

    x = jnp.transpose(x_nchw, (0, 2, 3, 1)).astype(jnp.float32)
    x = jax.nn.relu(conv(x, params["conv1"]))
    x = jax.nn.relu(conv(x, params["conv2"]))
    b, h, w, c = x.shape
    x = jnp.max(x.reshape(b, h // 2, 2, w // 2, 2, c), axis=(2, 4))
    x = jax.nn.relu(conv(x, params["conv3"]))
    x = jax.nn.relu(conv(x, params["conv4_0"]))
    x = jax.nn.relu(conv(x, params["conv4_1"]))
    x = jax.nn.relu(conv(x, params["conv4_2"]))
    x = conv(x, params["conv5"])
    return jax.nn.log_softmax(x.reshape(-1, 16), axis=-1)


if __name__ == "__main__":
    key = jax.random.PRNGKey(0)
    pkey, xkey = jax.random.split(key)
    params = init_params(pkey)
    packed = pack_params(params)

    # Input consistent with the module: 1-channel 28x28 (MNIST-style), batch=2.
    x = jax.random.normal(xkey, (2, 1, 28, 28), dtype=jnp.float32)

    y = jax.jit(net_forward)(packed, x)
    y = jax.block_until_ready(y)

    assert y.shape == (2, 16), y.shape
    assert bool(jnp.all(jnp.isfinite(y)))
    # rows of log_softmax must sum to 1 in probability space
    assert bool(jnp.allclose(jnp.sum(jnp.exp(y), axis=-1), 1.0, atol=1e-4))

    # cross-check against a pure-JAX/XLA reference (loose tol: kernel uses bf16 MXU inputs)
    y_ref = _reference_forward(params, x)
    assert bool(jnp.allclose(y, y_ref, atol=3e-2)), (y, y_ref)

    print("KERNEL_OK")
</pallas_src>

<mosaic_0001>
module attributes {stable_mosaic.version = 11 : i64} {
  func.func @_fused_net_kernel(%arg0: i32, %arg1: memref<1x28x28xf32, #tpu.memory_space<vmem>>, %arg2: memref<3x28x208xbf16, #tpu.memory_space<vmem>>, %arg3: memref<3x208x192xbf16, #tpu.memory_space<vmem>>, %arg4: memref<3x208x192xbf16, #tpu.memory_space<vmem>>, %arg5: memref<12x23xbf16, #tpu.memory_space<vmem>>, %arg6: memref<192x96xbf16, #tpu.memory_space<vmem>>, %arg7: memref<3x96x120xbf16, #tpu.memory_space<vmem>>, %arg8: memref<3x120x128xbf16, #tpu.memory_space<vmem>>, %arg9: memref<3x128x120xbf16, #tpu.memory_space<vmem>>, %arg10: memref<6x120x16xbf16, #tpu.memory_space<vmem>>, %arg11: memref<1x1x16xf32, #tpu.memory_space<vmem>>) attributes {dimension_semantics = [#tpu.dimension_semantics<parallel>], iteration_bounds = array<i64: 2>, scalar_prefetch = 0 : i64, scratch_operands = 0 : i64, tpu.core_type = #tpu.core_type<tc>, window_params = [{transform_indices = @transform_0, window_bounds = array<i64: 1, 28, 28>}, {pipeline_mode = #tpu.pipeline_mode<synchronous>, transform_indices = @transform_1, window_bounds = array<i64: 3, 28, 208>}, {pipeline_mode = #tpu.pipeline_mode<synchronous>, transform_indices = @transform_2, window_bounds = array<i64: 3, 208, 192>}, {pipeline_mode = #tpu.pipeline_mode<synchronous>, transform_indices = @transform_3, window_bounds = array<i64: 3, 208, 192>}, {pipeline_mode = #tpu.pipeline_mode<synchronous>, transform_indices = @transform_4, window_bounds = array<i64: 12, 23>}, {pipeline_mode = #tpu.pipeline_mode<synchronous>, transform_indices = @transform_5, window_bounds = array<i64: 192, 96>}, {pipeline_mode = #tpu.pipeline_mode<synchronous>, transform_indices = @transform_6, window_bounds = array<i64: 3, 96, 120>}, {pipeline_mode = #tpu.pipeline_mode<synchronous>, transform_indices = @transform_7, window_bounds = array<i64: 3, 120, 128>}, {pipeline_mode = #tpu.pipeline_mode<synchronous>, transform_indices = @transform_8, window_bounds = array<i64: 3, 128, 120>}, {pipeline_mode = #tpu.pipeline_mode<synchronous>, transform_indices = @transform_9, window_bounds = array<i64: 6, 120, 16>}, {transform_indices = @transform_10, window_bounds = array<i64: 1, 1, 16>}]} {
    %c0 = arith.constant 0 : index
    %c0_0 = arith.constant 0 : index
    %c0_1 = arith.constant 0 : index
    %0 = vector.load %arg1[%c0, %c0_0, %c0_1] : memref<1x28x28xf32, #tpu.memory_space<vmem>>, vector<1x28x28xf32>
    %1 = vector.shape_cast %0 : vector<1x28x28xf32> to vector<28x28xf32>
    %2 = arith.truncf %1 : vector<28x28xf32> to vector<28x28xbf16>
    %3 = vector.extract_strided_slice %2 {offsets = [0, 0], sizes = [26, 28], strides = [1, 1]} : vector<28x28xbf16> to vector<26x28xbf16>
    %c0_2 = arith.constant 0 : index
    %c0_3 = arith.constant 0 : index
    %c0_4 = arith.constant 0 : index
    %4 = vector.load %arg2[%c0_2, %c0_3, %c0_4] : memref<3x28x208xbf16, #tpu.memory_space<vmem>>, vector<1x28x208xbf16>
    %5 = vector.shape_cast %4 : vector<1x28x208xbf16> to vector<28x208xbf16>
    %cst = arith.constant dense<0.000000e+00> : vector<26x208xf32>
    %6 = tpu.matmul %3, %5, %cst {dimension_numbers = #tpu.dot_dimension_numbers<[1], [0], [0], [1], [0, 0, 1, 1], [], []>} : vector<26x28xbf16>, vector<28x208xbf16>, vector<26x208xf32> -> vector<26x208xf32>
    %7 = vector.extract_strided_slice %2 {offsets = [1, 0], sizes = [26, 28], strides = [1, 1]} : vector<28x28xbf16> to vector<26x28xbf16>
    %c1 = arith.constant 1 : index
    %c0_5 = arith.constant 0 : index
    %c0_6 = arith.constant 0 : index
    %8 = vector.load %arg2[%c1, %c0_5, %c0_6] : memref<3x28x208xbf16, #tpu.memory_space<vmem>>, vector<1x28x208xbf16>
    %9 = vector.shape_cast %8 : vector<1x28x208xbf16> to vector<28x208xbf16>
    %cst_7 = arith.constant dense<0.000000e+00> : vector<26x208xf32>
    %10 = tpu.matmul %7, %9, %cst_7 {dimension_numbers = #tpu.dot_dimension_numbers<[1], [0], [0], [1], [0, 0, 1, 1], [], []>} : vector<26x28xbf16>, vector<28x208xbf16>, vector<26x208xf32> -> vector<26x208xf32>
    %11 = arith.addf %6, %10 : vector<26x208xf32>
    %12 = vector.extract_strided_slice %2 {offsets = [2, 0], sizes = [26, 28], strides = [1, 1]} : vector<28x28xbf16> to vector<26x28xbf16>
    %c2 = arith.constant 2 : index
    %c0_8 = arith.constant 0 : index
    %c0_9 = arith.constant 0 : index
    %13 = vector.load %arg2[%c2, %c0_8, %c0_9] : memref<3x28x208xbf16, #tpu.memory_space<vmem>>, vector<1x28x208xbf16>
    %14 = vector.shape_cast %13 : vector<1x28x208xbf16> to vector<28x208xbf16>
    %cst_10 = arith.constant dense<0.000000e+00> : vector<26x208xf32>
    %15 = tpu.matmul %12, %14, %cst_10 {dimension_numbers = #tpu.dot_dimension_numbers<[1], [0], [0], [1], [0, 0, 1, 1], [], []>} : vector<26x28xbf16>, vector<28x208xbf16>, vector<26x208xf32> -> vector<26x208xf32>
    %16 = arith.addf %11, %15 : vector<26x208xf32>
    %cst_11 = arith.constant 0.000000e+00 : f32
    %17 = vector.broadcast %cst_11 : f32 to vector<26x208xf32>
    %18 = arith.maximumf %16, %17 : vector<26x208xf32>
    %19 = arith.truncf %18 : vector<26x208xf32> to vector<26x208xbf16>
    %20 = vector.extract_strided_slice %19 {offsets = [0, 0], sizes = [24, 208], strides = [1, 1]} : vector<26x208xbf16> to vector<24x208xbf16>
    %c0_12 = arith.constant 0 : index
    %c0_13 = arith.constant 0 : index
    %c0_14 = arith.constant 0 : index
    %21 = vector.load %arg3[%c0_12, %c0_13, %c0_14] : memref<3x208x192xbf16, #tpu.memory_space<vmem>>, vector<1x208x192xbf16>
    %22 = vector.shape_cast %21 : vector<1x208x192xbf16> to vector<208x192xbf16>
    %cst_15 = arith.constant dense<0.000000e+00> : vector<24x192xf32>
    %23 = tpu.matmul %20, %22, %cst_15 {dimension_numbers = #tpu.dot_dimension_numbers<[1], [0], [0], [1], [0, 0, 1, 1], [], []>} : vector<24x208xbf16>, vector<208x192xbf16>, vector<24x192xf32> -> vector<24x192xf32>
    %24 = vector.extract_strided_slice %19 {offsets = [1, 0], sizes = [24, 208], strides = [1, 1]} : vector<26x208xbf16> to vector<24x208xbf16>
    %c1_16 = arith.constant 1 : index
    %c0_17 = arith.constant 0 : index
    %c0_18 = arith.constant 0 : index
    %25 = vector.load %arg3[%c1_16, %c0_17, %c0_18] : memref<3x208x192xbf16, #tpu.memory_space<vmem>>, vector<1x208x192xbf16>
    %26 = vector.shape_cast %25 : vector<1x208x192xbf16> to vector<208x192xbf16>
    %cst_19 = arith.constant dense<0.000000e+00> : vector<24x192xf32>
    %27 = tpu.matmul %24, %26, %cst_19 {dimension_numbers = #tpu.dot_dimension_numbers<[1], [0], [0], [1], [0, 0, 1, 1], [], []>} : vector<24x208xbf16>, vector<208x192xbf16>, vector<24x192xf32> -> vector<24x192xf32>
    %28 = arith.addf %23, %27 : vector<24x192xf32>
    %29 = vector.extract_strided_slice %19 {offsets = [2, 0], sizes = [24, 208], strides = [1, 1]} : vector<26x208xbf16> to vector<24x208xbf16>
    %c2_20 = arith.constant 2 : index
    %c0_21 = arith.constant 0 : index
    %c0_22 = arith.constant 0 : index
    %30 = vector.load %arg3[%c2_20, %c0_21, %c0_22] : memref<3x208x192xbf16, #tpu.memory_space<vmem>>, vector<1x208x192xbf16>
    %31 = vector.shape_cast %30 : vector<1x208x192xbf16> to vector<208x192xbf16>
    %cst_23 = arith.constant dense<0.000000e+00> : vector<24x192xf32>
    %32 = tpu.matmul %29, %31, %cst_23 {dimension_numbers = #tpu.dot_dimension_numbers<[1], [0], [0], [1], [0, 0, 1, 1], [], []>} : vector<24x208xbf16>, vector<208x192xbf16>, vector<24x192xf32> -> vector<24x192xf32>
    %33 = arith.addf %28, %32 : vector<24x192xf32>
    %cst_24 = arith.constant 0.000000e+00 : f32
    %34 = vector.broadcast %cst_24 : f32 to vector<24x192xf32>
    %35 = arith.maximumf %33, %34 : vector<24x192xf32>
    %36 = arith.truncf %18 : vector<26x208xf32> to vector<26x208xbf16>
    %37 = vector.extract_strided_slice %36 {offsets = [0, 0], sizes = [24, 208], strides = [1, 1]} : vector<26x208xbf16> to vector<24x208xbf16>
    %c0_25 = arith.constant 0 : index
    %c0_26 = arith.constant 0 : index
    %c0_27 = arith.constant 0 : index
    %38 = vector.load %arg4[%c0_25, %c0_26, %c0_27] : memref<3x208x192xbf16, #tpu.memory_space<vmem>>, vector<1x208x192xbf16>
    %39 = vector.shape_cast %38 : vector<1x208x192xbf16> to vector<208x192xbf16>
    %cst_28 = arith.constant dense<0.000000e+00> : vector<24x192xf32>
    %40 = tpu.matmul %37, %39, %cst_28 {dimension_numbers = #tpu.dot_dimension_numbers<[1], [0], [0], [1], [0, 0, 1, 1], [], []>} : vector<24x208xbf16>, vector<208x192xbf16>, vector<24x192xf32> -> vector<24x192xf32>
    %41 = vector.extract_strided_slice %36 {offsets = [1, 0], sizes = [24, 208], strides = [1, 1]} : vector<26x208xbf16> to vector<24x208xbf16>
    %c1_29 = arith.constant 1 : index
    %c0_30 = arith.constant 0 : index
    %c0_31 = arith.constant 0 : index
    %42 = vector.load %arg4[%c1_29, %c0_30, %c0_31] : memref<3x208x192xbf16, #tpu.memory_space<vmem>>, vector<1x208x192xbf16>
    %43 = vector.shape_cast %42 : vector<1x208x192xbf16> to vector<208x192xbf16>
    %cst_32 = arith.constant dense<0.000000e+00> : vector<24x192xf32>
    %44 = tpu.matmul %41, %43, %cst_32 {dimension_numbers = #tpu.dot_dimension_numbers<[1], [0], [0], [1], [0, 0, 1, 1], [], []>} : vector<24x208xbf16>, vector<208x192xbf16>, vector<24x192xf32> -> vector<24x192xf32>
    %45 = arith.addf %40, %44 : vector<24x192xf32>
    %46 = vector.extract_strided_slice %36 {offsets = [2, 0], sizes = [24, 208], strides = [1, 1]} : vector<26x208xbf16> to vector<24x208xbf16>
    %c2_33 = arith.constant 2 : index
    %c0_34 = arith.constant 0 : index
    %c0_35 = arith.constant 0 : index
    %47 = vector.load %arg4[%c2_33, %c0_34, %c0_35] : memref<3x208x192xbf16, #tpu.memory_space<vmem>>, vector<1x208x192xbf16>
    %48 = vector.shape_cast %47 : vector<1x208x192xbf16> to vector<208x192xbf16>
    %cst_36 = arith.constant dense<0.000000e+00> : vector<24x192xf32>
    %49 = tpu.matmul %46, %48, %cst_36 {dimension_numbers = #tpu.dot_dimension_numbers<[1], [0], [0], [1], [0, 0, 1, 1], [], []>} : vector<24x208xbf16>, vector<208x192xbf16>, vector<24x192xf32> -> vector<24x192xf32>
    %50 = arith.addf %45, %49 : vector<24x192xf32>
    %cst_37 = arith.constant 0.000000e+00 : f32
    %51 = vector.broadcast %cst_37 : f32 to vector<24x192xf32>
    %52 = arith.maximumf %50, %51 : vector<24x192xf32>
    %53 = arith.maximumf %35, %52 : vector<24x192xf32>
    %54 = vector.extract_strided_slice %53 {offsets = [0, 0], sizes = [23, 192], strides = [1, 1]} : vector<24x192xf32> to vector<23x192xf32>
    %55 = vector.extract_strided_slice %53 {offsets = [1, 0], sizes = [23, 192], strides = [1, 1]} : vector<24x192xf32> to vector<23x192xf32>
    %56 = arith.maximumf %54, %55 : vector<23x192xf32>
    %c0_38 = arith.constant 0 : index
    %c0_39 = arith.constant 0 : index
    %57 = vector.load %arg5[%c0_38, %c0_39] : memref<12x23xbf16, #tpu.memory_space<vmem>>, vector<12x23xbf16>
    %58 = arith.truncf %56 : vector<23x192xf32> to vector<23x192xbf16>
    %cst_40 = arith.constant dense<0.000000e+00> : vector<12x192xf32>
    %59 = tpu.matmul %57, %58, %cst_40 {dimension_numbers = #tpu.dot_dimension_numbers<[1], [0], [0], [1], [0, 0, 1, 1], [], []>} : vector<12x23xbf16>, vector<23x192xbf16>, vector<12x192xf32> -> vector<12x192xf32>
    %60 = arith.truncf %59 : vector<12x192xf32> to vector<12x192xbf16>
    %c0_41 = arith.constant 0 : index
    %c0_42 = arith.constant 0 : index
    %61 = vector.load %arg6[%c0_41, %c0_42] : memref<192x96xbf16, #tpu.memory_space<vmem>>, vector<192x96xbf16>
    %cst_43 = arith.constant dense<0.000000e+00> : vector<12x96xf32>
    %62 = tpu.matmul %60, %61, %cst_43 {dimension_numbers = #tpu.dot_dimension_numbers<[1], [0], [0], [1], [0, 0, 1, 1], [], []>} : vector<12x192xbf16>, vector<192x96xbf16>, vector<12x96xf32> -> vector<12x96xf32>
    %cst_44 = arith.constant 0.000000e+00 : f32
    %63 = vector.broadcast %cst_44 : f32 to vector<12x96xf32>
    %64 = arith.maximumf %62, %63 : vector<12x96xf32>
    %65 = arith.truncf %64 : vector<12x96xf32> to vector<12x96xbf16>
    %66 = vector.extract_strided_slice %65 {offsets = [0, 0], sizes = [10, 96], strides = [1, 1]} : vector<12x96xbf16> to vector<10x96xbf16>
    %c0_45 = arith.constant 0 : index
    %c0_46 = arith.constant 0 : index
    %c0_47 = arith.constant 0 : index
    %67 = vector.load %arg7[%c0_45, %c0_46, %c0_47] : memref<3x96x120xbf16, #tpu.memory_space<vmem>>, vector<1x96x120xbf16>
    %68 = vector.shape_cast %67 : vector<1x96x120xbf16> to vector<96x120xbf16>
    %cst_48 = arith.constant dense<0.000000e+00> : vector<10x120xf32>
    %69 = tpu.matmul %66, %68, %cst_48 {dimension_numbers = #tpu.dot_dimension_numbers<[1], [0], [0], [1], [0, 0, 1, 1], [], []>} : vector<10x96xbf16>, vector<96x120xbf16>, vector<10x120xf32> -> vector<10x120xf32>
    %70 = vector.extract_strided_slice %65 {offsets = [1, 0], sizes = [10, 96], strides = [1, 1]} : vector<12x96xbf16> to vector<10x96xbf16>
    %c1_49 = arith.constant 1 : index
    %c0_50 = arith.constant 0 : index
    %c0_51 = arith.constant 0 : index
    %71 = vector.load %arg7[%c1_49, %c0_50, %c0_51] : memref<3x96x120xbf16, #tpu.memory_space<vmem>>, vector<1x96x120xbf16>
    %72 = vector.shape_cast %71 : vector<1x96x120xbf16> to vector<96x120xbf16>
    %cst_52 = arith.constant dense<0.000000e+00> : vector<10x120xf32>
    %73 = tpu.matmul %70, %72, %cst_52 {dimension_numbers = #tpu.dot_dimension_numbers<[1], [0], [0], [1], [0, 0, 1, 1], [], []>} : vector<10x96xbf16>, vector<96x120xbf16>, vector<10x120xf32> -> vector<10x120xf32>
    %74 = arith.addf %69, %73 : vector<10x120xf32>
    %75 = vector.extract_strided_slice %65 {offsets = [2, 0], sizes = [10, 96], strides = [1, 1]} : vector<12x96xbf16> to vector<10x96xbf16>
    %c2_53 = arith.constant 2 : index
    %c0_54 = arith.constant 0 : index
    %c0_55 = arith.constant 0 : index
    %76 = vector.load %arg7[%c2_53, %c0_54, %c0_55] : memref<3x96x120xbf16, #tpu.memory_space<vmem>>, vector<1x96x120xbf16>
    %77 = vector.shape_cast %76 : vector<1x96x120xbf16> to vector<96x120xbf16>
    %cst_56 = arith.constant dense<0.000000e+00> : vector<10x120xf32>
    %78 = tpu.matmul %75, %77, %cst_56 {dimension_numbers = #tpu.dot_dimension_numbers<[1], [0], [0], [1], [0, 0, 1, 1], [], []>} : vector<10x96xbf16>, vector<96x120xbf16>, vector<10x120xf32> -> vector<10x120xf32>
    %79 = arith.addf %74, %78 : vector<10x120xf32>
    %cst_57 = arith.constant 0.000000e+00 : f32
    %80 = vector.broadcast %cst_57 : f32 to vector<10x120xf32>
    %81 = arith.maximumf %79, %80 : vector<10x120xf32>
    %82 = arith.truncf %81 : vector<10x120xf32> to vector<10x120xbf16>
    %83 = vector.extract_strided_slice %82 {offsets = [0, 0], sizes = [8, 120], strides = [1, 1]} : vector<10x120xbf16> to vector<8x120xbf16>
    %c0_58 = arith.constant 0 : index
    %c0_59 = arith.constant 0 : index
    %c0_60 = arith.constant 0 : index
    %84 = vector.load %arg8[%c0_58, %c0_59, %c0_60] : memref<3x120x128xbf16, #tpu.memory_space<vmem>>, vector<1x120x128xbf16>
    %85 = vector.shape_cast %84 : vector<1x120x128xbf16> to vector<120x128xbf16>
    %cst_61 = arith.constant dense<0.000000e+00> : vector<8x128xf32>
    %86 = tpu.matmul %83, %85, %cst_61 {dimension_numbers = #tpu.dot_dimension_numbers<[1], [0], [0], [1], [0, 0, 1, 1], [], []>} : vector<8x120xbf16>, vector<120x128xbf16>, vector<8x128xf32> -> vector<8x128xf32>
    %87 = vector.extract_strided_slice %82 {offsets = [1, 0], sizes = [8, 120], strides = [1, 1]} : vector<10x120xbf16> to vector<8x120xbf16>
    %c1_62 = arith.constant 1 : index
    %c0_63 = arith.constant 0 : index
    %c0_64 = arith.constant 0 : index
    %88 = vector.load %arg8[%c1_62, %c0_63, %c0_64] : memref<3x120x128xbf16, #tpu.memory_space<vmem>>, vector<1x120x128xbf16>
    %89 = vector.shape_cast %88 : vector<1x120x128xbf16> to vector<120x128xbf16>
    %cst_65 = arith.constant dense<0.000000e+00> : vector<8x128xf32>
    %90 = tpu.matmul %87, %89, %cst_65 {dimension_numbers = #tpu.dot_dimension_numbers<[1], [0], [0], [1], [0, 0, 1, 1], [], []>} : vector<8x120xbf16>, vector<120x128xbf16>, vector<8x128xf32> -> vector<8x128xf32>
    %91 = arith.addf %86, %90 : vector<8x128xf32>
    %92 = vector.extract_strided_slice %82 {offsets = [2, 0], sizes = [8, 120], strides = [1, 1]} : vector<10x120xbf16> to vector<8x120xbf16>
    %c2_66 = arith.constant 2 : index
    %c0_67 = arith.constant 0 : index
    %c0_68 = arith.constant 0 : index
    %93 = vector.load %arg8[%c2_66, %c0_67, %c0_68] : memref<3x120x128xbf16, #tpu.memory_space<vmem>>, vector<1x120x128xbf16>
    %94 = vector.shape_cast %93 : vector<1x120x128xbf16> to vector<120x128xbf16>
    %cst_69 = arith.constant dense<0.000000e+00> : vector<8x128xf32>
    %95 = tpu.matmul %92, %94, %cst_69 {dimension_numbers = #tpu.dot_dimension_numbers<[1], [0], [0], [1], [0, 0, 1, 1], [], []>} : vector<8x120xbf16>, vector<120x128xbf16>, vector<8x128xf32> -> vector<8x128xf32>
    %96 = arith.addf %91, %95 : vector<8x128xf32>
    %cst_70 = arith.constant 0.000000e+00 : f32
    %97 = vector.broadcast %cst_70 : f32 to vector<8x128xf32>
    %98 = arith.maximumf %96, %97 : vector<8x128xf32>
    %99 = arith.truncf %98 : vector<8x128xf32> to vector<8x128xbf16>
    %100 = vector.extract_strided_slice %99 {offsets = [0, 0], sizes = [6, 128], strides = [1, 1]} : vector<8x128xbf16> to vector<6x128xbf16>
    %c0_71 = arith.constant 0 : index
    %c0_72 = arith.constant 0 : index
    %c0_73 = arith.constant 0 : index
    %101 = vector.load %arg9[%c0_71, %c0_72, %c0_73] : memref<3x128x120xbf16, #tpu.memory_space<vmem>>, vector<1x128x120xbf16>
    %102 = vector.shape_cast %101 : vector<1x128x120xbf16> to vector<128x120xbf16>
    %cst_74 = arith.constant dense<0.000000e+00> : vector<6x120xf32>
    %103 = tpu.matmul %100, %102, %cst_74 {dimension_numbers = #tpu.dot_dimension_numbers<[1], [0], [0], [1], [0, 0, 1, 1], [], []>} : vector<6x128xbf16>, vector<128x120xbf16>, vector<6x120xf32> -> vector<6x120xf32>
    %104 = vector.extract_strided_slice %99 {offsets = [1, 0], sizes = [6, 128], strides = [1, 1]} : vector<8x128xbf16> to vector<6x128xbf16>
    %c1_75 = arith.constant 1 : index
    %c0_76 = arith.constant 0 : index
    %c0_77 = arith.constant 0 : index
    %105 = vector.load %arg9[%c1_75, %c0_76, %c0_77] : memref<3x128x120xbf16, #tpu.memory_space<vmem>>, vector<1x128x120xbf16>
    %106 = vector.shape_cast %105 : vector<1x128x120xbf16> to vector<128x120xbf16>
    %cst_78 = arith.constant dense<0.000000e+00> : vector<6x120xf32>
    %107 = tpu.matmul %104, %106, %cst_78 {dimension_numbers = #tpu.dot_dimension_numbers<[1], [0], [0], [1], [0, 0, 1, 1], [], []>} : vector<6x128xbf16>, vector<128x120xbf16>, vector<6x120xf32> -> vector<6x120xf32>
    %108 = arith.addf %103, %107 : vector<6x120xf32>
    %109 = vector.extract_strided_slice %99 {offsets = [2, 0], sizes = [6, 128], strides = [1, 1]} : vector<8x128xbf16> to vector<6x128xbf16>
    %c2_79 = arith.constant 2 : index
    %c0_80 = arith.constant 0 : index
    %c0_81 = arith.constant 0 : index
    %110 = vector.load %arg9[%c2_79, %c0_80, %c0_81] : memref<3x128x120xbf16, #tpu.memory_space<vmem>>, vector<1x128x120xbf16>
    %111 = vector.shape_cast %110 : vector<1x128x120xbf16> to vector<128x120xbf16>
    %cst_82 = arith.constant dense<0.000000e+00> : vector<6x120xf32>
    %112 = tpu.matmul %109, %111, %cst_82 {dimension_numbers = #tpu.dot_dimension_numbers<[1], [0], [0], [1], [0, 0, 1, 1], [], []>} : vector<6x128xbf16>, vector<128x120xbf16>, vector<6x120xf32> -> vector<6x120xf32>
    %113 = arith.addf %108, %112 : vector<6x120xf32>
    %cst_83 = arith.constant 0.000000e+00 : f32
    %114 = vector.broadcast %cst_83 : f32 to vector<6x120xf32>
    %115 = arith.maximumf %113, %114 : vector<6x120xf32>
    %116 = arith.truncf %115 : vector<6x120xf32> to vector<6x120xbf16>
    %117 = vector.extract_strided_slice %116 {offsets = [0, 0], sizes = [1, 120], strides = [1, 1]} : vector<6x120xbf16> to vector<1x120xbf16>
    %c0_84 = arith.constant 0 : index
    %c0_85 = arith.constant 0 : index
    %c0_86 = arith.constant 0 : index
    %118 = vector.load %arg10[%c0_84, %c0_85, %c0_86] : memref<6x120x16xbf16, #tpu.memory_space<vmem>>, vector<1x120x16xbf16>
    %119 = vector.shape_cast %118 : vector<1x120x16xbf16> to vector<120x16xbf16>
    %cst_87 = arith.constant dense<0.000000e+00> : vector<1x16xf32>
    %120 = tpu.matmul %117, %119, %cst_87 {dimension_numbers = #tpu.dot_dimension_numbers<[1], [0], [0], [1], [0, 0, 1, 1], [], []>} : vector<1x120xbf16>, vector<120x16xbf16>, vector<1x16xf32> -> vector<1x16xf32>
    %121 = vector.extract_strided_slice %116 {offsets = [1, 0], sizes = [1, 120], strides = [1, 1]} : vector<6x120xbf16> to vector<1x120xbf16>
    %c1_88 = arith.constant 1 : index
    %c0_89 = arith.constant 0 : index
    %c0_90 = arith.constant 0 : index
    %122 = vector.load %arg10[%c1_88, %c0_89, %c0_90] : memref<6x120x16xbf16, #tpu.memory_space<vmem>>, vector<1x120x16xbf16>
    %123 = vector.shape_cast %122 : vector<1x120x16xbf16> to vector<120x16xbf16>
    %cst_91 = arith.constant dense<0.000000e+00> : vector<1x16xf32>
    %124 = tpu.matmul %121, %123, %cst_91 {dimension_numbers = #tpu.dot_dimension_numbers<[1], [0], [0], [1], [0, 0, 1, 1], [], []>} : vector<1x120xbf16>, vector<120x16xbf16>, vector<1x16xf32> -> vector<1x16xf32>
    %125 = arith.addf %120, %124 : vector<1x16xf32>
    %126 = vector.extract_strided_slice %116 {offsets = [2, 0], sizes = [1, 120], strides = [1, 1]} : vector<6x120xbf16> to vector<1x120xbf16>
    %c2_92 = arith.constant 2 : index
    %c0_93 = arith.constant 0 : index
    %c0_94 = arith.constant 0 : index
    %127 = vector.load %arg10[%c2_92, %c0_93, %c0_94] : memref<6x120x16xbf16, #tpu.memory_space<vmem>>, vector<1x120x16xbf16>
    %128 = vector.shape_cast %127 : vector<1x120x16xbf16> to vector<120x16xbf16>
    %cst_95 = arith.constant dense<0.000000e+00> : vector<1x16xf32>
    %129 = tpu.matmul %126, %128, %cst_95 {dimension_numbers = #tpu.dot_dimension_numbers<[1], [0], [0], [1], [0, 0, 1, 1], [], []>} : vector<1x120xbf16>, vector<120x16xbf16>, vector<1x16xf32> -> vector<1x16xf32>
    %130 = arith.addf %125, %129 : vector<1x16xf32>
    %131 = vector.extract_strided_slice %116 {offsets = [3, 0], sizes = [1, 120], strides = [1, 1]} : vector<6x120xbf16> to vector<1x120xbf16>
    %c3 = arith.constant 3 : index
    %c0_96 = arith.constant 0 : index
    %c0_97 = arith.constant 0 : index
    %132 = vector.load %arg10[%c3, %c0_96, %c0_97] : memref<6x120x16xbf16, #tpu.memory_space<vmem>>, vector<1x120x16xbf16>
    %133 = vector.shape_cast %132 : vector<1x120x16xbf16> to vector<120x16xbf16>
    %cst_98 = arith.constant dense<0.000000e+00> : vector<1x16xf32>
    %134 = tpu.matmul %131, %133, %cst_98 {dimension_numbers = #tpu.dot_dimension_numbers<[1], [0], [0], [1], [0, 0, 1, 1], [], []>} : vector<1x120xbf16>, vector<120x16xbf16>, vector<1x16xf32> -> vector<1x16xf32>
    %135 = arith.addf %130, %134 : vector<1x16xf32>
    %136 = vector.extract_strided_slice %116 {offsets = [4, 0], sizes = [1, 120], strides = [1, 1]} : vector<6x120xbf16> to vector<1x120xbf16>
    %c4 = arith.constant 4 : index
    %c0_99 = arith.constant 0 : index
    %c0_100 = arith.constant 0 : index
    %137 = vector.load %arg10[%c4, %c0_99, %c0_100] : memref<6x120x16xbf16, #tpu.memory_space<vmem>>, vector<1x120x16xbf16>
    %138 = vector.shape_cast %137 : vector<1x120x16xbf16> to vector<120x16xbf16>
    %cst_101 = arith.constant dense<0.000000e+00> : vector<1x16xf32>
    %139 = tpu.matmul %136, %138, %cst_101 {dimension_numbers = #tpu.dot_dimension_numbers<[1], [0], [0], [1], [0, 0, 1, 1], [], []>} : vector<1x120xbf16>, vector<120x16xbf16>, vector<1x16xf32> -> vector<1x16xf32>
    %140 = arith.addf %135, %139 : vector<1x16xf32>
    %141 = vector.extract_strided_slice %116 {offsets = [5, 0], sizes = [1, 120], strides = [1, 1]} : vector<6x120xbf16> to vector<1x120xbf16>
    %c5 = arith.constant 5 : index
    %c0_102 = arith.constant 0 : index
    %c0_103 = arith.constant 0 : index
    %142 = vector.load %arg10[%c5, %c0_102, %c0_103] : memref<6x120x16xbf16, #tpu.memory_space<vmem>>, vector<1x120x16xbf16>
    %143 = vector.shape_cast %142 : vector<1x120x16xbf16> to vector<120x16xbf16>
    %cst_104 = arith.constant dense<0.000000e+00> : vector<1x16xf32>
    %144 = tpu.matmul %141, %143, %cst_104 {dimension_numbers = #tpu.dot_dimension_numbers<[1], [0], [0], [1], [0, 0, 1, 1], [], []>} : vector<1x120xbf16>, vector<120x16xbf16>, vector<1x16xf32> -> vector<1x16xf32>
    %145 = arith.addf %140, %144 : vector<1x16xf32>
    %cst_105 = arith.constant dense<0xFF800000> : vector<1xf32>
    %146 = vector.multi_reduction <maximumf>, %145, %cst_105 [1] : vector<1x16xf32> to vector<1xf32>
    %147 = vector.shape_cast %146 : vector<1xf32> to vector<1x1xf32>
    %148 = vector.broadcast %147 : vector<1x1xf32> to vector<1x16xf32>
    %149 = arith.subf %145, %148 : vector<1x16xf32>
    %150 = math.exp %149 : vector<1x16xf32>
    %cst_106 = arith.constant dense<0.000000e+00> : vector<1xf32>
    %151 = vector.multi_reduction <add>, %150, %cst_106 [1] : vector<1x16xf32> to vector<1xf32>
    %152 = vector.shape_cast %151 : vector<1xf32> to vector<1x1xf32>
    %153 = math.log %152 : vector<1x1xf32>
    %154 = vector.broadcast %153 : vector<1x1xf32> to vector<1x16xf32>
    %155 = arith.subf %149, %154 : vector<1x16xf32>
    %c0_107 = arith.constant 0 : index
    %c0_108 = arith.constant 0 : index
    %c0_109 = arith.constant 0 : index
    %156 = vector.load %arg11[%c0_107, %c0_108, %c0_109] : memref<1x1x16xf32, #tpu.memory_space<vmem>>, vector<1x1x16xf32>
    %157 = vector.shape_cast %156 : vector<1x1x16xf32> to vector<1x16xf32>
    %158 = vector.shape_cast %155 : vector<1x16xf32> to vector<1x1x16xf32>
    tpu.vector_store %arg11[%c0_107, %c0_108, %c0_109], %158 {strides = array<i32>} : memref<1x1x16xf32, #tpu.memory_space<vmem>>, vector<1x1x16xf32>,
    return
  }
  func.func @transform_0(%arg0: i32) -> (i32, i32, i32) {
    %c0_i32 = arith.constant 0 : i32
    %c0_i32_0 = arith.constant 0 : i32
    %c0_i32_1 = arith.constant 0 : i32
    return %arg0, %c0_i32, %c0_i32_0 : i32, i32, i32
  }
  func.func @transform_1(%arg0: i32) -> (i32, i32, i32) {
    %c0_i32 = arith.constant 0 : i32
    %c0_i32_0 = arith.constant 0 : i32
    %c0_i32_1 = arith.constant 0 : i32
    %c0_i32_2 = arith.constant 0 : i32
    return %c0_i32, %c0_i32_0, %c0_i32_1 : i32, i32, i32
  }
  func.func @transform_2(%arg0: i32) -> (i32, i32, i32) {
    %c0_i32 = arith.constant 0 : i32
    %c0_i32_0 = arith.constant 0 : i32
    %c0_i32_1 = arith.constant 0 : i32
    %c0_i32_2 = arith.constant 0 : i32
    return %c0_i32, %c0_i32_0, %c0_i32_1 : i32, i32, i32
  }
  func.func @transform_3(%arg0: i32) -> (i32, i32, i32) {
    %c0_i32 = arith.constant 0 : i32
    %c0_i32_0 = arith.constant 0 : i32
    %c0_i32_1 = arith.constant 0 : i32
    %c0_i32_2 = arith.constant 0 : i32
    return %c0_i32, %c0_i32_0, %c0_i32_1 : i32, i32, i32
  }
  func.func @transform_4(%arg0: i32) -> (i32, i32) {
    %c0_i32 = arith.constant 0 : i32
    %c0_i32_0 = arith.constant 0 : i32
    %c0_i32_1 = arith.constant 0 : i32
    return %c0_i32, %c0_i32_0 : i32, i32
  }
  func.func @transform_5(%arg0: i32) -> (i32, i32) {
    %c0_i32 = arith.constant 0 : i32
    %c0_i32_0 = arith.constant 0 : i32
    %c0_i32_1 = arith.constant 0 : i32
    return %c0_i32, %c0_i32_0 : i32, i32
  }
  func.func @transform_6(%arg0: i32) -> (i32, i32, i32) {
    %c0_i32 = arith.constant 0 : i32
    %c0_i32_0 = arith.constant 0 : i32
    %c0_i32_1 = arith.constant 0 : i32
    %c0_i32_2 = arith.constant 0 : i32
    return %c0_i32, %c0_i32_0, %c0_i32_1 : i32, i32, i32
  }
  func.func @transform_7(%arg0: i32) -> (i32, i32, i32) {
    %c0_i32 = arith.constant 0 : i32
    %c0_i32_0 = arith.constant 0 : i32
    %c0_i32_1 = arith.constant 0 : i32
    %c0_i32_2 = arith.constant 0 : i32
    return %c0_i32, %c0_i32_0, %c0_i32_1 : i32, i32, i32
  }
  func.func @transform_8(%arg0: i32) -> (i32, i32, i32) {
    %c0_i32 = arith.constant 0 : i32
    %c0_i32_0 = arith.constant 0 : i32
    %c0_i32_1 = arith.constant 0 : i32
    %c0_i32_2 = arith.constant 0 : i32
    return %c0_i32, %c0_i32_0, %c0_i32_1 : i32, i32, i32
  }
  func.func @transform_9(%arg0: i32) -> (i32, i32, i32) {
    %c0_i32 = arith.constant 0 : i32
    %c0_i32_0 = arith.constant 0 : i32
    %c0_i32_1 = arith.constant 0 : i32
    %c0_i32_2 = arith.constant 0 : i32
    return %c0_i32, %c0_i32_0, %c0_i32_1 : i32, i32, i32
  }
  func.func @transform_10(%arg0: i32) -> (i32, i32, i32) {
    %c0_i32 = arith.constant 0 : i32
    %c0_i32_0 = arith.constant 0 : i32
    %c0_i32_1 = arith.constant 0 : i32
    return %arg0, %c0_i32, %c0_i32_0 : i32, i32, i32
  }
}

</mosaic_0001>

<llo_original>
// kernel: net_forward.1
$region0: #{net_forward.1}
  #allocation0 [shape = 'u32[]', space=smem, size = 0x4, offset = 0x4, fixed_abs, tag = 'smem constant byte address 0x4 - core index']
  #allocation1 [shape = 'u32[72,128]{1,0:T(1,128)}', space=vmem, size = 0x9000, scoped, tag = 'internal scratch']
  %s0 = inlined_call_operand.vmem [shape: f32[2,28,28], index: 0, kind: input, shape index: {}]
  %s1 = inlined_call_operand.vmem [shape: bf16[3,28,208], index: 1, kind: input, shape index: {}]
  %s2 = inlined_call_operand.vmem [shape: bf16[3,208,192], index: 2, kind: input, shape index: {}]
  %s3 = inlined_call_operand.vmem [shape: bf16[3,208,192], index: 3, kind: input, shape index: {}]
  %s4 = inlined_call_operand.vmem [shape: bf16[12,23], index: 4, kind: input, shape index: {}]
  %s5 = inlined_call_operand.vmem [shape: bf16[192,96], index: 5, kind: input, shape index: {}]
  %s6 = inlined_call_operand.vmem [shape: bf16[3,96,120], index: 6, kind: input, shape index: {}]
  %s7 = inlined_call_operand.vmem [shape: bf16[3,120,128], index: 7, kind: input, shape index: {}]
  %s8 = inlined_call_operand.vmem [shape: bf16[3,128,120], index: 8, kind: input, shape index: {}]
  %s9 = inlined_call_operand.vmem [shape: bf16[6,120,16], index: 9, kind: input, shape index: {}]
  %s10 = inlined_call_operand.hbm [shape: f32[2,1,16], index: 10, kind: output, shape index: {}]
  %s11 = sld [smem:[#allocation0]]
  $region73: #{net_forward.1} parent=0
    _
  %s13 = ssub.s32 1, %s11
  %s14 = scalar_select 0, %s13, %s11
  $region1: #{net_forward.1} parent=0
    #allocation2 [shape = 'u8[1024]{0}', space=vmem, size = 0x400, scoped, tag = 'output window, operand 0']
    #allocation3 [shape = 's32[2]{0}', space=sflag, size = 0x8, scoped, tag = 'scoped memory for net_forward.1']
    %15 = vsyncpa [#allocation3], 0
    %s16 = scalar_lea.sflag [#allocation3], 1
    %17 = vsyncpa %s16, 0
    loop: start=0, step=1, limit=4
    $region2: #{net_forward.1} parent=1 // loop_pre_header
      _
    $region3: #{net_forward.1} parent=1 // loop_header
      %s19 = sphi 0, %s23
      %p20 = scmp.ge.s32.totalorder %s19, 4
      %s29 = sphi 0, %s31
      %s32 = sphi 0, %s29
      %s33 = sphi 0, %s32
      %s49 = sphi 0, %s33
      %s53 = sphi 0, %s53
      %s55 = sphi 0, %s53
      %s56 = sphi 0, %s55
      %s70 = sphi 0, %s56
      %s74 = sphi 0, %s74
      %s76 = sphi 0, %s74
      %s77 = sphi 0, %s76
      %s91 = sphi 0, %s77
      %s95 = sphi 0, %s95
      %s97 = sphi 0, %s95
      %s98 = sphi 0, %s97
      %s112 = sphi 0, %s98
      %s116 = sphi 0, %s116
      %s118 = sphi 0, %s116
      %s119 = sphi 0, %s118
      %s133 = sphi 0, %s119
      %s137 = sphi 0, %s137
      %s139 = sphi 0, %s137
      %s140 = sphi 0, %s139
      %s154 = sphi 0, %s140
      %s158 = sphi 0, %s158
      %s160 = sphi 0, %s158
      %s161 = sphi 0, %s160
      %s175 = sphi 0, %s161
      %s179 = sphi 0, %s179
      %s181 = sphi 0, %s179
      %s182 = sphi 0, %s181
      %s196 = sphi 0, %s182
      %s200 = sphi 0, %s200
      %s202 = sphi 0, %s200
      %s203 = sphi 0, %s202
      %s217 = sphi 0, %s203
      %s221 = sphi 0, %s221
      %s223 = sphi 0, %s221
      %s224 = sphi 0, %s223
      %s238 = sphi 0, %s224
      %s244 = sphi 0, %s246
      %s247 = sphi 0, %s244
      %s248 = sphi 0, %s247
      %s264 = sphi 0, %s248
    $region4: #{net_forward.1} parent=1 // loop_header_branch
      %22 = sbr.rel (%p20) target = $region8
    $region5: #{net_forward.1} parent=1 // loop_body
      %s24 = ssub.s32 %s19, 1
      %s25 = ssub.s32 %s19, 2
      %s26 = sadd.s32 %s19, 1
      %s27 = ssub.s32 %s19, %s26
      %p28 = scmp.eq.s32.totalorder %s27, 0
      %s30 = sadd.s32 %s29, 1
      %s31 = scalar_select %p28, %s29, %s30
      %p34 = pneg %p28
      %p35 = scmp.eq.s32.totalorder %s19, 1
      %p36 = por %p34, %p35
      %p37 = scmp.ne.s32.totalorder %s29, %s32
      %p38 = scmp.eq.s32.totalorder %s19, 0
      %p39 = por %p37, %p38
      %p40 = scmp.ne.s32.totalorder %s29, %s32
      %p41 = scmp.eq.s32.totalorder %s24, 1
      %p42 = por %p40, %p41
      %p43 = scmp.ne.s32.totalorder %s32, %s33
      %p44 = scmp.eq.s32.totalorder %s24, 0
      %p45 = por %p43, %p44
      %p46 = scmp.ne.s32.totalorder %s32, %s33
      %p47 = scmp.eq.s32.totalorder %s25, 1
      %p48 = por %p46, %p47
      %p50 = scmp.ne.s32.totalorder %s33, %s49
      %p51 = scmp.eq.s32.totalorder %s25, 0
      %p52 = por %p50, %p51
      %s54 = sadd.s32 %s53, 1
      %p57 = scmp.eq.s32.totalorder %s19, 1
      %p58 = scmp.ne.s32.totalorder %s53, %s55
      %p59 = scmp.eq.s32.totalorder %s19, 0
      %p60 = por %p58, %p59
      %p61 = scmp.ne.s32.totalorder %s53, %s55
      %p62 = scmp.eq.s32.totalorder %s24, 1
      %p63 = por %p61, %p62
      %p64 = scmp.ne.s32.totalorder %s55, %s56
      %p65 = scmp.eq.s32.totalorder %s24, 0
      %p66 = por %p64, %p65
      %p67 = scmp.ne.s32.totalorder %s55, %s56
      %p68 = scmp.eq.s32.totalorder %s25, 1
      %p69 = por %p67, %p68
      %p71 = scmp.ne.s32.totalorder %s56, %s70
      %p72 = scmp.eq.s32.totalorder %s25, 0
      %p73 = por %p71, %p72
      %s75 = sadd.s32 %s74, 1
      %p78 = scmp.eq.s32.totalorder %s19, 1
      %p79 = scmp.ne.s32.totalorder %s74, %s76
      %p80 = scmp.eq.s32.totalorder %s19, 0
      %p81 = por %p79, %p80
      %p82 = scmp.ne.s32.totalorder %s74, %s76
      %p83 = scmp.eq.s32.totalorder %s24, 1
      %p84 = por %p82, %p83
      %p85 = scmp.ne.s32.totalorder %s76, %s77
      %p86 = scmp.eq.s32.totalorder %s24, 0
      %p87 = por %p85, %p86
      %p88 = scmp.ne.s32.totalorder %s76, %s77
      %p89 = scmp.eq.s32.totalorder %s25, 1
      %p90 = por %p88, %p89
      %p92 = scmp.ne.s32.totalorder %s77, %s91
      %p93 = scmp.eq.s32.totalorder %s25, 0
      %p94 = por %p92, %p93
      %s96 = sadd.s32 %s95, 1
      %p99 = scmp.eq.s32.totalorder %s19, 1
      %p100 = scmp.ne.s32.totalorder %s95, %s97
      %p101 = scmp.eq.s32.totalorder %s19, 0
      %p102 = por %p100, %p101
      %p103 = scmp.ne.s32.totalorder %s95, %s97
      %p104 = scmp.eq.s32.totalorder %s24, 1
      %p105 = por %p103, %p104
      %p106 = scmp.ne.s32.totalorder %s97, %s98
      %p107 = scmp.eq.s32.totalorder %s24, 0
      %p108 = por %p106, %p107
      %p109 = scmp.ne.s32.totalorder %s97, %s98
      %p110 = scmp.eq.s32.totalorder %s25, 1
      %p111 = por %p109, %p110
      %p113 = scmp.ne.s32.totalorder %s98, %s112
      %p114 = scmp.eq.s32.totalorder %s25, 0
      %p115 = por %p113, %p114
      %s117 = sadd.s32 %s116, 1
      %p120 = scmp.eq.s32.totalorder %s19, 1
      %p121 = scmp.ne.s32.totalorder %s116, %s118
      %p122 = scmp.eq.s32.totalorder %s19, 0
      %p123 = por %p121, %p122
      %p124 = scmp.ne.s32.totalorder %s116, %s118
      %p125 = scmp.eq.s32.totalorder %s24, 1
      %p126 = por %p124, %p125
      %p127 = scmp.ne.s32.totalorder %s118, %s119
      %p128 = scmp.eq.s32.totalorder %s24, 0
      %p129 = por %p127, %p128
      %p130 = scmp.ne.s32.totalorder %s118, %s119
      %p131 = scmp.eq.s32.totalorder %s25, 1
      %p132 = por %p130, %p131
      %p134 = scmp.ne.s32.totalorder %s119, %s133
      %p135 = scmp.eq.s32.totalorder %s25, 0
      %p136 = por %p134, %p135
      %s138 = sadd.s32 %s137, 1
      %p141 = scmp.eq.s32.totalorder %s19, 1
      %p142 = scmp.ne.s32.totalorder %s137, %s139
      %p143 = scmp.eq.s32.totalorder %s19, 0
      %p144 = por %p142, %p143
      %p145 = scmp.ne.s32.totalorder %s137, %s139
      %p146 = scmp.eq.s32.totalorder %s24, 1
      %p147 = por %p145, %p146
      %p148 = scmp.ne.s32.totalorder %s139, %s140
      %p149 = scmp.eq.s32.totalorder %s24, 0
      %p150 = por %p148, %p149
      %p151 = scmp.ne.s32.totalorder %s139, %s140
      %p152 = scmp.eq.s32.totalorder %s25, 1
      %p153 = por %p151, %p152
      %p155 = scmp.ne.s32.totalorder %s140, %s154
      %p156 = scmp.eq.s32.totalorder %s25, 0
      %p157 = por %p155, %p156
      %s159 = sadd.s32 %s158, 1
      %p162 = scmp.eq.s32.totalorder %s19, 1
      %p163 = scmp.ne.s32.totalorder %s158, %s160
      %p164 = scmp.eq.s32.totalorder %s19, 0
      %p165 = por %p163, %p164
      %p166 = scmp.ne.s32.totalorder %s158, %s160
      %p167 = scmp.eq.s32.totalorder %s24, 1
      %p168 = por %p166, %p167
      %p169 = scmp.ne.s32.totalorder %s160, %s161
      %p170 = scmp.eq.s32.totalorder %s24, 0
      %p171 = por %p169, %p170
      %p172 = scmp.ne.s32.totalorder %s160, %s161
      %p173 = scmp.eq.s32.totalorder %s25, 1
      %p174 = por %p172, %p173
      %p176 = scmp.ne.s32.totalorder %s161, %s175
      %p177 = scmp.eq.s32.totalorder %s25, 0
      %p178 = por %p176, %p177
      %s180 = sadd.s32 %s179, 1
      %p183 = scmp.eq.s32.totalorder %s19, 1
      %p184 = scmp.ne.s32.totalorder %s179, %s181
      %p185 = scmp.eq.s32.totalorder %s19, 0
      %p186 = por %p184, %p185
      %p187 = scmp.ne.s32.totalorder %s179, %s181
      %p188 = scmp.eq.s32.totalorder %s24, 1
      %p189 = por %p187, %p188
      %p190 = scmp.ne.s32.totalorder %s181, %s182
      %p191 = scmp.eq.s32.totalorder %s24, 0
      %p192 = por %p190, %p191
      %p193 = scmp.ne.s32.totalorder %s181, %s182
      %p194 = scmp.eq.s32.totalorder %s25, 1
      %p195 = por %p193, %p194
      %p197 = scmp.ne.s32.totalorder %s182, %s196
      %p198 = scmp.eq.s32.totalorder %s25, 0
      %p199 = por %p197, %p198
      %s201 = sadd.s32 %s200, 1
      %p204 = scmp.eq.s32.totalorder %s19, 1
      %p205 = scmp.ne.s32.totalorder %s200, %s202
      %p206 = scmp.eq.s32.totalorder %s19, 0
      %p207 = por %p205, %p206
      %p208 = scmp.ne.s32.totalorder %s200, %s202
      %p209 = scmp.eq.s32.totalorder %s24, 1
      %p210 = por %p208, %p209
      %p211 = scmp.ne.s32.totalorder %s202, %s203
      %p212 = scmp.eq.s32.totalorder %s24, 0
      %p213 = por %p211, %p212
      %p214 = scmp.ne.s32.totalorder %s202, %s203
      %p215 = scmp.eq.s32.totalorder %s25, 1
      %p216 = por %p214, %p215
      %p218 = scmp.ne.s32.totalorder %s203, %s217
      %p219 = scmp.eq.s32.totalorder %s25, 0
      %p220 = por %p218, %p219
      %s222 = sadd.s32 %s221, 1
      %p225 = scmp.eq.s32.totalorder %s19, 1
      %p226 = scmp.ne.s32.totalorder %s221, %s223
      %p227 = scmp.eq.s32.totalorder %s19, 0
      %p228 = por %p226, %p227
      %p229 = scmp.ne.s32.totalorder %s221, %s223
      %p230 = scmp.eq.s32.totalorder %s24, 1
      %p231 = por %p229, %p230
      %p232 = scmp.ne.s32.totalorder %s223, %s224
      %p233 = scmp.eq.s32.totalorder %s24, 0
      %p234 = por %p232, %p233
      %p235 = scmp.ne.s32.totalorder %s223, %s224
      %p236 = scmp.eq.s32.totalorder %s25, 1
      %p237 = por %p235, %p236
      %p239 = scmp.ne.s32.totalorder %s224, %s238
      %p240 = scmp.eq.s32.totalorder %s25, 0
      %p241 = por %p239, %p240
      %s242 = ssub.s32 %s19, %s26
      %p243 = scmp.eq.s32.totalorder %s242, 0
      %s245 = sadd.s32 %s244, 1
      %s246 = scalar_select %p243, %s244, %s245
      %p249 = pneg %p243
      %p250 = scmp.eq.s32.totalorder %s19, 1
      %p251 = por %p249, %p250
      %p252 = scmp.ne.s32.totalorder %s244, %s247
      %p253 = scmp.eq.s32.totalorder %s19, 0
      %p254 = por %p252, %p253
      %p255 = scmp.ne.s32.totalorder %s244, %s247
      %p256 = scmp.eq.s32.totalorder %s24, 1
      %p257 = por %p255, %p256
      %p258 = scmp.ne.s32.totalorder %s247, %s248
      %p259 = scmp.eq.s32.totalorder %s24, 0
      %p260 = por %p258, %p259
      %p261 = scmp.ne.s32.totalorder %s247, %s248
      %p262 = scmp.eq.s32.totalorder %s25, 1
      %p263 = por %p261, %p262
      %p265 = scmp.ne.s32.totalorder %s248, %s264
      %p266 = scmp.eq.s32.totalorder %s25, 0
      %p267 = por %p265, %p266
      %p268 = scmp.le.s32.totalorder 1, %s19
      %p269 = scmp.lt.s32.totalorder %s19, 3
      %p270 = pnand %p268, %p269
      %p271 = pneg %p270
      // Predicated region
      $region9: #{net_forward.1} parent=5 // pred_check
        _
      $region10: #{net_forward.1} parent=5 // pred_check_branch
        %273 = sbr.rel (%p270) target = $region12
      $region11: #{net_forward.1} parent=5 // pred_region
        %s274 = ssub.s32 %s19, 1
        // Predicated region
        $region13: #{net_forward.1} parent=11 // pred_check
          %p275 = pneg %p66
        $region14: #{net_forward.1} parent=11 // pred_check_branch
          %277 = sbr.rel (%p275) target = $region16
        $region15: #{net_forward.1} parent=11 // pred_region
          _
        $region16: #{net_forward.1} parent=11 // pred_fallthru
          _
        // Predicated region
        $region17: #{net_forward.1} parent=11 // pred_check
          %p278 = pneg %p87
        $region18: #{net_forward.1} parent=11 // pred_check_branch
          %280 = sbr.rel (%p278) target = $region20
        $region19: #{net_forward.1} parent=11 // pred_region
          _
        $region20: #{net_forward.1} parent=11 // pred_fallthru
          _
        // Predicated region
        $region21: #{net_forward.1} parent=11 // pred_check
          %p281 = pneg %p108
        $region22: #{net_forward.1} parent=11 // pred_check_branch
          %283 = sbr.rel (%p281) target = $region24
        $region23: #{net_forward.1} parent=11 // pred_region
          _
        $region24: #{net_forward.1} parent=11 // pred_fallthru
          _
        // Predicated region
        $region25: #{net_forward.1} parent=11 // pred_check
          %p284 = pneg %p129
        $region26: #{net_forward.1} parent=11 // pred_check_branch
          %286 = sbr.rel (%p284) target = $region28
        $region27: #{net_forward.1} parent=11 // pred_region
          _
        $region28: #{net_forward.1} parent=11 // pred_fallthru
          _
        // Predicated region
        $region29: #{net_forward.1} parent=11 // pred_check
          %p287 = pneg %p150
        $region30: #{net_forward.1} parent=11 // pred_check_branch
          %289 = sbr.rel (%p287) target = $region32
        $region31: #{net_forward.1} parent=11 // pred_region
          _
        $region32: #{net_forward.1} parent=11 // pred_fallthru
          _
        // Predicated region
        $region33: #{net_forward.1} parent=11 // pred_check
          %p290 = pneg %p171
        $region34: #{net_forward.1} parent=11 // pred_check_branch
          %292 = sbr.rel (%p290) target = $region36
        $region35: #{net_forward.1} parent=11 // pred_region
          _
        $region36: #{net_forward.1} parent=11 // pred_fallthru
          _
        // Predicated region
        $region37: #{net_forward.1} parent=11 // pred_check
          %p293 = pneg %p192
        $region38: #{net_forward.1} parent=11 // pred_check_branch
          %295 = sbr.rel (%p293) target = $region40
        $region39: #{net_forward.1} parent=11 // pred_region
          _
        $region40: #{net_forward.1} parent=11 // pred_fallthru
          _
        // Predicated region
        $region41: #{net_forward.1} parent=11 // pred_check
          %p296 = pneg %p213
        $region42: #{net_forward.1} parent=11 // pred_check_branch
          %298 = sbr.rel (%p296) target = $region44
        $region43: #{net_forward.1} parent=11 // pred_region
          _
        $region44: #{net_forward.1} parent=11 // pred_fallthru
          _
        // Predicated region
        $region45: #{net_forward.1} parent=11 // pred_check
          %p299 = pneg %p234
        $region46: #{net_forward.1} parent=11 // pred_check_branch
          %301 = sbr.rel (%p299) target = $region48
        $region47: #{net_forward.1} parent=11 // pred_region
          _
        $region48: #{net_forward.1} parent=11 // pred_fallthru
          _
      $region12: #{net_forward.1} parent=5 // pred_fallthru
        _
      %p302 = scmp.lt.s32.totalorder %s19, 2
      // Predicated region
      $region49: #{net_forward.1} parent=5 // pred_check
        %p303 = pneg %p302
      $region50: #{net_forward.1} parent=5 // pred_check_branch
        %305 = sbr.rel (%p303) target = $region52
      $region51: #{net_forward.1} parent=5 // pred_region
        // Predicated region
        $region53: #{net_forward.1} parent=51 // pred_check
          %p306 = pneg %p39
        $region54: #{net_forward.1} parent=51 // pred_check_branch
          %308 = sbr.rel (%p306) target = $region56
        $region55: #{net_forward.1} parent=51 // pred_region
          %p309 = scmp.lt.s32.totalorder %s19, 1
          %s310 = scalar_select %p309, %s19, 1
          %s311 = smul.addr %s310, 4
          %s312 = smul.addr %s311, 8
          %s313 = scalar_lea.vmem %s0, %s312
        $region56: #{net_forward.1} parent=51 // pred_fallthru
          _
      $region52: #{net_forward.1} parent=5 // pred_fallthru
        _
      %p314 = scmp.le.s32.totalorder 1, %s19
      %p315 = scmp.lt.s32.totalorder %s19, 3
      %p316 = pnand %p314, %p315
      %p317 = pneg %p316
      // Predicated region
      $region57: #{net_forward.1} parent=5 // pred_check
        _
      $region58: #{net_forward.1} parent=5 // pred_check_branch
        %319 = sbr.rel (%p316) target = $region60
      $region59: #{net_forward.1} parent=5 // pred_region
        %s320 = ssub.s32 %s19, 1
        %p321 = scmp.lt.s32.totalorder %s24, 1
        %s322 = scalar_select %p321, %s24, 1
        %s323 = smul.addr %s322, 4
        %s324 = smul.addr %s323, 8
        %s325 = scalar_lea.vmem %s0, %s324
        %p326 = pneg %p45
        %p327 = pneg %p42
        %p328 = pneg %p66
        %p329 = pneg %p63
        %p330 = pneg %p87
        %p331 = pneg %p84
        %p332 = pneg %p108
        %p333 = pneg %p105
        %p334 = pneg %p129
        %p335 = pneg %p126
        %p336 = pneg %p150
        %p337 = pneg %p147
        %p338 = pneg %p171
        %p339 = pneg %p168
        %p340 = pneg %p192
        %p341 = pneg %p189
        %p342 = pneg %p213
        %p343 = pneg %p210
        %p344 = pneg %p234
        %p345 = pneg %p231
        %p346 = pneg %p260
        %p347 = pneg %p257
        %s348 = sand.u32 %s247, 1
        %s349 = scalar_lea.sflag [#allocation3], %s348
        %s350 = sand.u32 %s247, 1
        %s351 = scalar_lea.vmem [#allocation2], %s350
        %p352 = scmp.lt.s32.totalorder %s24, 1
        %s353 = scalar_select %p352, %s24, 1
        %s354 = smul.addr %s353, 4
        %s355 = smul.addr %s354, 8
        %s356 = scalar_lea.vmem %s0, %s355
        %v358 = vld [vmem:[%s356] sm:$0xff]
        %v359 = vld [vmem:[%s356 + $0x8] sm:$0xff]
        %v360 = vld [vmem:[%s356 + $0x10] sm:$0xff]
        %v361 = vld [vmem:[%s356 + $0x18] sm:$0xf]
        %v362 = vpack.c.bf16 %v358, %v358
        %v363 = vpack.c.bf16 %v359, %v359
        %v364 = vpack.c.bf16 %v360, %v360
        %v365 = vpack.c.bf16 %v361, %v361
        %v366 = vld [vmem:[%s1] sm:$0xff]
        %v367 = vld [vmem:[%s1 + $0x8] sm:$0xff]
        %v368 = vld [vmem:[%s1 + $0x10] sm:$0xff]
        %v369 = vld [vmem:[%s1 + $0x18] sm:$0x33]
        %s370 = scalar_lea.vmem %s1, 32
        %v371 = vld [vmem:[%s370] sm:$0xff]
        %v372 = vld [vmem:[%s370 + $0x8] sm:$0xff]
        %v373 = vld [vmem:[%s370 + $0x10] sm:$0xff]
        %v374 = vld [vmem:[%s370 + $0x18] sm:$0x33]
        %v379 = vunpack.c.l.b16 %v362
        %v380 = vunpack.c.l.b16 %v363
        %v381 = vunpack.c.l.b16 %v364
        %v382 = vunpack.c.l.b16 %v365
        %v383 = vpack.c.b16 %v380, %v379
        %v384 = vpack.c.b16 %v382, %v381
        %vm385 = vsmask.f32 7424
        %v387 = vshrl.u32 %v383, 16
        %v389 = vshll.u32 %v383, 16
        %v391 = vrot.slane %v389, 1
        %v392 = vor.u32 %v387, %v391
        %v394 = vshll.u32 %v384, 16
        %v396 = vrot.slane %v394, 1
        %v397 = vsel %vm385, %v392, %v396
        %v398 = vshrl.u32 %v384, 16
        %v400 = vor.u32 %v398, %v396
        %v405 = vunpack.c.l.b16 %v371
        %v406 = vunpack.c.h.b16 %v371
        %v407 = vunpack.c.l.b16 %v372
        %v408 = vunpack.c.h.b16 %v372
        %v409 = vunpack.c.l.b16 %v373
        %v410 = vunpack.c.h.b16 %v373
        %v411 = vunpack.c.l.b16 %v374
        %v412 = vunpack.c.h.b16 %v374
        %v413 = vpack.c.b16 %v407, %v405
        %v414 = vpack.c.b16 %v408, %v406
        %v415 = vpack.c.b16 %v411, %v409
        %v416 = vpack.c.b16 %v412, %v410
        %vm419 = vcmask 228352
        %v421 = vsel %vm419, %v397, 0
        %v424 = vsel %vm419, %v400, 0
        %vm426 = vcmask 1045504
        %v428 = vsel %vm426, %v415, 0
        %v431 = vsel %vm426, %v416, 0
        %433 = vmatpush.bf16.msra.mxu0 0
        %434 = vmatpush.bf16.msra.mxu0 0
        %435 = vmatpush.bf16.msra.mxu0 0
        %436 = vmatpush.bf16.msra.mxu0 0
        %437 = vmatpush.bf16.msra.mxu0 0
        %438 = vmatpush.bf16.msra.mxu0 0
        %439 = vmatpush.bf16.msra.mxu0 %v428
        %440 = vmatpush.bf16.msra.mxu0 %v413
        %441 = vmatmul.bf16.gmra.mxu0 %v421
        %v442 = vpop.f32.mrf.mxu0
        %v443 = vadd.f32 0.0, %v442
        %v444 = vpop.f32.mrf.mxu0
        %v445 = vadd.f32 0.0, %v444
        %446 = vmatmul.bf16.gmra.mxu0 %v424
        %v447 = vpop.f32.mrf.mxu0
        %v448 = vadd.f32 0.0, %v447
        %v449 = vpop.f32.mrf.mxu0
        %v450 = vadd.f32 0.0, %v449
        %451 = vdwg.mxu0
        %452 = vmatpush.bf16.msra.mxu0 0
        %453 = vmatpush.bf16.msra.mxu0 0
        %454 = vmatpush.bf16.msra.mxu0 0
        %455 = vmatpush.bf16.msra.mxu0 0
        %456 = vmatpush.bf16.msra.mxu0 0
        %457 = vmatpush.bf16.msra.mxu0 0
        %458 = vmatpush.bf16.msra.mxu0 %v431
        %459 = vmatpush.bf16.msra.mxu0 %v414
        %460 = vmatmul.bf16.gmra.mxu0 %v421
        %v461 = vpop.f32.mrf.mxu0
        %v462 = vadd.f32 0.0, %v461
        %v463 = vpop.f32.mrf.mxu0
        %v464 = vadd.f32 0.0, %v463
        %465 = vmatmul.bf16.gmra.mxu0 %v424
        %v466 = vpop.f32.mrf.mxu0
        %v467 = vadd.f32 0.0, %v466
        %v468 = vpop.f32.mrf.mxu0
        %v469 = vadd.f32 0.0, %v468
        %470 = vdwg.mxu0
        %v475 = vunpack.c.l.b16 %v366
        %v476 = vunpack.c.h.b16 %v366
        %v477 = vunpack.c.l.b16 %v367
        %v478 = vunpack.c.h.b16 %v367
        %v479 = vunpack.c.l.b16 %v368
        %v480 = vunpack.c.h.b16 %v368
        %v481 = vunpack.c.l.b16 %v369
        %v482 = vunpack.c.h.b16 %v369
        %v483 = vpack.c.b16 %v477, %v475
        %v484 = vpack.c.b16 %v478, %v476
        %v485 = vpack.c.b16 %v481, %v479
        %v486 = vpack.c.b16 %v482, %v480
        %v489 = vsel %vm419, %v383, 0
        %v491 = vsel %vm419, %v384, 0
        %v494 = vsel %vm426, %v485, 0
        %v497 = vsel %vm426, %v486, 0
        %499 = vmatpush.bf16.msra.mxu0 0
        %500 = vmatpush.bf16.msra.mxu0 0
        %501 = vmatpush.bf16.msra.mxu0 0
        %502 = vmatpush.bf16.msra.mxu0 0
        %503 = vmatpush.bf16.msra.mxu0 0
        %504 = vmatpush.bf16.msra.mxu0 0
        %505 = vmatpush.bf16.msra.mxu0 %v494
        %506 = vmatpush.bf16.msra.mxu0 %v483
        %507 = vmatmul.bf16.gmra.mxu0 %v489
        %v508 = vpop.f32.mrf.mxu0
        %v509 = vadd.f32 %v443, %v508
        %v510 = vpop.f32.mrf.mxu0
        %v511 = vadd.f32 %v445, %v510
        %512 = vmatmul.bf16.gmra.mxu0 %v491
        %v513 = vpop.f32.mrf.mxu0
        %v514 = vadd.f32 %v448, %v513
        %v515 = vpop.f32.mrf.mxu0
        %v516 = vadd.f32 %v450, %v515
        %517 = vdwg.mxu0
        %518 = vmatpush.bf16.msra.mxu0 0
        %519 = vmatpush.bf16.msra.mxu0 0
        %520 = vmatpush.bf16.msra.mxu0 0
        %521 = vmatpush.bf16.msra.mxu0 0
        %522 = vmatpush.bf16.msra.mxu0 0
        %523 = vmatpush.bf16.msra.mxu0 0
        %524 = vmatpush.bf16.msra.mxu0 %v497
        %525 = vmatpush.bf16.msra.mxu0 %v484
        %526 = vmatmul.bf16.gmra.mxu0 %v489
        %v527 = vpop.f32.mrf.mxu0
        %v528 = vadd.f32 %v462, %v527
        %v529 = vpop.f32.mrf.mxu0
        %v530 = vadd.f32 %v464, %v529
        %531 = vmatmul.bf16.gmra.mxu0 %v491
        %v532 = vpop.f32.mrf.mxu0
        %v533 = vadd.f32 %v467, %v532
        %v534 = vpop.f32.mrf.mxu0
        %v535 = vadd.f32 %v469, %v534
        %536 = vdwg.mxu0
        %s537 = scalar_lea.vmem %s1, 64
        %v538 = vld [vmem:[%s537] sm:$0xff]
        %v539 = vld [vmem:[%s537 + $0x8] sm:$0xff]
        %v540 = vld [vmem:[%s537 + $0x10] sm:$0xff]
        %v541 = vld [vmem:[%s537 + $0x18] sm:$0x33]
        %vm542 = vcmask 1046528
        %v543 = vrot.slane %v383, 1
        %v544 = vrot.slane %v384, 1
        %v545 = vsel %vm542, %v543, %v544
        %v550 = vunpack.c.l.b16 %v538
        %v551 = vunpack.c.h.b16 %v538
        %v552 = vunpack.c.l.b16 %v539
        %v553 = vunpack.c.h.b16 %v539
        %v554 = vunpack.c.l.b16 %v540
        %v555 = vunpack.c.h.b16 %v540
        %v556 = vunpack.c.l.b16 %v541
        %v557 = vunpack.c.h.b16 %v541
        %v558 = vpack.c.b16 %v552, %v550
        %v559 = vpack.c.b16 %v553, %v551
        %v560 = vpack.c.b16 %v556, %v554
        %v561 = vpack.c.b16 %v557, %v555
        %v565 = vsel %vm419, %v545, 0
        %v568 = vsel %vm419, %v544, 0
        %v571 = vsel %vm426, %v560, 0
        %v574 = vsel %vm426, %v561, 0
        %576 = vmatpush.bf16.msra.mxu0 0
        %577 = vmatpush.bf16.msra.mxu0 0
        %578 = vmatpush.bf16.msra.mxu0 0
        %579 = vmatpush.bf16.msra.mxu0 0
        %580 = vmatpush.bf16.msra.mxu0 0
        %581 = vmatpush.bf16.msra.mxu0 0
        %582 = vmatpush.bf16.msra.mxu0 %v571
        %583 = vmatpush.bf16.msra.mxu0 %v558
        %584 = vmatmul.bf16.gmra.mxu0 %v565
        %v585 = vpop.f32.mrf.mxu0
        %v586 = vadd.f32 0.0, %v585
        %v587 = vpop.f32.mrf.mxu0
        %v588 = vadd.f32 0.0, %v587
        %589 = vmatmul.bf16.gmra.mxu0 %v568
        %v590 = vpop.f32.mrf.mxu0
        %v591 = vadd.f32 0.0, %v590
        %v592 = vpop.f32.mrf.mxu0
        %v593 = vadd.f32 0.0, %v592
        %594 = vdwg.mxu0
        %595 = vmatpush.bf16.msra.mxu0 0
        %596 = vmatpush.bf16.msra.mxu0 0
        %597 = vmatpush.bf16.msra.mxu0 0
        %598 = vmatpush.bf16.msra.mxu0 0
        %599 = vmatpush.bf16.msra.mxu0 0
        %600 = vmatpush.bf16.msra.mxu0 0
        %601 = vmatpush.bf16.msra.mxu0 %v574
        %602 = vmatpush.bf16.msra.mxu0 %v559
        %603 = vmatmul.bf16.gmra.mxu0 %v565
        %v604 = vpop.f32.mrf.mxu0
        %v605 = vadd.f32 0.0, %v604
        %v606 = vpop.f32.mrf.mxu0
        %v607 = vadd.f32 0.0, %v606
        %608 = vmatmul.bf16.gmra.mxu0 %v568
        %v609 = vpop.f32.mrf.mxu0
        %v610 = vadd.f32 0.0, %v609
        %v611 = vpop.f32.mrf.mxu0
        %v612 = vadd.f32 0.0, %v611
        %613 = vdwg.mxu0
        %v614 = vadd.f32 %v509, %v586
        %v615 = vadd.f32 %v528, %v605
        %v616 = vadd.f32 %v511, %v588
        %v617 = vadd.f32 %v530, %v607
        %v618 = vadd.f32 %v514, %v591
        %v619 = vadd.f32 %v533, %v610
        %v620 = vadd.f32 %v516, %v593
        %v621 = vadd.f32 %v535, %v612
        %v622 = vmax.f32 %v614, 0.0
        %v623 = vmax.f32 %v615, 0.0
        %v624 = vmax.f32 %v616, 0.0
        %v625 = vmax.f32 %v617, 0.0
        %v626 = vmax.f32 %v618, 0.0
        %v627 = vmax.f32 %v619, 0.0
        %v628 = vmax.f32 %v620, 0.0
        %v629 = vmax.f32 %v621, 0.0
        %v630 = vpack.c.bf16 %v623, %v622
        %v631 = vpack.c.bf16 %v625, %v624
        %v632 = vpack.c.bf16 %v627, %v626
        %v633 = vpack.c.bf16 %v629, %v628
        %v634 = vld [vmem:[%s2] sm:$0xff]
        %v635 = vld [vmem:[%s2 + $0x8] sm:$0xff]
        %v636 = vld [vmem:[%s2 + $0x10] sm:$0xff]
        %v637 = vld [vmem:[%s2 + $0x18] sm:$0xff]
        %v638 = vld [vmem:[%s2 + $0x20] sm:$0xff]
        %v639 = vld [vmem:[%s2 + $0x28] sm:$0xff]
        %v640 = vld [vmem:[%s2 + $0x30] sm:$0xff]
        %v641 = vld [vmem:[%s2 + $0x38] sm:$0xff]
        %v642 = vld [vmem:[%s2 + $0x40] sm:$0xff]
        %v643 = vld [vmem:[%s2 + $0x48] sm:$0xff]
        %v644 = vld [vmem:[%s2 + $0x50] sm:$0xff]
        %v645 = vld [vmem:[%s2 + $0x58] sm:$0xff]
        %v646 = vld [vmem:[%s2 + $0x60] sm:$0xff]
        %v647 = vld [vmem:[%s2 + $0x68] sm:$0xff]
        %v648 = vld [vmem:[%s2 + $0x70] sm:$0xff]
        %v649 = vld [vmem:[%s2 + $0x78] sm:$0xff]
        %v650 = vld [vmem:[%s2 + $0x80] sm:$0xff]
        %v651 = vld [vmem:[%s2 + $0x88] sm:$0xff]
        %v652 = vld [vmem:[%s2 + $0x90] sm:$0xff]
        %v653 = vld [vmem:[%s2 + $0x98] sm:$0xff]
        %v654 = vld [vmem:[%s2 + $0xa0] sm:$0xff]
        %v655 = vld [vmem:[%s2 + $0xa8] sm:$0xff]
        %v656 = vld [vmem:[%s2 + $0xb0] sm:$0xff]
        %v657 = vld [vmem:[%s2 + $0xb8] sm:$0xff]
        %v658 = vld [vmem:[%s2 + $0xc0] sm:$0xff]
        %v659 = vld [vmem:[%s2 + $0xc8] sm:$0xff]
        %s660 = scalar_lea.vmem %s2, 208
        %v661 = vld [vmem:[%s660] sm:$0xff]
        %v662 = vld [vmem:[%s660 + $0x8] sm:$0xff]
        %v663 = vld [vmem:[%s660 + $0x10] sm:$0xff]
        %v664 = vld [vmem:[%s660 + $0x18] sm:$0xff]
        %v665 = vld [vmem:[%s660 + $0x20] sm:$0xff]
        %v666 = vld [vmem:[%s660 + $0x28] sm:$0xff]
        %v667 = vld [vmem:[%s660 + $0x30] sm:$0xff]
        %v668 = vld [vmem:[%s660 + $0x38] sm:$0xff]
        %v669 = vld [vmem:[%s660 + $0x40] sm:$0xff]
        %v670 = vld [vmem:[%s660 + $0x48] sm:$0xff]
        %v671 = vld [vmem:[%s660 + $0x50] sm:$0xff]
        %v672 = vld [vmem:[%s660 + $0x58] sm:$0xff]
        %v673 = vld [vmem:[%s660 + $0x60] sm:$0xff]
        %v674 = vld [vmem:[%s660 + $0x68] sm:$0xff]
        %v675 = vld [vmem:[%s660 + $0x70] sm:$0xff]
        %v676 = vld [vmem:[%s660 + $0x78] sm:$0xff]
        %v677 = vld [vmem:[%s660 + $0x80] sm:$0xff]
        %v678 = vld [vmem:[%s660 + $0x88] sm:$0xff]
        %v679 = vld [vmem:[%s660 + $0x90] sm:$0xff]
        %v680 = vld [vmem:[%s660 + $0x98] sm:$0xff]
        %v681 = vld [vmem:[%s660 + $0xa0] sm:$0xff]
        %v682 = vld [vmem:[%s660 + $0xa8] sm:$0xff]
        %v683 = vld [vmem:[%s660 + $0xb0] sm:$0xff]
        %v684 = vld [vmem:[%s660 + $0xb8] sm:$0xff]
        %v685 = vld [vmem:[%s660 + $0xc0] sm:$0xff]
        %v686 = vld [vmem:[%s660 + $0xc8] sm:$0xff]
        %v691 = vunpack.c.l.b16 %v630
        %v692 = vunpack.c.h.b16 %v630
        %v693 = vunpack.c.l.b16 %v631
        %v694 = vunpack.c.h.b16 %v631
        %v695 = vunpack.c.l.b16 %v632
        %v696 = vunpack.c.h.b16 %v632
        %v697 = vunpack.c.l.b16 %v633
        %v698 = vunpack.c.h.b16 %v633
        %v699 = vpack.c.b16 %v693, %v691
        %v700 = vpack.c.b16 %v694, %v692
        %v701 = vpack.c.b16 %v697, %v695
        %v702 = vpack.c.b16 %v698, %v696
        %v704 = vshrl.u32 %v699, 16
        %v706 = vshll.u32 %v699, 16
        %v708 = vrot.slane %v706, 1
        %v709 = vor.u32 %v704, %v708
        %v711 = vshll.u32 %v701, 16
        %v713 = vrot.slane %v711, 1
        %v714 = vsel %vm385, %v709, %v713
        %v716 = vshrl.u32 %v700, 16
        %v718 = vshll.u32 %v700, 16
        %v720 = vrot.slane %v718, 1
        %v721 = vor.u32 %v716, %v720
        %v723 = vshll.u32 %v702, 16
        %v725 = vrot.slane %v723, 1
        %v726 = vsel %vm385, %v721, %v725
        %v727 = vshrl.u32 %v701, 16
        %v729 = vor.u32 %v727, %v713
        %v730 = vshrl.u32 %v702, 16
        %v732 = vor.u32 %v730, %v725
        %v761 = vunpack.c.l.b16 %v661
        %v762 = vunpack.c.h.b16 %v661
        %v763 = vunpack.c.l.b16 %v662
        %v764 = vunpack.c.h.b16 %v662
        %v765 = vunpack.c.l.b16 %v663
        %v766 = vunpack.c.h.b16 %v663
        %v767 = vunpack.c.l.b16 %v664
        %v768 = vunpack.c.h.b16 %v664
        %v769 = vunpack.c.l.b16 %v665
        %v770 = vunpack.c.h.b16 %v665
        %v771 = vunpack.c.l.b16 %v666
        %v772 = vunpack.c.h.b16 %v666
        %v773 = vunpack.c.l.b16 %v667
        %v774 = vunpack.c.h.b16 %v667
        %v775 = vunpack.c.l.b16 %v668
        %v776 = vunpack.c.h.b16 %v668
        %v777 = vunpack.c.l.b16 %v669
        %v778 = vunpack.c.h.b16 %v669
        %v779 = vunpack.c.l.b16 %v670
        %v780 = vunpack.c.h.b16 %v670
        %v781 = vunpack.c.l.b16 %v671
        %v782 = vunpack.c.h.b16 %v671
        %v783 = vunpack.c.l.b16 %v672
        %v784 = vunpack.c.h.b16 %v672
        %v785 = vunpack.c.l.b16 %v673
        %v786 = vunpack.c.h.b16 %v673
        %v787 = vunpack.c.l.b16 %v674
        %v788 = vunpack.c.h.b16 %v674
        %v789 = vunpack.c.l.b16 %v675
        %v790 = vunpack.c.h.b16 %v675
        %v791 = vunpack.c.l.b16 %v676
        %v792 = vunpack.c.h.b16 %v676
        %v793 = vunpack.c.l.b16 %v677
        %v794 = vunpack.c.h.b16 %v677
        %v795 = vunpack.c.l.b16 %v678
        %v796 = vunpack.c.h.b16 %v678
        %v797 = vunpack.c.l.b16 %v679
        %v798 = vunpack.c.h.b16 %v679
        %v799 = vunpack.c.l.b16 %v680
        %v800 = vunpack.c.h.b16 %v680
        %v801 = vunpack.c.l.b16 %v681
        %v802 = vunpack.c.h.b16 %v681
        %v803 = vunpack.c.l.b16 %v682
        %v804 = vunpack.c.h.b16 %v682
        %v805 = vunpack.c.l.b16 %v683
        %v806 = vunpack.c.h.b16 %v683
        %v807 = vunpack.c.l.b16 %v684
        %v808 = vunpack.c.h.b16 %v684
        %v809 = vunpack.c.l.b16 %v685
        %v810 = vunpack.c.h.b16 %v685
        %v811 = vunpack.c.l.b16 %v686
        %v812 = vunpack.c.h.b16 %v686
        %v813 = vpack.c.b16 %v763, %v761
        %v814 = vpack.c.b16 %v764, %v762
        %v815 = vpack.c.b16 %v767, %v765
        %v816 = vpack.c.b16 %v768, %v766
        %v817 = vpack.c.b16 %v771, %v769
        %v818 = vpack.c.b16 %v772, %v770
        %v819 = vpack.c.b16 %v775, %v773
        %v820 = vpack.c.b16 %v776, %v774
        %v821 = vpack.c.b16 %v779, %v777
        %v822 = vpack.c.b16 %v780, %v778
        %v823 = vpack.c.b16 %v783, %v781
        %v824 = vpack.c.b16 %v784, %v782
        %v825 = vpack.c.b16 %v787, %v785
        %v826 = vpack.c.b16 %v788, %v786
        %v827 = vpack.c.b16 %v791, %v789
        %v828 = vpack.c.b16 %v792, %v790
        %v829 = vpack.c.b16 %v795, %v793
        %v830 = vpack.c.b16 %v796, %v794
        %v831 = vpack.c.b16 %v799, %v797
        %v832 = vpack.c.b16 %v800, %v798
        %v833 = vpack.c.b16 %v803, %v801
        %v834 = vpack.c.b16 %v804, %v802
        %v835 = vpack.c.b16 %v807, %v805
        %v836 = vpack.c.b16 %v808, %v806
        %v837 = vpack.c.b16 %v811, %v809
        %v838 = vpack.c.b16 %v812, %v810
        %vm865 = vcmask 654336
        %v867 = vsel %vm865, %v726, 0
        %v870 = vsel %vm865, %v732, 0
        %872 = vmatpush.bf16.msra.mxu0 %v827
        %873 = vmatpush.bf16.msra.mxu0 %v825
        %874 = vmatpush.bf16.msra.mxu0 %v823
        %875 = vmatpush.bf16.msra.mxu0 %v821
        %876 = vmatpush.bf16.msra.mxu0 %v819
        %877 = vmatpush.bf16.msra.mxu0 %v817
        %878 = vmatpush.bf16.msra.mxu0 %v815
        %879 = vmatpush.bf16.msra.mxu0 %v813
        %880 = vmatmul.bf16.gmra.mxu0 %v714
        %v881 = vpop.f32.mrf.mxu0
        %v882 = vadd.f32 0.0, %v881
        %v883 = vpop.f32.mrf.mxu0
        %v884 = vadd.f32 0.0, %v883
        %885 = vmatmul.bf16.gmra.mxu0 %v729
        %v886 = vpop.f32.mrf.mxu0
        %v887 = vadd.f32 0.0, %v886
        %v888 = vpop.f32.mrf.mxu0
        %889 = vdwg.mxu0
        %890 = vmatpush.bf16.msra.mxu0 0
        %891 = vmatpush.bf16.msra.mxu0 0
        %892 = vmatpush.bf16.msra.mxu0 0
        %893 = vmatpush.bf16.msra.mxu0 %v837
        %894 = vmatpush.bf16.msra.mxu0 %v835
        %895 = vmatpush.bf16.msra.mxu0 %v833
        %896 = vmatpush.bf16.msra.mxu0 %v831
        %897 = vmatpush.bf16.msra.mxu0 %v829
        %898 = vmatmul.bf16.gmra.mxu0 %v867
        %v899 = vpop.f32.mrf.mxu0
        %v900 = vadd.f32 %v882, %v899
        %v901 = vpop.f32.mrf.mxu0
        %v902 = vadd.f32 %v884, %v901
        %903 = vmatmul.bf16.gmra.mxu0 %v870
        %v904 = vpop.f32.mrf.mxu0
        %v905 = vadd.f32 %v887, %v904
        %v906 = vpop.f32.mrf.mxu0
        %907 = vdwg.mxu0
        %908 = vmatpush.bf16.msra.mxu0 %v828
        %909 = vmatpush.bf16.msra.mxu0 %v826
        %910 = vmatpush.bf16.msra.mxu0 %v824
        %911 = vmatpush.bf16.msra.mxu0 %v822
        %912 = vmatpush.bf16.msra.mxu0 %v820
        %913 = vmatpush.bf16.msra.mxu0 %v818
        %914 = vmatpush.bf16.msra.mxu0 %v816
        %915 = vmatpush.bf16.msra.mxu0 %v814
        %916 = vmatmul.bf16.gmra.mxu0 %v714
        %v917 = vpop.f32.mrf.mxu0
        %v918 = vadd.f32 0.0, %v917
        %v919 = vpop.f32.mrf.mxu0
        %v920 = vadd.f32 0.0, %v919
        %921 = vmatmul.bf16.gmra.mxu0 %v729
        %v922 = vpop.f32.mrf.mxu0
        %v923 = vadd.f32 0.0, %v922
        %v924 = vpop.f32.mrf.mxu0
        %925 = vdwg.mxu0
        %926 = vmatpush.bf16.msra.mxu0 0
        %927 = vmatpush.bf16.msra.mxu0 0
        %928 = vmatpush.bf16.msra.mxu0 0
        %929 = vmatpush.bf16.msra.mxu0 %v838
        %930 = vmatpush.bf16.msra.mxu0 %v836
        %931 = vmatpush.bf16.msra.mxu0 %v834
        %932 = vmatpush.bf16.msra.mxu0 %v832
        %933 = vmatpush.bf16.msra.mxu0 %v830
        %934 = vmatmul.bf16.gmra.mxu0 %v867
        %v935 = vpop.f32.mrf.mxu0
        %v936 = vadd.f32 %v918, %v935
        %v937 = vpop.f32.mrf.mxu0
        %v938 = vadd.f32 %v920, %v937
        %939 = vmatmul.bf16.gmra.mxu0 %v870
        %v940 = vpop.f32.mrf.mxu0
        %v941 = vadd.f32 %v923, %v940
        %v942 = vpop.f32.mrf.mxu0
        %943 = vdwg.mxu0
        %v944 = vpack.c.b16 %v695, %v695
        %v945 = vpack.c.b16 %v696, %v696
        %v974 = vunpack.c.l.b16 %v634
        %v975 = vunpack.c.h.b16 %v634
        %v976 = vunpack.c.l.b16 %v635
        %v977 = vunpack.c.h.b16 %v635
        %v978 = vunpack.c.l.b16 %v636
        %v979 = vunpack.c.h.b16 %v636
        %v980 = vunpack.c.l.b16 %v637
        %v981 = vunpack.c.h.b16 %v637
        %v982 = vunpack.c.l.b16 %v638
        %v983 = vunpack.c.h.b16 %v638
        %v984 = vunpack.c.l.b16 %v639
        %v985 = vunpack.c.h.b16 %v639
        %v986 = vunpack.c.l.b16 %v640
        %v987 = vunpack.c.h.b16 %v640
        %v988 = vunpack.c.l.b16 %v641
        %v989 = vunpack.c.h.b16 %v641
        %v990 = vunpack.c.l.b16 %v642
        %v991 = vunpack.c.h.b16 %v642
        %v992 = vunpack.c.l.b16 %v643
        %v993 = vunpack.c.h.b16 %v643
        %v994 = vunpack.c.l.b16 %v644
        %v995 = vunpack.c.h.b16 %v644
        %v996 = vunpack.c.l.b16 %v645
        %v997 = vunpack.c.h.b16 %v645
        %v998 = vunpack.c.l.b16 %v646
        %v999 = vunpack.c.h.b16 %v646
        %v1000 = vunpack.c.l.b16 %v647
        %v1001 = vunpack.c.h.b16 %v647
        %v1002 = vunpack.c.l.b16 %v648
        %v1003 = vunpack.c.h.b16 %v648
        %v1004 = vunpack.c.l.b16 %v649
        %v1005 = vunpack.c.h.b16 %v649
        %v1006 = vunpack.c.l.b16 %v650
        %v1007 = vunpack.c.h.b16 %v650
        %v1008 = vunpack.c.l.b16 %v651
        %v1009 = vunpack.c.h.b16 %v651
        %v1010 = vunpack.c.l.b16 %v652
        %v1011 = vunpack.c.h.b16 %v652
        %v1012 = vunpack.c.l.b16 %v653
        %v1013 = vunpack.c.h.b16 %v653
        %v1014 = vunpack.c.l.b16 %v654
        %v1015 = vunpack.c.h.b16 %v654
        %v1016 = vunpack.c.l.b16 %v655
        %v1017 = vunpack.c.h.b16 %v655
        %v1018 = vunpack.c.l.b16 %v656
        %v1019 = vunpack.c.h.b16 %v656
        %v1020 = vunpack.c.l.b16 %v657
        %v1021 = vunpack.c.h.b16 %v657
        %v1022 = vunpack.c.l.b16 %v658
        %v1023 = vunpack.c.h.b16 %v658
        %v1024 = vunpack.c.l.b16 %v659
        %v1025 = vunpack.c.h.b16 %v659
        %v1026 = vpack.c.b16 %v976, %v974
        %v1027 = vpack.c.b16 %v977, %v975
        %v1028 = vpack.c.b16 %v980, %v978
        %v1029 = vpack.c.b16 %v981, %v979
        %v1030 = vpack.c.b16 %v984, %v982
        %v1031 = vpack.c.b16 %v985, %v983
        %v1032 = vpack.c.b16 %v988, %v986
        %v1033 = vpack.c.b16 %v989, %v987
        %v1034 = vpack.c.b16 %v992, %v990
        %v1035 = vpack.c.b16 %v993, %v991
        %v1036 = vpack.c.b16 %v996, %v994
        %v1037 = vpack.c.b16 %v997, %v995
        %v1038 = vpack.c.b16 %v1000, %v998
        %v1039 = vpack.c.b16 %v1001, %v999
        %v1040 = vpack.c.b16 %v1004, %v1002
        %v1041 = vpack.c.b16 %v1005, %v1003
        %v1042 = vpack.c.b16 %v1008, %v1006
        %v1043 = vpack.c.b16 %v1009, %v1007
        %v1044 = vpack.c.b16 %v1012, %v1010
        %v1045 = vpack.c.b16 %v1013, %v1011
        %v1046 = vpack.c.b16 %v1016, %v1014
        %v1047 = vpack.c.b16 %v1017, %v1015
        %v1048 = vpack.c.b16 %v1020, %v1018
        %v1049 = vpack.c.b16 %v1021, %v1019
        %v1050 = vpack.c.b16 %v1024, %v1022
        %v1051 = vpack.c.b16 %v1025, %v1023
        %v1078 = vsel %vm865, %v700, 0
        %v1081 = vsel %vm865, %v945, 0
        %1083 = vmatpush.bf16.msra.mxu0 %v1040
        %1084 = vmatpush.bf16.msra.mxu0 %v1038
        %1085 = vmatpush.bf16.msra.mxu0 %v1036
        %1086 = vmatpush.bf16.msra.mxu0 %v1034
        %1087 = vmatpush.bf16.msra.mxu0 %v1032
        %1088 = vmatpush.bf16.msra.mxu0 %v1030
        %1089 = vmatpush.bf16.msra.mxu0 %v1028
        %1090 = vmatpush.bf16.msra.mxu0 %v1026
        %1091 = vmatmul.bf16.gmra.mxu0 %v699
        %v1092 = vpop.f32.mrf.mxu0
        %v1093 = vadd.f32 %v900, %v1092
        %v1094 = vpop.f32.mrf.mxu0
        %v1095 = vadd.f32 %v902, %v1094
        %1096 = vmatmul.bf16.gmra.mxu0 %v944
        %v1097 = vpop.f32.mrf.mxu0
        %v1098 = vadd.f32 %v905, %v1097
        %v1099 = vpop.f32.mrf.mxu0
        %1100 = vdwg.mxu0
        %1101 = vmatpush.bf16.msra.mxu0 0
        %1102 = vmatpush.bf16.msra.mxu0 0
        %1103 = vmatpush.bf16.msra.mxu0 0
        %1104 = vmatpush.bf16.msra.mxu0 %v1050
        %1105 = vmatpush.bf16.msra.mxu0 %v1048
        %1106 = vmatpush.bf16.msra.mxu0 %v1046
        %1107 = vmatpush.bf16.msra.mxu0 %v1044
        %1108 = vmatpush.bf16.msra.mxu0 %v1042
        %1109 = vmatmul.bf16.gmra.mxu0 %v1078
        %v1110 = vpop.f32.mrf.mxu0
        %v1111 = vadd.f32 %v1093, %v1110
        %v1112 = vpop.f32.mrf.mxu0
        %v1113 = vadd.f32 %v1095, %v1112
        %1114 = vmatmul.bf16.gmra.mxu0 %v1081
        %v1115 = vpop.f32.mrf.mxu0
        %v1116 = vadd.f32 %v1098, %v1115
        %v1117 = vpop.f32.mrf.mxu0
        %1118 = vdwg.mxu0
        %1119 = vmatpush.bf16.msra.mxu0 %v1041
        %1120 = vmatpush.bf16.msra.mxu0 %v1039
        %1121 = vmatpush.bf16.msra.mxu0 %v1037
        %1122 = vmatpush.bf16.msra.mxu0 %v1035
        %1123 = vmatpush.bf16.msra.mxu0 %v1033
        %1124 = vmatpush.bf16.msra.mxu0 %v1031
        %1125 = vmatpush.bf16.msra.mxu0 %v1029
        %1126 = vmatpush.bf16.msra.mxu0 %v1027
        %1127 = vmatmul.bf16.gmra.mxu0 %v699
        %v1128 = vpop.f32.mrf.mxu0
        %v1129 = vadd.f32 %v936, %v1128
        %v1130 = vpop.f32.mrf.mxu0
        %v1131 = vadd.f32 %v938, %v1130
        %1132 = vmatmul.bf16.gmra.mxu0 %v944
        %v1133 = vpop.f32.mrf.mxu0
        %v1134 = vadd.f32 %v941, %v1133
        %v1135 = vpop.f32.mrf.mxu0
        %1136 = vdwg.mxu0
        %1137 = vmatpush.bf16.msra.mxu0 0
        %1138 = vmatpush.bf16.msra.mxu0 0
        %1139 = vmatpush.bf16.msra.mxu0 0
        %1140 = vmatpush.bf16.msra.mxu0 %v1051
        %1141 = vmatpush.bf16.msra.mxu0 %v1049
        %1142 = vmatpush.bf16.msra.mxu0 %v1047
        %1143 = vmatpush.bf16.msra.mxu0 %v1045
        %1144 = vmatpush.bf16.msra.mxu0 %v1043
        %1145 = vmatmul.bf16.gmra.mxu0 %v1078
        %v1146 = vpop.f32.mrf.mxu0
        %v1147 = vadd.f32 %v1129, %v1146
        %v1148 = vpop.f32.mrf.mxu0
        %v1149 = vadd.f32 %v1131, %v1148
        %1150 = vmatmul.bf16.gmra.mxu0 %v1081
        %v1151 = vpop.f32.mrf.mxu0
        %v1152 = vadd.f32 %v1134, %v1151
        %v1153 = vpop.f32.mrf.mxu0
        %1154 = vdwg.mxu0
        %s1155 = scalar_lea.vmem %s2, 416
        %v1156 = vld [vmem:[%s1155] sm:$0xff]
        %v1157 = vld [vmem:[%s1155 + $0x8] sm:$0xff]
        %v1158 = vld [vmem:[%s1155 + $0x10] sm:$0xff]
        %v1159 = vld [vmem:[%s1155 + $0x18] sm:$0xff]
        %v1160 = vld [vmem:[%s1155 + $0x20] sm:$0xff]
        %v1161 = vld [vmem:[%s1155 + $0x28] sm:$0xff]
        %v1162 = vld [vmem:[%s1155 + $0x30] sm:$0xff]
        %v1163 = vld [vmem:[%s1155 + $0x38] sm:$0xff]
        %v1164 = vld [vmem:[%s1155 + $0x40] sm:$0xff]
        %v1165 = vld [vmem:[%s1155 + $0x48] sm:$0xff]
        %v1166 = vld [vmem:[%s1155 + $0x50] sm:$0xff]
        %v1167 = vld [vmem:[%s1155 + $0x58] sm:$0xff]
        %v1168 = vld [vmem:[%s1155 + $0x60] sm:$0xff]
        %v1169 = vld [vmem:[%s1155 + $0x68] sm:$0xff]
        %v1170 = vld [vmem:[%s1155 + $0x70] sm:$0xff]
        %v1171 = vld [vmem:[%s1155 + $0x78] sm:$0xff]
        %v1172 = vld [vmem:[%s1155 + $0x80] sm:$0xff]
        %v1173 = vld [vmem:[%s1155 + $0x88] sm:$0xff]
        %v1174 = vld [vmem:[%s1155 + $0x90] sm:$0xff]
        %v1175 = vld [vmem:[%s1155 + $0x98] sm:$0xff]
        %v1176 = vld [vmem:[%s1155 + $0xa0] sm:$0xff]
        %v1177 = vld [vmem:[%s1155 + $0xa8] sm:$0xff]
        %v1178 = vld [vmem:[%s1155 + $0xb0] sm:$0xff]
        %v1179 = vld [vmem:[%s1155 + $0xb8] sm:$0xff]
        %v1180 = vld [vmem:[%s1155 + $0xc0] sm:$0xff]
        %v1181 = vld [vmem:[%s1155 + $0xc8] sm:$0xff]
        %v1182 = vrot.slane %v699, 1
        %v1183 = vrot.slane %v701, 1
        %v1184 = vsel %vm542, %v1182, %v1183
        %v1185 = vrot.slane %v700, 1
        %v1186 = vrot.slane %v702, 1
        %v1187 = vsel %vm542, %v1185, %v1186
        %v1216 = vunpack.c.l.b16 %v1156
        %v1217 = vunpack.c.h.b16 %v1156
        %v1218 = vunpack.c.l.b16 %v1157
        %v1219 = vunpack.c.h.b16 %v1157
        %v1220 = vunpack.c.l.b16 %v1158
        %v1221 = vunpack.c.h.b16 %v1158
        %v1222 = vunpack.c.l.b16 %v1159
        %v1223 = vunpack.c.h.b16 %v1159
        %v1224 = vunpack.c.l.b16 %v1160
        %v1225 = vunpack.c.h.b16 %v1160
        %v1226 = vunpack.c.l.b16 %v1161
        %v1227 = vunpack.c.h.b16 %v1161
        %v1228 = vunpack.c.l.b16 %v1162
        %v1229 = vunpack.c.h.b16 %v1162
        %v1230 = vunpack.c.l.b16 %v1163
        %v1231 = vunpack.c.h.b16 %v1163
        %v1232 = vunpack.c.l.b16 %v1164
        %v1233 = vunpack.c.h.b16 %v1164
        %v1234 = vunpack.c.l.b16 %v1165
        %v1235 = vunpack.c.h.b16 %v1165
        %v1236 = vunpack.c.l.b16 %v1166
        %v1237 = vunpack.c.h.b16 %v1166
        %v1238 = vunpack.c.l.b16 %v1167
        %v1239 = vunpack.c.h.b16 %v1167
        %v1240 = vunpack.c.l.b16 %v1168
        %v1241 = vunpack.c.h.b16 %v1168
        %v1242 = vunpack.c.l.b16 %v1169
        %v1243 = vunpack.c.h.b16 %v1169
        %v1244 = vunpack.c.l.b16 %v1170
        %v1245 = vunpack.c.h.b16 %v1170
        %v1246 = vunpack.c.l.b16 %v1171
        %v1247 = vunpack.c.h.b16 %v1171
        %v1248 = vunpack.c.l.b16 %v1172
        %v1249 = vunpack.c.h.b16 %v1172
        %v1250 = vunpack.c.l.b16 %v1173
        %v1251 = vunpack.c.h.b16 %v1173
        %v1252 = vunpack.c.l.b16 %v1174
        %v1253 = vunpack.c.h.b16 %v1174
        %v1254 = vunpack.c.l.b16 %v1175
        %v1255 = vunpack.c.h.b16 %v1175
        %v1256 = vunpack.c.l.b16 %v1176
        %v1257 = vunpack.c.h.b16 %v1176
        %v1258 = vunpack.c.l.b16 %v1177
        %v1259 = vunpack.c.h.b16 %v1177
        %v1260 = vunpack.c.l.b16 %v1178
        %v1261 = vunpack.c.h.b16 %v1178
        %v1262 = vunpack.c.l.b16 %v1179
        %v1263 = vunpack.c.h.b16 %v1179
        %v1264 = vunpack.c.l.b16 %v1180
        %v1265 = vunpack.c.h.b16 %v1180
        %v1266 = vunpack.c.l.b16 %v1181
        %v1267 = vunpack.c.h.b16 %v1181
        %v1268 = vpack.c.b16 %v1218, %v1216
        %v1269 = vpack.c.b16 %v1219, %v1217
        %v1270 = vpack.c.b16 %v1222, %v1220
        %v1271 = vpack.c.b16 %v1223, %v1221
        %v1272 = vpack.c.b16 %v1226, %v1224
        %v1273 = vpack.c.b16 %v1227, %v1225
        %v1274 = vpack.c.b16 %v1230, %v1228
        %v1275 = vpack.c.b16 %v1231, %v1229
        %v1276 = vpack.c.b16 %v1234, %v1232
        %v1277 = vpack.c.b16 %v1235, %v1233
        %v1278 = vpack.c.b16 %v1238, %v1236
        %v1279 = vpack.c.b16 %v1239, %v1237
        %v1280 = vpack.c.b16 %v1242, %v1240
        %v1281 = vpack.c.b16 %v1243, %v1241
        %v1282 = vpack.c.b16 %v1246, %v1244
        %v1283 = vpack.c.b16 %v1247, %v1245
        %v1284 = vpack.c.b16 %v1250, %v1248
        %v1285 = vpack.c.b16 %v1251, %v1249
        %v1286 = vpack.c.b16 %v1254, %v1252
        %v1287 = vpack.c.b16 %v1255, %v1253
        %v1288 = vpack.c.b16 %v1258, %v1256
        %v1289 = vpack.c.b16 %v1259, %v1257
        %v1290 = vpack.c.b16 %v1262, %v1260
        %v1291 = vpack.c.b16 %v1263, %v1261
        %v1292 = vpack.c.b16 %v1266, %v1264
        %v1293 = vpack.c.b16 %v1267, %v1265
        %v1321 = vsel %vm865, %v1187, 0
        %v1324 = vsel %vm865, %v1186, 0
        %1326 = vmatpush.bf16.msra.mxu0 %v1282
        %1327 = vmatpush.bf16.msra.mxu0 %v1280
        %1328 = vmatpush.bf16.msra.mxu0 %v1278
        %1329 = vmatpush.bf16.msra.mxu0 %v1276
        %1330 = vmatpush.bf16.msra.mxu0 %v1274
        %1331 = vmatpush.bf16.msra.mxu0 %v1272
        %1332 = vmatpush.bf16.msra.mxu0 %v1270
        %1333 = vmatpush.bf16.msra.mxu0 %v1268
        %1334 = vmatmul.bf16.gmra.mxu0 %v1184
        %v1335 = vpop.f32.mrf.mxu0
        %v1336 = vadd.f32 0.0, %v1335
        %v1337 = vpop.f32.mrf.mxu0
        %v1338 = vadd.f32 0.0, %v1337
        %1339 = vmatmul.bf16.gmra.mxu0 %v1183
        %v1340 = vpop.f32.mrf.mxu0
        %v1341 = vadd.f32 0.0, %v1340
        %v1342 = vpop.f32.mrf.mxu0
        %1343 = vdwg.mxu0
        %1344 = vmatpush.bf16.msra.mxu0 0
        %1345 = vmatpush.bf16.msra.mxu0 0
        %1346 = vmatpush.bf16.msra.mxu0 0
        %1347 = vmatpush.bf16.msra.mxu0 %v1292
        %1348 = vmatpush.bf16.msra.mxu0 %v1290
        %1349 = vmatpush.bf16.msra.mxu0 %v1288
        %1350 = vmatpush.bf16.msra.mxu0 %v1286
        %1351 = vmatpush.bf16.msra.mxu0 %v1284
        %1352 = vmatmul.bf16.gmra.mxu0 %v1321
        %v1353 = vpop.f32.mrf.mxu0
        %v1354 = vadd.f32 %v1336, %v1353
        %v1355 = vpop.f32.mrf.mxu0
        %v1356 = vadd.f32 %v1338, %v1355
        %1357 = vmatmul.bf16.gmra.mxu0 %v1324
        %v1358 = vpop.f32.mrf.mxu0
        %v1359 = vadd.f32 %v1341, %v1358
        %v1360 = vpop.f32.mrf.mxu0
        %1361 = vdwg.mxu0
        %1362 = vmatpush.bf16.msra.mxu0 %v1283
        %1363 = vmatpush.bf16.msra.mxu0 %v1281
        %1364 = vmatpush.bf16.msra.mxu0 %v1279
        %1365 = vmatpush.bf16.msra.mxu0 %v1277
        %1366 = vmatpush.bf16.msra.mxu0 %v1275
        %1367 = vmatpush.bf16.msra.mxu0 %v1273
        %1368 = vmatpush.bf16.msra.mxu0 %v1271
        %1369 = vmatpush.bf16.msra.mxu0 %v1269
        %1370 = vmatmul.bf16.gmra.mxu0 %v1184
        %v1371 = vpop.f32.mrf.mxu0
        %v1372 = vadd.f32 0.0, %v1371
        %v1373 = vpop.f32.mrf.mxu0
        %v1374 = vadd.f32 0.0, %v1373
        %1375 = vmatmul.bf16.gmra.mxu0 %v1183
        %v1376 = vpop.f32.mrf.mxu0
        %v1377 = vadd.f32 0.0, %v1376
        %v1378 = vpop.f32.mrf.mxu0
        %1379 = vdwg.mxu0
        %1380 = vmatpush.bf16.msra.mxu0 0
        %1381 = vmatpush.bf16.msra.mxu0 0
        %1382 = vmatpush.bf16.msra.mxu0 0
        %1383 = vmatpush.bf16.msra.mxu0 %v1293
        %1384 = vmatpush.bf16.msra.mxu0 %v1291
        %1385 = vmatpush.bf16.msra.mxu0 %v1289
        %1386 = vmatpush.bf16.msra.mxu0 %v1287
        %1387 = vmatpush.bf16.msra.mxu0 %v1285
        %1388 = vmatmul.bf16.gmra.mxu0 %v1321
        %v1389 = vpop.f32.mrf.mxu0
        %v1390 = vadd.f32 %v1372, %v1389
        %v1391 = vpop.f32.mrf.mxu0
        %v1392 = vadd.f32 %v1374, %v1391
        %1393 = vmatmul.bf16.gmra.mxu0 %v1324
        %v1394 = vpop.f32.mrf.mxu0
        %v1395 = vadd.f32 %v1377, %v1394
        %v1396 = vpop.f32.mrf.mxu0
        %1397 = vdwg.mxu0
        %v1398 = vadd.f32 %v1111, %v1354
        %v1399 = vadd.f32 %v1147, %v1390
        %v1400 = vadd.f32 %v1113, %v1356
        %v1401 = vadd.f32 %v1149, %v1392
        %v1402 = vadd.f32 %v1116, %v1359
        %v1403 = vadd.f32 %v1152, %v1395
        %v1404 = vmax.f32 %v1398, 0.0
        %v1405 = vmax.f32 %v1399, 0.0
        %v1406 = vmax.f32 %v1400, 0.0
        %v1407 = vmax.f32 %v1401, 0.0
        %v1408 = vmax.f32 %v1402, 0.0
        %v1409 = vmax.f32 %v1403, 0.0
        %v1410 = vld [vmem:[%s3] sm:$0xff]
        %v1411 = vld [vmem:[%s3 + $0x8] sm:$0xff]
        %v1412 = vld [vmem:[%s3 + $0x10] sm:$0xff]
        %v1413 = vld [vmem:[%s3 + $0x18] sm:$0xff]
        %v1414 = vld [vmem:[%s3 + $0x20] sm:$0xff]
        %v1415 = vld [vmem:[%s3 + $0x28] sm:$0xff]
        %v1416 = vld [vmem:[%s3 + $0x30] sm:$0xff]
        %v1417 = vld [vmem:[%s3 + $0x38] sm:$0xff]
        %v1418 = vld [vmem:[%s3 + $0x40] sm:$0xff]
        %v1419 = vld [vmem:[%s3 + $0x48] sm:$0xff]
        %v1420 = vld [vmem:[%s3 + $0x50] sm:$0xff]
        %v1421 = vld [vmem:[%s3 + $0x58] sm:$0xff]
        %v1422 = vld [vmem:[%s3 + $0x60] sm:$0xff]
        %v1423 = vld [vmem:[%s3 + $0x68] sm:$0xff]
        %v1424 = vld [vmem:[%s3 + $0x70] sm:$0xff]
        %v1425 = vld [vmem:[%s3 + $0x78] sm:$0xff]
        %v1426 = vld [vmem:[%s3 + $0x80] sm:$0xff]
        %v1427 = vld [vmem:[%s3 + $0x88] sm:$0xff]
        %v1428 = vld [vmem:[%s3 + $0x90] sm:$0xff]
        %v1429 = vld [vmem:[%s3 + $0x98] sm:$0xff]
        %v1430 = vld [vmem:[%s3 + $0xa0] sm:$0xff]
        %v1431 = vld [vmem:[%s3 + $0xa8] sm:$0xff]
        %v1432 = vld [vmem:[%s3 + $0xb0] sm:$0xff]
        %v1433 = vld [vmem:[%s3 + $0xb8] sm:$0xff]
        %v1434 = vld [vmem:[%s3 + $0xc0] sm:$0xff]
        %v1435 = vld [vmem:[%s3 + $0xc8] sm:$0xff]
        %s1436 = scalar_lea.vmem %s3, 208
        %v1437 = vld [vmem:[%s1436] sm:$0xff]
        %v1438 = vld [vmem:[%s1436 + $0x8] sm:$0xff]
        %v1439 = vld [vmem:[%s1436 + $0x10] sm:$0xff]
        %v1440 = vld [vmem:[%s1436 + $0x18] sm:$0xff]
        %v1441 = vld [vmem:[%s1436 + $0x20] sm:$0xff]
        %v1442 = vld [vmem:[%s1436 + $0x28] sm:$0xff]
        %v1443 = vld [vmem:[%s1436 + $0x30] sm:$0xff]
        %v1444 = vld [vmem:[%s1436 + $0x38] sm:$0xff]
        %v1445 = vld [vmem:[%s1436 + $0x40] sm:$0xff]
        %v1446 = vld [vmem:[%s1436 + $0x48] sm:$0xff]
        %v1447 = vld [vmem:[%s1436 + $0x50] sm:$0xff]
        %v1448 = vld [vmem:[%s1436 + $0x58] sm:$0xff]
        %v1449 = vld [vmem:[%s1436 + $0x60] sm:$0xff]
        %v1450 = vld [vmem:[%s1436 + $0x68] sm:$0xff]
        %v1451 = vld [vmem:[%s1436 + $0x70] sm:$0xff]
        %v1452 = vld [vmem:[%s1436 + $0x78] sm:$0xff]
        %v1453 = vld [vmem:[%s1436 + $0x80] sm:$0xff]
        %v1454 = vld [vmem:[%s1436 + $0x88] sm:$0xff]
        %v1455 = vld [vmem:[%s1436 + $0x90] sm:$0xff]
        %v1456 = vld [vmem:[%s1436 + $0x98] sm:$0xff]
        %v1457 = vld [vmem:[%s1436 + $0xa0] sm:$0xff]
        %v1458 = vld [vmem:[%s1436 + $0xa8] sm:$0xff]
        %v1459 = vld [vmem:[%s1436 + $0xb0] sm:$0xff]
        %v1460 = vld [vmem:[%s1436 + $0xb8] sm:$0xff]
        %v1461 = vld [vmem:[%s1436 + $0xc0] sm:$0xff]
        %v1462 = vld [vmem:[%s1436 + $0xc8] sm:$0xff]
        %v1489 = vunpack.c.l.b16 %v1437
        %v1490 = vunpack.c.h.b16 %v1437
        %v1491 = vunpack.c.l.b16 %v1438
        %v1492 = vunpack.c.h.b16 %v1438
        %v1493 = vunpack.c.l.b16 %v1439
        %v1494 = vunpack.c.h.b16 %v1439
        %v1495 = vunpack.c.l.b16 %v1440
        %v1496 = vunpack.c.h.b16 %v1440
        %v1497 = vunpack.c.l.b16 %v1441
        %v1498 = vunpack.c.h.b16 %v1441
        %v1499 = vunpack.c.l.b16 %v1442
        %v1500 = vunpack.c.h.b16 %v1442
        %v1501 = vunpack.c.l.b16 %v1443
        %v1502 = vunpack.c.h.b16 %v1443
        %v1503 = vunpack.c.l.b16 %v1444
        %v1504 = vunpack.c.h.b16 %v1444
        %v1505 = vunpack.c.l.b16 %v1445
        %v1506 = vunpack.c.h.b16 %v1445
        %v1507 = vunpack.c.l.b16 %v1446
        %v1508 = vunpack.c.h.b16 %v1446
        %v1509 = vunpack.c.l.b16 %v1447
        %v1510 = vunpack.c.h.b16 %v1447
        %v1511 = vunpack.c.l.b16 %v1448
        %v1512 = vunpack.c.h.b16 %v1448
        %v1513 = vunpack.c.l.b16 %v1449
        %v1514 = vunpack.c.h.b16 %v1449
        %v1515 = vunpack.c.l.b16 %v1450
        %v1516 = vunpack.c.h.b16 %v1450
        %v1517 = vunpack.c.l.b16 %v1451
        %v1518 = vunpack.c.h.b16 %v1451
        %v1519 = vunpack.c.l.b16 %v1452
        %v1520 = vunpack.c.h.b16 %v1452
        %v1521 = vunpack.c.l.b16 %v1453
        %v1522 = vunpack.c.h.b16 %v1453
        %v1523 = vunpack.c.l.b16 %v1454
        %v1524 = vunpack.c.h.b16 %v1454
        %v1525 = vunpack.c.l.b16 %v1455
        %v1526 = vunpack.c.h.b16 %v1455
        %v1527 = vunpack.c.l.b16 %v1456
        %v1528 = vunpack.c.h.b16 %v1456
        %v1529 = vunpack.c.l.b16 %v1457
        %v1530 = vunpack.c.h.b16 %v1457
        %v1531 = vunpack.c.l.b16 %v1458
        %v1532 = vunpack.c.h.b16 %v1458
        %v1533 = vunpack.c.l.b16 %v1459
        %v1534 = vunpack.c.h.b16 %v1459
        %v1535 = vunpack.c.l.b16 %v1460
        %v1536 = vunpack.c.h.b16 %v1460
        %v1537 = vunpack.c.l.b16 %v1461
        %v1538 = vunpack.c.h.b16 %v1461
        %v1539 = vunpack.c.l.b16 %v1462
        %v1540 = vunpack.c.h.b16 %v1462
        %v1541 = vpack.c.b16 %v1491, %v1489
        %v1542 = vpack.c.b16 %v1492, %v1490
        %v1543 = vpack.c.b16 %v1495, %v1493
        %v1544 = vpack.c.b16 %v1496, %v1494
        %v1545 = vpack.c.b16 %v1499, %v1497
        %v1546 = vpack.c.b16 %v1500, %v1498
        %v1547 = vpack.c.b16 %v1503, %v1501
        %v1548 = vpack.c.b16 %v1504, %v1502
        %v1549 = vpack.c.b16 %v1507, %v1505
        %v1550 = vpack.c.b16 %v1508, %v1506
        %v1551 = vpack.c.b16 %v1511, %v1509
        %v1552 = vpack.c.b16 %v1512, %v1510
        %v1553 = vpack.c.b16 %v1515, %v1513
        %v1554 = vpack.c.b16 %v1516, %v1514
        %v1555 = vpack.c.b16 %v1519, %v1517
        %v1556 = vpack.c.b16 %v1520, %v1518
        %v1557 = vpack.c.b16 %v1523, %v1521
        %v1558 = vpack.c.b16 %v1524, %v1522
        %v1559 = vpack.c.b16 %v1527, %v1525
        %v1560 = vpack.c.b16 %v1528, %v1526
        %v1561 = vpack.c.b16 %v1531, %v1529
        %v1562 = vpack.c.b16 %v1532, %v1530
        %v1563 = vpack.c.b16 %v1535, %v1533
        %v1564 = vpack.c.b16 %v1536, %v1534
        %v1565 = vpack.c.b16 %v1539, %v1537
        %v1566 = vpack.c.b16 %v1540, %v1538
        %1593 = vmatpush.bf16.msra.mxu0 %v1555
        %1594 = vmatpush.bf16.msra.mxu0 %v1553
        %1595 = vmatpush.bf16.msra.mxu0 %v1551
        %1596 = vmatpush.bf16.msra.mxu0 %v1549
        %1597 = vmatpush.bf16.msra.mxu0 %v1547
        %1598 = vmatpush.bf16.msra.mxu0 %v1545
        %1599 = vmatpush.bf16.msra.mxu0 %v1543
        %1600 = vmatpush.bf16.msra.mxu0 %v1541
        %1601 = vmatmul.bf16.gmra.mxu0 %v714
        %v1602 = vpop.f32.mrf.mxu0
        %v1603 = vadd.f32 0.0, %v1602
        %v1604 = vpop.f32.mrf.mxu0
        %v1605 = vadd.f32 0.0, %v1604
        %1606 = vmatmul.bf16.gmra.mxu0 %v729
        %v1607 = vpop.f32.mrf.mxu0
        %v1608 = vadd.f32 0.0, %v1607
        %v1609 = vpop.f32.mrf.mxu0
        %1610 = vdwg.mxu0
        %1611 = vmatpush.bf16.msra.mxu0 0
        %1612 = vmatpush.bf16.msra.mxu0 0
        %1613 = vmatpush.bf16.msra.mxu0 0
        %1614 = vmatpush.bf16.msra.mxu0 %v1565
        %1615 = vmatpush.bf16.msra.mxu0 %v1563
        %1616 = vmatpush.bf16.msra.mxu0 %v1561
        %1617 = vmatpush.bf16.msra.mxu0 %v1559
        %1618 = vmatpush.bf16.msra.mxu0 %v1557
        %1619 = vmatmul.bf16.gmra.mxu0 %v867
        %v1620 = vpop.f32.mrf.mxu0
        %v1621 = vadd.f32 %v1603, %v1620
        %v1622 = vpop.f32.mrf.mxu0
        %v1623 = vadd.f32 %v1605, %v1622
        %1624 = vmatmul.bf16.gmra.mxu0 %v870
        %v1625 = vpop.f32.mrf.mxu0
        %v1626 = vadd.f32 %v1608, %v1625
        %v1627 = vpop.f32.mrf.mxu0
        %1628 = vdwg.mxu0
        %1629 = vmatpush.bf16.msra.mxu0 %v1556
        %1630 = vmatpush.bf16.msra.mxu0 %v1554
        %1631 = vmatpush.bf16.msra.mxu0 %v1552
        %1632 = vmatpush.bf16.msra.mxu0 %v1550
        %1633 = vmatpush.bf16.msra.mxu0 %v1548
        %1634 = vmatpush.bf16.msra.mxu0 %v1546
        %1635 = vmatpush.bf16.msra.mxu0 %v1544
        %1636 = vmatpush.bf16.msra.mxu0 %v1542
        %1637 = vmatmul.bf16.gmra.mxu0 %v714
        %v1638 = vpop.f32.mrf.mxu0
        %v1639 = vadd.f32 0.0, %v1638
        %v1640 = vpop.f32.mrf.mxu0
        %v1641 = vadd.f32 0.0, %v1640
        %1642 = vmatmul.bf16.gmra.mxu0 %v729
        %v1643 = vpop.f32.mrf.mxu0
        %v1644 = vadd.f32 0.0, %v1643
        %v1645 = vpop.f32.mrf.mxu0
        %1646 = vdwg.mxu0
        %1647 = vmatpush.bf16.msra.mxu0 0
        %1648 = vmatpush.bf16.msra.mxu0 0
        %1649 = vmatpush.bf16.msra.mxu0 0
        %1650 = vmatpush.bf16.msra.mxu0 %v1566
        %1651 = vmatpush.bf16.msra.mxu0 %v1564
        %1652 = vmatpush.bf16.msra.mxu0 %v1562
        %1653 = vmatpush.bf16.msra.mxu0 %v1560
        %1654 = vmatpush.bf16.msra.mxu0 %v1558
        %1655 = vmatmul.bf16.gmra.mxu0 %v867
        %v1656 = vpop.f32.mrf.mxu0
        %v1657 = vadd.f32 %v1639, %v1656
        %v1658 = vpop.f32.mrf.mxu0
        %v1659 = vadd.f32 %v1641, %v1658
        %1660 = vmatmul.bf16.gmra.mxu0 %v870
        %v1661 = vpop.f32.mrf.mxu0
        %v1662 = vadd.f32 %v1644, %v1661
        %v1663 = vpop.f32.mrf.mxu0
        %1664 = vdwg.mxu0
        %v1691 = vunpack.c.l.b16 %v1410
        %v1692 = vunpack.c.h.b16 %v1410
        %v1693 = vunpack.c.l.b16 %v1411
        %v1694 = vunpack.c.h.b16 %v1411
        %v1695 = vunpack.c.l.b16 %v1412
        %v1696 = vunpack.c.h.b16 %v1412
        %v1697 = vunpack.c.l.b16 %v1413
        %v1698 = vunpack.c.h.b16 %v1413
        %v1699 = vunpack.c.l.b16 %v1414
        %v1700 = vunpack.c.h.b16 %v1414
        %v1701 = vunpack.c.l.b16 %v1415
        %v1702 = vunpack.c.h.b16 %v1415
        %v1703 = vunpack.c.l.b16 %v1416
        %v1704 = vunpack.c.h.b16 %v1416
        %v1705 = vunpack.c.l.b16 %v1417
        %v1706 = vunpack.c.h.b16 %v1417
        %v1707 = vunpack.c.l.b16 %v1418
        %v1708 = vunpack.c.h.b16 %v1418
        %v1709 = vunpack.c.l.b16 %v1419
        %v1710 = vunpack.c.h.b16 %v1419
        %v1711 = vunpack.c.l.b16 %v1420
        %v1712 = vunpack.c.h.b16 %v1420
        %v1713 = vunpack.c.l.b16 %v1421
        %v1714 = vunpack.c.h.b16 %v1421
        %v1715 = vunpack.c.l.b16 %v1422
        %v1716 = vunpack.c.h.b16 %v1422
        %v1717 = vunpack.c.l.b16 %v1423
        %v1718 = vunpack.c.h.b16 %v1423
        %v1719 = vunpack.c.l.b16 %v1424
        %v1720 = vunpack.c.h.b16 %v1424
        %v1721 = vunpack.c.l.b16 %v1425
        %v1722 = vunpack.c.h.b16 %v1425
        %v1723 = vunpack.c.l.b16 %v1426
        %v1724 = vunpack.c.h.b16 %v1426
        %v1725 = vunpack.c.l.b16 %v1427
        %v1726 = vunpack.c.h.b16 %v1427
        %v1727 = vunpack.c.l.b16 %v1428
        %v1728 = vunpack.c.h.b16 %v1428
        %v1729 = vunpack.c.l.b16 %v1429
        %v1730 = vunpack.c.h.b16 %v1429
        %v1731 = vunpack.c.l.b16 %v1430
        %v1732 = vunpack.c.h.b16 %v1430
        %v1733 = vunpack.c.l.b16 %v1431
        %v1734 = vunpack.c.h.b16 %v1431
        %v1735 = vunpack.c.l.b16 %v1432
        %v1736 = vunpack.c.h.b16 %v1432
        %v1737 = vunpack.c.l.b16 %v1433
        %v1738 = vunpack.c.h.b16 %v1433
        %v1739 = vunpack.c.l.b16 %v1434
        %v1740 = vunpack.c.h.b16 %v1434
        %v1741 = vunpack.c.l.b16 %v1435
        %v1742 = vunpack.c.h.b16 %v1435
        %v1743 = vpack.c.b16 %v1693, %v1691
        %v1744 = vpack.c.b16 %v1694, %v1692
        %v1745 = vpack.c.b16 %v1697, %v1695
        %v1746 = vpack.c.b16 %v1698, %v1696
        %v1747 = vpack.c.b16 %v1701, %v1699
        %v1748 = vpack.c.b16 %v1702, %v1700
        %v1749 = vpack.c.b16 %v1705, %v1703
        %v1750 = vpack.c.b16 %v1706, %v1704
        %v1751 = vpack.c.b16 %v1709, %v1707
        %v1752 = vpack.c.b16 %v1710, %v1708
        %v1753 = vpack.c.b16 %v1713, %v1711
        %v1754 = vpack.c.b16 %v1714, %v1712
        %v1755 = vpack.c.b16 %v1717, %v1715
        %v1756 = vpack.c.b16 %v1718, %v1716
        %v1757 = vpack.c.b16 %v1721, %v1719
        %v1758 = vpack.c.b16 %v1722, %v1720
        %v1759 = vpack.c.b16 %v1725, %v1723
        %v1760 = vpack.c.b16 %v1726, %v1724
        %v1761 = vpack.c.b16 %v1729, %v1727
        %v1762 = vpack.c.b16 %v1730, %v1728
        %v1763 = vpack.c.b16 %v1733, %v1731
        %v1764 = vpack.c.b16 %v1734, %v1732
        %v1765 = vpack.c.b16 %v1737, %v1735
        %v1766 = vpack.c.b16 %v1738, %v1736
        %v1767 = vpack.c.b16 %v1741, %v1739
        %v1768 = vpack.c.b16 %v1742, %v1740
        %1795 = vmatpush.bf16.msra.mxu0 %v1757
        %1796 = vmatpush.bf16.msra.mxu0 %v1755
        %1797 = vmatpush.bf16.msra.mxu0 %v1753
        %1798 = vmatpush.bf16.msra.mxu0 %v1751
        %1799 = vmatpush.bf16.msra.mxu0 %v1749
        %1800 = vmatpush.bf16.msra.mxu0 %v1747
        %1801 = vmatpush.bf16.msra.mxu0 %v1745
        %1802 = vmatpush.bf16.msra.mxu0 %v1743
        %1803 = vmatmul.bf16.gmra.mxu0 %v699
        %v1804 = vpop.f32.mrf.mxu0
        %v1805 = vadd.f32 %v1621, %v1804
        %v1806 = vpop.f32.mrf.mxu0
        %v1807 = vadd.f32 %v1623, %v1806
        %1808 = vmatmul.bf16.gmra.mxu0 %v944
        %v1809 = vpop.f32.mrf.mxu0
        %v1810 = vadd.f32 %v1626, %v1809
        %v1811 = vpop.f32.mrf.mxu0
        %1812 = vdwg.mxu0
        %1813 = vmatpush.bf16.msra.mxu0 0
        %1814 = vmatpush.bf16.msra.mxu0 0
        %1815 = vmatpush.bf16.msra.mxu0 0
        %1816 = vmatpush.bf16.msra.mxu0 %v1767
        %1817 = vmatpush.bf16.msra.mxu0 %v1765
        %1818 = vmatpush.bf16.msra.mxu0 %v1763
        %1819 = vmatpush.bf16.msra.mxu0 %v1761
        %1820 = vmatpush.bf16.msra.mxu0 %v1759
        %1821 = vmatmul.bf16.gmra.mxu0 %v1078
        %v1822 = vpop.f32.mrf.mxu0
        %v1823 = vadd.f32 %v1805, %v1822
        %v1824 = vpop.f32.mrf.mxu0
        %v1825 = vadd.f32 %v1807, %v1824
        %1826 = vmatmul.bf16.gmra.mxu0 %v1081
        %v1827 = vpop.f32.mrf.mxu0
        %v1828 = vadd.f32 %v1810, %v1827
        %v1829 = vpop.f32.mrf.mxu0
        %1830 = vdwg.mxu0
        %1831 = vmatpush.bf16.msra.mxu0 %v1758
        %1832 = vmatpush.bf16.msra.mxu0 %v1756
        %1833 = vmatpush.bf16.msra.mxu0 %v1754
        %1834 = vmatpush.bf16.msra.mxu0 %v1752
        %1835 = vmatpush.bf16.msra.mxu0 %v1750
        %1836 = vmatpush.bf16.msra.mxu0 %v1748
        %1837 = vmatpush.bf16.msra.mxu0 %v1746
        %1838 = vmatpush.bf16.msra.mxu0 %v1744
        %1839 = vmatmul.bf16.gmra.mxu0 %v699
        %v1840 = vpop.f32.mrf.mxu0
        %v1841 = vadd.f32 %v1657, %v1840
        %v1842 = vpop.f32.mrf.mxu0
        %v1843 = vadd.f32 %v1659, %v1842
        %1844 = vmatmul.bf16.gmra.mxu0 %v944
        %v1845 = vpop.f32.mrf.mxu0
        %v1846 = vadd.f32 %v1662, %v1845
        %v1847 = vpop.f32.mrf.mxu0
        %1848 = vdwg.mxu0
        %1849 = vmatpush.bf16.msra.mxu0 0
        %1850 = vmatpush.bf16.msra.mxu0 0
        %1851 = vmatpush.bf16.msra.mxu0 0
        %1852 = vmatpush.bf16.msra.mxu0 %v1768
        %1853 = vmatpush.bf16.msra.mxu0 %v1766
        %1854 = vmatpush.bf16.msra.mxu0 %v1764
        %1855 = vmatpush.bf16.msra.mxu0 %v1762
        %1856 = vmatpush.bf16.msra.mxu0 %v1760
        %1857 = vmatmul.bf16.gmra.mxu0 %v1078
        %v1858 = vpop.f32.mrf.mxu0
        %v1859 = vadd.f32 %v1841, %v1858
        %v1860 = vpop.f32.mrf.mxu0
        %v1861 = vadd.f32 %v1843, %v1860
        %1862 = vmatmul.bf16.gmra.mxu0 %v1081
        %v1863 = vpop.f32.mrf.mxu0
        %v1864 = vadd.f32 %v1846, %v1863
        %v1865 = vpop.f32.mrf.mxu0
        %1866 = vdwg.mxu0
        %s1867 = scalar_lea.vmem %s3, 416
        %v1868 = vld [vmem:[%s1867] sm:$0xff]
        %v1869 = vld [vmem:[%s1867 + $0x8] sm:$0xff]
        %v1870 = vld [vmem:[%s1867 + $0x10] sm:$0xff]
        %v1871 = vld [vmem:[%s1867 + $0x18] sm:$0xff]
        %v1872 = vld [vmem:[%s1867 + $0x20] sm:$0xff]
        %v1873 = vld [vmem:[%s1867 + $0x28] sm:$0xff]
        %v1874 = vld [vmem:[%s1867 + $0x30] sm:$0xff]
        %v1875 = vld [vmem:[%s1867 + $0x38] sm:$0xff]
        %v1876 = vld [vmem:[%s1867 + $0x40] sm:$0xff]
        %v1877 = vld [vmem:[%s1867 + $0x48] sm:$0xff]
        %v1878 = vld [vmem:[%s1867 + $0x50] sm:$0xff]
        %v1879 = vld [vmem:[%s1867 + $0x58] sm:$0xff]
        %v1880 = vld [vmem:[%s1867 + $0x60] sm:$0xff]
        %v1881 = vld [vmem:[%s1867 + $0x68] sm:$0xff]
        %v1882 = vld [vmem:[%s1867 + $0x70] sm:$0xff]
        %v1883 = vld [vmem:[%s1867 + $0x78] sm:$0xff]
        %v1884 = vld [vmem:[%s1867 + $0x80] sm:$0xff]
        %v1885 = vld [vmem:[%s1867 + $0x88] sm:$0xff]
        %v1886 = vld [vmem:[%s1867 + $0x90] sm:$0xff]
        %v1887 = vld [vmem:[%s1867 + $0x98] sm:$0xff]
        %v1888 = vld [vmem:[%s1867 + $0xa0] sm:$0xff]
        %v1889 = vld [vmem:[%s1867 + $0xa8] sm:$0xff]
        %v1890 = vld [vmem:[%s1867 + $0xb0] sm:$0xff]
        %v1891 = vld [vmem:[%s1867 + $0xb8] sm:$0xff]
        %v1892 = vld [vmem:[%s1867 + $0xc0] sm:$0xff]
        %v1893 = vld [vmem:[%s1867 + $0xc8] sm:$0xff]
        %v1920 = vunpack.c.l.b16 %v1868
        %v1921 = vunpack.c.h.b16 %v1868
        %v1922 = vunpack.c.l.b16 %v1869
        %v1923 = vunpack.c.h.b16 %v1869
        %v1924 = vunpack.c.l.b16 %v1870
        %v1925 = vunpack.c.h.b16 %v1870
        %v1926 = vunpack.c.l.b16 %v1871
        %v1927 = vunpack.c.h.b16 %v1871
        %v1928 = vunpack.c.l.b16 %v1872
        %v1929 = vunpack.c.h.b16 %v1872
        %v1930 = vunpack.c.l.b16 %v1873
        %v1931 = vunpack.c.h.b16 %v1873
        %v1932 = vunpack.c.l.b16 %v1874
        %v1933 = vunpack.c.h.b16 %v1874
        %v1934 = vunpack.c.l.b16 %v1875
        %v1935 = vunpack.c.h.b16 %v1875
        %v1936 = vunpack.c.l.b16 %v1876
        %v1937 = vunpack.c.h.b16 %v1876
        %v1938 = vunpack.c.l.b16 %v1877
        %v1939 = vunpack.c.h.b16 %v1877
        %v1940 = vunpack.c.l.b16 %v1878
        %v1941 = vunpack.c.h.b16 %v1878
        %v1942 = vunpack.c.l.b16 %v1879
        %v1943 = vunpack.c.h.b16 %v1879
        %v1944 = vunpack.c.l.b16 %v1880
        %v1945 = vunpack.c.h.b16 %v1880
        %v1946 = vunpack.c.l.b16 %v1881
        %v1947 = vunpack.c.h.b16 %v1881
        %v1948 = vunpack.c.l.b16 %v1882
        %v1949 = vunpack.c.h.b16 %v1882
        %v1950 = vunpack.c.l.b16 %v1883
        %v1951 = vunpack.c.h.b16 %v1883
        %v1952 = vunpack.c.l.b16 %v1884
        %v1953 = vunpack.c.h.b16 %v1884
        %v1954 = vunpack.c.l.b16 %v1885
        %v1955 = vunpack.c.h.b16 %v1885
        %v1956 = vunpack.c.l.b16 %v1886
        %v1957 = vunpack.c.h.b16 %v1886
        %v1958 = vunpack.c.l.b16 %v1887
        %v1959 = vunpack.c.h.b16 %v1887
        %v1960 = vunpack.c.l.b16 %v1888
        %v1961 = vunpack.c.h.b16 %v1888
        %v1962 = vunpack.c.l.b16 %v1889
        %v1963 = vunpack.c.h.b16 %v1889
        %v1964 = vunpack.c.l.b16 %v1890
        %v1965 = vunpack.c.h.b16 %v1890
        %v1966 = vunpack.c.l.b16 %v1891
        %v1967 = vunpack.c.h.b16 %v1891
        %v1968 = vunpack.c.l.b16 %v1892
        %v1969 = vunpack.c.h.b16 %v1892
        %v1970 = vunpack.c.l.b16 %v1893
        %v1971 = vunpack.c.h.b16 %v1893
        %v1972 = vpack.c.b16 %v1922, %v1920
        %v1973 = vpack.c.b16 %v1923, %v1921
        %v1974 = vpack.c.b16 %v1926, %v1924
        %v1975 = vpack.c.b16 %v1927, %v1925
        %v1976 = vpack.c.b16 %v1930, %v1928
        %v1977 = vpack.c.b16 %v1931, %v1929
        %v1978 = vpack.c.b16 %v1934, %v1932
        %v1979 = vpack.c.b16 %v1935, %v1933
        %v1980 = vpack.c.b16 %v1938, %v1936
        %v1981 = vpack.c.b16 %v1939, %v1937
        %v1982 = vpack.c.b16 %v1942, %v1940
        %v1983 = vpack.c.b16 %v1943, %v1941
        %v1984 = vpack.c.b16 %v1946, %v1944
        %v1985 = vpack.c.b16 %v1947, %v1945
        %v1986 = vpack.c.b16 %v1950, %v1948
        %v1987 = vpack.c.b16 %v1951, %v1949
        %v1988 = vpack.c.b16 %v1954, %v1952
        %v1989 = vpack.c.b16 %v1955, %v1953
        %v1990 = vpack.c.b16 %v1958, %v1956
        %v1991 = vpack.c.b16 %v1959, %v1957
        %v1992 = vpack.c.b16 %v1962, %v1960
        %v1993 = vpack.c.b16 %v1963, %v1961
        %v1994 = vpack.c.b16 %v1966, %v1964
        %v1995 = vpack.c.b16 %v1967, %v1965
        %v1996 = vpack.c.b16 %v1970, %v1968
        %v1997 = vpack.c.b16 %v1971, %v1969
        %2024 = vmatpush.bf16.msra.mxu0 %v1986
        %2025 = vmatpush.bf16.msra.mxu0 %v1984
        %2026 = vmatpush.bf16.msra.mxu0 %v1982
        %2027 = vmatpush.bf16.msra.mxu0 %v1980
        %2028 = vmatpush.bf16.msra.mxu0 %v1978
        %2029 = vmatpush.bf16.msra.mxu0 %v1976
        %2030 = vmatpush.bf16.msra.mxu0 %v1974
        %2031 = vmatpush.bf16.msra.mxu0 %v1972
        %2032 = vmatmul.bf16.gmra.mxu0 %v1184
        %v2033 = vpop.f32.mrf.mxu0
        %v2034 = vadd.f32 0.0, %v2033
        %v2035 = vpop.f32.mrf.mxu0
        %v2036 = vadd.f32 0.0, %v2035
        %2037 = vmatmul.bf16.gmra.mxu0 %v1183
        %v2038 = vpop.f32.mrf.mxu0
        %v2039 = vadd.f32 0.0, %v2038
        %v2040 = vpop.f32.mrf.mxu0
        %2041 = vdwg.mxu0
        %2042 = vmatpush.bf16.msra.mxu0 0
        %2043 = vmatpush.bf16.msra.mxu0 0
        %2044 = vmatpush.bf16.msra.mxu0 0
        %2045 = vmatpush.bf16.msra.mxu0 %v1996
        %2046 = vmatpush.bf16.msra.mxu0 %v1994
        %2047 = vmatpush.bf16.msra.mxu0 %v1992
        %2048 = vmatpush.bf16.msra.mxu0 %v1990
        %2049 = vmatpush.bf16.msra.mxu0 %v1988
        %2050 = vmatmul.bf16.gmra.mxu0 %v1321
        %v2051 = vpop.f32.mrf.mxu0
        %v2052 = vadd.f32 %v2034, %v2051
        %v2053 = vpop.f32.mrf.mxu0
        %v2054 = vadd.f32 %v2036, %v2053
        %2055 = vmatmul.bf16.gmra.mxu0 %v1324
        %v2056 = vpop.f32.mrf.mxu0
        %v2057 = vadd.f32 %v2039, %v2056
        %v2058 = vpop.f32.mrf.mxu0
        %2059 = vdwg.mxu0
        %2060 = vmatpush.bf16.msra.mxu0 %v1987
        %2061 = vmatpush.bf16.msra.mxu0 %v1985
        %2062 = vmatpush.bf16.msra.mxu0 %v1983
        %2063 = vmatpush.bf16.msra.mxu0 %v1981
        %2064 = vmatpush.bf16.msra.mxu0 %v1979
        %2065 = vmatpush.bf16.msra.mxu0 %v1977
        %2066 = vmatpush.bf16.msra.mxu0 %v1975
        %2067 = vmatpush.bf16.msra.mxu0 %v1973
        %2068 = vmatmul.bf16.gmra.mxu0 %v1184
        %v2069 = vpop.f32.mrf.mxu0
        %v2070 = vadd.f32 0.0, %v2069
        %v2071 = vpop.f32.mrf.mxu0
        %v2072 = vadd.f32 0.0, %v2071
        %2073 = vmatmul.bf16.gmra.mxu0 %v1183
        %v2074 = vpop.f32.mrf.mxu0
        %v2075 = vadd.f32 0.0, %v2074
        %v2076 = vpop.f32.mrf.mxu0
        %2077 = vdwg.mxu0
        %2078 = vmatpush.bf16.msra.mxu0 0
        %2079 = vmatpush.bf16.msra.mxu0 0
        %2080 = vmatpush.bf16.msra.mxu0 0
        %2081 = vmatpush.bf16.msra.mxu0 %v1997
        %2082 = vmatpush.bf16.msra.mxu0 %v1995
        %2083 = vmatpush.bf16.msra.mxu0 %v1993
        %2084 = vmatpush.bf16.msra.mxu0 %v1991
        %2085 = vmatpush.bf16.msra.mxu0 %v1989
        %2086 = vmatmul.bf16.gmra.mxu0 %v1321
        %v2087 = vpop.f32.mrf.mxu0
        %v2088 = vadd.f32 %v2070, %v2087
        %v2089 = vpop.f32.mrf.mxu0
        %v2090 = vadd.f32 %v2072, %v2089
        %2091 = vmatmul.bf16.gmra.mxu0 %v1324
        %v2092 = vpop.f32.mrf.mxu0
        %v2093 = vadd.f32 %v2075, %v2092
        %v2094 = vpop.f32.mrf.mxu0
        %2095 = vdwg.mxu0
        %v2096 = vadd.f32 %v1823, %v2052
        %v2097 = vadd.f32 %v1859, %v2088
        %v2098 = vadd.f32 %v1825, %v2054
        %v2099 = vadd.f32 %v1861, %v2090
        %v2100 = vadd.f32 %v1828, %v2057
        %v2101 = vadd.f32 %v1864, %v2093
        %v2102 = vmax.f32 %v2096, 0.0
        %v2103 = vmax.f32 %v2097, 0.0
        %v2104 = vmax.f32 %v2098, 0.0
        %v2105 = vmax.f32 %v2099, 0.0
        %v2106 = vmax.f32 %v2100, 0.0
        %v2107 = vmax.f32 %v2101, 0.0
        %v2108 = vmax.f32 %v1404, %v2102
        %v2109 = vmax.f32 %v1405, %v2103
        %v2110 = vmax.f32 %v1406, %v2104
        %v2111 = vmax.f32 %v1407, %v2105
        %v2112 = vmax.f32 %v1408, %v2106
        %v2113 = vmax.f32 %v1409, %v2107
        %vm2120 = vcmask 1046528
        %v2121 = vrot.slane %v2108, 1
        %v2122 = vrot.slane %v2110, 1
        %v2123 = vsel %vm2120, %v2121, %v2122
        %v2124 = vrot.slane %v2109, 1
        %v2125 = vrot.slane %v2111, 1
        %v2126 = vsel %vm2120, %v2124, %v2125
        %v2127 = vrot.slane %v2112, 1
        %v2128 = vsel %vm2120, %v2122, %v2127
        %v2129 = vrot.slane %v2113, 1
        %v2130 = vsel %vm2120, %v2125, %v2129
        %v2137 = vmax.f32 %v2108, %v2123
        %v2138 = vmax.f32 %v2109, %v2126
        %v2139 = vmax.f32 %v2110, %v2128
        %v2140 = vmax.f32 %v2111, %v2130
        %v2141 = vmax.f32 %v2112, %v2127
        %v2142 = vmax.f32 %v2113, %v2129
        %v2143 = vld [vmem:[%s4] sm:$0xf]
        %v2144 = vld [vmem:[%s4 + $0x4] sm:$0x3]
        %v2145 = vpack.c.bf16 %v2139, %v2137
        %v2146 = vpack.c.bf16 %v2140, %v2138
        %v2147 = vpack.c.bf16 %v2141, %v2141
        %v2148 = vpack.c.bf16 %v2142, %v2142
        %v2151 = vunpack.c.l.b16 %v2143
        %v2152 = vunpack.c.l.b16 %v2144
        %v2153 = vpack.c.b16 %v2152, %v2151
        %vm2154 = vcmask 187392
        %v2156 = vsel %vm2154, %v2153, 0
        %vm2158 = vcmask 1042432
        %vm2159 = vcmask 1043456
        %v2160 = vsel %vm2158, 4294967295, 65535
        %v2161 = vsel %vm2159, %v2160, 0
        %v2163 = vand.u32 %v2147, %v2161
        %v2166 = vand.u32 %v2148, %v2161
        %2168 = vmatpush.bf16.msra.mxu0 0
        %2169 = vmatpush.bf16.msra.mxu0 0
        %2170 = vmatpush.bf16.msra.mxu0 0
        %2171 = vmatpush.bf16.msra.mxu0 0
        %2172 = vmatpush.bf16.msra.mxu0 0
        %2173 = vmatpush.bf16.msra.mxu0 0
        %2174 = vmatpush.bf16.msra.mxu0 %v2163
        %2175 = vmatpush.bf16.msra.mxu0 %v2145
        %2176 = vmatmul.bf16.gmra.mxu0 %v2156
        %v2177 = vpop.f32.mrf.mxu0
        %v2178 = vadd.f32 0.0, %v2177
        %v2179 = vpop.f32.mrf.mxu0
        %v2180 = vadd.f32 0.0, %v2179
        %2181 = vdwg.mxu0
        %2182 = vmatpush.bf16.msra.mxu0 0
        %2183 = vmatpush.bf16.msra.mxu0 0
        %2184 = vmatpush.bf16.msra.mxu0 0
        %2185 = vmatpush.bf16.msra.mxu0 0
        %2186 = vmatpush.bf16.msra.mxu0 0
        %2187 = vmatpush.bf16.msra.mxu0 0
        %2188 = vmatpush.bf16.msra.mxu0 %v2166
        %2189 = vmatpush.bf16.msra.mxu0 %v2146
        %2190 = vmatmul.bf16.gmra.mxu0 %v2156
        %v2191 = vpop.f32.mrf.mxu0
        %v2192 = vadd.f32 0.0, %v2191
        %v2193 = vpop.f32.mrf.mxu0
        %v2194 = vadd.f32 0.0, %v2193
        %2195 = vdwg.mxu0
        %v2196 = vpack.c.bf16 %v2180, %v2178
        %v2197 = vpack.c.bf16 %v2194, %v2192
        %v2198 = vld [vmem:[%s5] sm:$0xf]
        %v2199 = vld [vmem:[%s5 + $0x4] sm:$0xf]
        %v2200 = vld [vmem:[%s5 + $0x8] sm:$0xf]
        %v2201 = vld [vmem:[%s5 + $0xc] sm:$0xf]
        %v2202 = vld [vmem:[%s5 + $0x10] sm:$0xf]
        %v2203 = vld [vmem:[%s5 + $0x14] sm:$0xf]
        %v2204 = vld [vmem:[%s5 + $0x18] sm:$0xf]
        %v2205 = vld [vmem:[%s5 + $0x1c] sm:$0xf]
        %v2206 = vld [vmem:[%s5 + $0x20] sm:$0xf]
        %v2207 = vld [vmem:[%s5 + $0x24] sm:$0xf]
        %v2208 = vld [vmem:[%s5 + $0x28] sm:$0xf]
        %v2209 = vld [vmem:[%s5 + $0x2c] sm:$0xf]
        %v2210 = vld [vmem:[%s5 + $0x30] sm:$0xf]
        %v2211 = vld [vmem:[%s5 + $0x34] sm:$0xf]
        %v2212 = vld [vmem:[%s5 + $0x38] sm:$0xf]
        %v2213 = vld [vmem:[%s5 + $0x3c] sm:$0xf]
        %v2214 = vld [vmem:[%s5 + $0x40] sm:$0xf]
        %v2215 = vld [vmem:[%s5 + $0x44] sm:$0xf]
        %v2216 = vld [vmem:[%s5 + $0x48] sm:$0xf]
        %v2217 = vld [vmem:[%s5 + $0x4c] sm:$0xf]
        %v2218 = vld [vmem:[%s5 + $0x50] sm:$0xf]
        %v2219 = vld [vmem:[%s5 + $0x54] sm:$0xf]
        %v2220 = vld [vmem:[%s5 + $0x58] sm:$0xf]
        %v2221 = vld [vmem:[%s5 + $0x5c] sm:$0xf]
        %v2246 = vunpack.c.l.b16 %v2198
        %v2247 = vunpack.c.l.b16 %v2199
        %v2248 = vunpack.c.l.b16 %v2200
        %v2249 = vunpack.c.l.b16 %v2201
        %v2250 = vunpack.c.l.b16 %v2202
        %v2251 = vunpack.c.l.b16 %v2203
        %v2252 = vunpack.c.l.b16 %v2204
        %v2253 = vunpack.c.l.b16 %v2205
        %v2254 = vunpack.c.l.b16 %v2206
        %v2255 = vunpack.c.l.b16 %v2207
        %v2256 = vunpack.c.l.b16 %v2208
        %v2257 = vunpack.c.l.b16 %v2209
        %v2258 = vunpack.c.l.b16 %v2210
        %v2259 = vunpack.c.l.b16 %v2211
        %v2260 = vunpack.c.l.b16 %v2212
        %v2261 = vunpack.c.l.b16 %v2213
        %v2262 = vunpack.c.l.b16 %v2214
        %v2263 = vunpack.c.l.b16 %v2215
        %v2264 = vunpack.c.l.b16 %v2216
        %v2265 = vunpack.c.l.b16 %v2217
        %v2266 = vunpack.c.l.b16 %v2218
        %v2267 = vunpack.c.l.b16 %v2219
        %v2268 = vunpack.c.l.b16 %v2220
        %v2269 = vunpack.c.l.b16 %v2221
        %v2270 = vpack.c.b16 %v2247, %v2246
        %v2271 = vpack.c.b16 %v2249, %v2248
        %v2272 = vpack.c.b16 %v2251, %v2250
        %v2273 = vpack.c.b16 %v2253, %v2252
        %v2274 = vpack.c.b16 %v2255, %v2254
        %v2275 = vpack.c.b16 %v2257, %v2256
        %v2276 = vpack.c.b16 %v2259, %v2258
        %v2277 = vpack.c.b16 %v2261, %v2260
        %v2278 = vpack.c.b16 %v2263, %v2262
        %v2279 = vpack.c.b16 %v2265, %v2264
        %v2280 = vpack.c.b16 %v2267, %v2266
        %v2281 = vpack.c.b16 %v2269, %v2268
        %vm2294 = vcmask 523264
        %v2296 = vsel %vm2294, %v2197, 0
        %2298 = vmatpush.bf16.msra.mxu0 %v2277
        %2299 = vmatpush.bf16.msra.mxu0 %v2276
        %2300 = vmatpush.bf16.msra.mxu0 %v2275
        %2301 = vmatpush.bf16.msra.mxu0 %v2274
        %2302 = vmatpush.bf16.msra.mxu0 %v2273
        %2303 = vmatpush.bf16.msra.mxu0 %v2272
        %2304 = vmatpush.bf16.msra.mxu0 %v2271
        %2305 = vmatpush.bf16.msra.mxu0 %v2270
        %2306 = vmatmul.bf16.gmra.mxu0 %v2196
        %v2307 = vpop.f32.mrf.mxu0
        %v2308 = vadd.f32 0.0, %v2307
        %v2309 = vpop.f32.mrf.mxu0
        %v2310 = vadd.f32 0.0, %v2309
        %2311 = vdwg.mxu0
        %2312 = vmatpush.bf16.msra.mxu0 0
        %2313 = vmatpush.bf16.msra.mxu0 0
        %2314 = vmatpush.bf16.msra.mxu0 0
        %2315 = vmatpush.bf16.msra.mxu0 0
        %2316 = vmatpush.bf16.msra.mxu0 %v2281
        %2317 = vmatpush.bf16.msra.mxu0 %v2280
        %2318 = vmatpush.bf16.msra.mxu0 %v2279
        %2319 = vmatpush.bf16.msra.mxu0 %v2278
        %2320 = vmatmul.bf16.gmra.mxu0 %v2296
        %v2321 = vpop.f32.mrf.mxu0
        %v2322 = vadd.f32 %v2308, %v2321
        %v2323 = vpop.f32.mrf.mxu0
        %v2324 = vadd.f32 %v2310, %v2323
        %2325 = vdwg.mxu0
        %v2326 = vmax.f32 %v2322, 0.0
        %v2327 = vmax.f32 %v2324, 0.0
        %v2328 = vpack.c.bf16 %v2326, %v2326
        %v2329 = vpack.c.bf16 %v2327, %v2327
        %v2330 = vld [vmem:[%s6] sm:$0xf]
        %v2331 = vld [vmem:[%s6 + $0x4] sm:$0xf]
        %v2332 = vld [vmem:[%s6 + $0x8] sm:$0xf]
        %v2333 = vld [vmem:[%s6 + $0xc] sm:$0xf]
        %v2334 = vld [vmem:[%s6 + $0x10] sm:$0xf]
        %v2335 = vld [vmem:[%s6 + $0x14] sm:$0xf]
        %v2336 = vld [vmem:[%s6 + $0x18] sm:$0xf]
        %v2337 = vld [vmem:[%s6 + $0x1c] sm:$0xf]
        %v2338 = vld [vmem:[%s6 + $0x20] sm:$0xf]
        %v2339 = vld [vmem:[%s6 + $0x24] sm:$0xf]
        %v2340 = vld [vmem:[%s6 + $0x28] sm:$0xf]
        %v2341 = vld [vmem:[%s6 + $0x2c] sm:$0xf]
        %s2342 = scalar_lea.vmem %s6, 48
        %v2343 = vld [vmem:[%s2342] sm:$0xf]
        %v2344 = vld [vmem:[%s2342 + $0x4] sm:$0xf]
        %v2345 = vld [vmem:[%s2342 + $0x8] sm:$0xf]
        %v2346 = vld [vmem:[%s2342 + $0xc] sm:$0xf]
        %v2347 = vld [vmem:[%s2342 + $0x10] sm:$0xf]
        %v2348 = vld [vmem:[%s2342 + $0x14] sm:$0xf]
        %v2349 = vld [vmem:[%s2342 + $0x18] sm:$0xf]
        %v2350 = vld [vmem:[%s2342 + $0x1c] sm:$0xf]
        %v2351 = vld [vmem:[%s2342 + $0x20] sm:$0xf]
        %v2352 = vld [vmem:[%s2342 + $0x24] sm:$0xf]
        %v2353 = vld [vmem:[%s2342 + $0x28] sm:$0xf]
        %v2354 = vld [vmem:[%s2342 + $0x2c] sm:$0xf]
        %v2357 = vunpack.c.l.b16 %v2328
        %v2358 = vunpack.c.l.b16 %v2329
        %v2359 = vpack.c.b16 %v2358, %v2357
        %v2361 = vshrl.u32 %v2359, 16
        %v2363 = vshll.u32 %v2359, 16
        %v2365 = vrot.slane %v2363, 1
        %v2366 = vor.u32 %v2361, %v2365
        %v2379 = vunpack.c.l.b16 %v2343
        %v2380 = vunpack.c.l.b16 %v2344
        %v2381 = vunpack.c.l.b16 %v2345
        %v2382 = vunpack.c.l.b16 %v2346
        %v2383 = vunpack.c.l.b16 %v2347
        %v2384 = vunpack.c.l.b16 %v2348
        %v2385 = vunpack.c.l.b16 %v2349
        %v2386 = vunpack.c.l.b16 %v2350
        %v2387 = vunpack.c.l.b16 %v2351
        %v2388 = vunpack.c.l.b16 %v2352
        %v2389 = vunpack.c.l.b16 %v2353
        %v2390 = vunpack.c.l.b16 %v2354
        %v2391 = vpack.c.b16 %v2380, %v2379
        %v2392 = vpack.c.b16 %v2382, %v2381
        %v2393 = vpack.c.b16 %v2384, %v2383
        %v2394 = vpack.c.b16 %v2386, %v2385
        %v2395 = vpack.c.b16 %v2388, %v2387
        %v2396 = vpack.c.b16 %v2390, %v2389
        %vm2403 = vcmask 785408
        %v2405 = vsel %vm2403, %v2366, 0
        %2407 = vmatpush.bf16.msra.mxu0 0
        %2408 = vmatpush.bf16.msra.mxu0 0
        %2409 = vmatpush.bf16.msra.mxu0 %v2396
        %2410 = vmatpush.bf16.msra.mxu0 %v2395
        %2411 = vmatpush.bf16.msra.mxu0 %v2394
        %2412 = vmatpush.bf16.msra.mxu0 %v2393
        %2413 = vmatpush.bf16.msra.mxu0 %v2392
        %2414 = vmatpush.bf16.msra.mxu0 %v2391
        %2415 = vmatmul.bf16.gmra.mxu0 %v2405
        %v2416 = vpop.f32.mrf.mxu0
        %v2417 = vadd.f32 0.0, %v2416
        %v2418 = vpop.f32.mrf.mxu0
        %v2419 = vadd.f32 0.0, %v2418
        %2420 = vdwg.mxu0
        %v2433 = vunpack.c.l.b16 %v2330
        %v2434 = vunpack.c.l.b16 %v2331
        %v2435 = vunpack.c.l.b16 %v2332
        %v2436 = vunpack.c.l.b16 %v2333
        %v2437 = vunpack.c.l.b16 %v2334
        %v2438 = vunpack.c.l.b16 %v2335
        %v2439 = vunpack.c.l.b16 %v2336
        %v2440 = vunpack.c.l.b16 %v2337
        %v2441 = vunpack.c.l.b16 %v2338
        %v2442 = vunpack.c.l.b16 %v2339
        %v2443 = vunpack.c.l.b16 %v2340
        %v2444 = vunpack.c.l.b16 %v2341
        %v2445 = vpack.c.b16 %v2434, %v2433
        %v2446 = vpack.c.b16 %v2436, %v2435
        %v2447 = vpack.c.b16 %v2438, %v2437
        %v2448 = vpack.c.b16 %v2440, %v2439
        %v2449 = vpack.c.b16 %v2442, %v2441
        %v2450 = vpack.c.b16 %v2444, %v2443
        %v2457 = vsel %vm2403, %v2359, 0
        %2459 = vmatpush.bf16.msra.mxu0 0
        %2460 = vmatpush.bf16.msra.mxu0 0
        %2461 = vmatpush.bf16.msra.mxu0 %v2450
        %2462 = vmatpush.bf16.msra.mxu0 %v2449
        %2463 = vmatpush.bf16.msra.mxu0 %v2448
        %2464 = vmatpush.bf16.msra.mxu0 %v2447
        %2465 = vmatpush.bf16.msra.mxu0 %v2446
        %2466 = vmatpush.bf16.msra.mxu0 %v2445
        %2467 = vmatmul.bf16.gmra.mxu0 %v2457
        %v2468 = vpop.f32.mrf.mxu0
        %v2469 = vadd.f32 %v2417, %v2468
        %v2470 = vpop.f32.mrf.mxu0
        %v2471 = vadd.f32 %v2419, %v2470
        %2472 = vdwg.mxu0
        %s2473 = scalar_lea.vmem %s6, 96
        %v2474 = vld [vmem:[%s2473] sm:$0xf]
        %v2475 = vld [vmem:[%s2473 + $0x4] sm:$0xf]
        %v2476 = vld [vmem:[%s2473 + $0x8] sm:$0xf]
        %v2477 = vld [vmem:[%s2473 + $0xc] sm:$0xf]
        %v2478 = vld [vmem:[%s2473 + $0x10] sm:$0xf]
        %v2479 = vld [vmem:[%s2473 + $0x14] sm:$0xf]
        %v2480 = vld [vmem:[%s2473 + $0x18] sm:$0xf]
        %v2481 = vld [vmem:[%s2473 + $0x1c] sm:$0xf]
        %v2482 = vld [vmem:[%s2473 + $0x20] sm:$0xf]
        %v2483 = vld [vmem:[%s2473 + $0x24] sm:$0xf]
        %v2484 = vld [vmem:[%s2473 + $0x28] sm:$0xf]
        %v2485 = vld [vmem:[%s2473 + $0x2c] sm:$0xf]
        %v2486 = vrot.slane %v2359, 1
        %v2499 = vunpack.c.l.b16 %v2474
        %v2500 = vunpack.c.l.b16 %v2475
        %v2501 = vunpack.c.l.b16 %v2476
        %v2502 = vunpack.c.l.b16 %v2477
        %v2503 = vunpack.c.l.b16 %v2478
        %v2504 = vunpack.c.l.b16 %v2479
        %v2505 = vunpack.c.l.b16 %v2480
        %v2506 = vunpack.c.l.b16 %v2481
        %v2507 = vunpack.c.l.b16 %v2482
        %v2508 = vunpack.c.l.b16 %v2483
        %v2509 = vunpack.c.l.b16 %v2484
        %v2510 = vunpack.c.l.b16 %v2485
        %v2511 = vpack.c.b16 %v2500, %v2499
        %v2512 = vpack.c.b16 %v2502, %v2501
        %v2513 = vpack.c.b16 %v2504, %v2503
        %v2514 = vpack.c.b16 %v2506, %v2505
        %v2515 = vpack.c.b16 %v2508, %v2507
        %v2516 = vpack.c.b16 %v2510, %v2509
        %v2524 = vsel %vm2403, %v2486, 0
        %2526 = vmatpush.bf16.msra.mxu0 0
        %2527 = vmatpush.bf16.msra.mxu0 0
        %2528 = vmatpush.bf16.msra.mxu0 %v2516
        %2529 = vmatpush.bf16.msra.mxu0 %v2515
        %2530 = vmatpush.bf16.msra.mxu0 %v2514
        %2531 = vmatpush.bf16.msra.mxu0 %v2513
        %2532 = vmatpush.bf16.msra.mxu0 %v2512
        %2533 = vmatpush.bf16.msra.mxu0 %v2511
        %2534 = vmatmul.bf16.gmra.mxu0 %v2524
        %v2535 = vpop.f32.mrf.mxu0
        %v2536 = vadd.f32 0.0, %v2535
        %v2537 = vpop.f32.mrf.mxu0
        %v2538 = vadd.f32 0.0, %v2537
        %2539 = vdwg.mxu0
        %v2540 = vadd.f32 %v2469, %v2536
        %v2541 = vadd.f32 %v2471, %v2538
        %v2542 = vmax.f32 %v2540, 0.0
        %v2543 = vmax.f32 %v2541, 0.0
        %v2544 = vpack.c.bf16 %v2542, %v2542
        %v2545 = vpack.c.bf16 %v2543, %v2543
        %v2546 = vld [vmem:[%s7] sm:$0xf]
        %v2547 = vld [vmem:[%s7 + $0x4] sm:$0xf]
        %v2548 = vld [vmem:[%s7 + $0x8] sm:$0xf]
        %v2549 = vld [vmem:[%s7 + $0xc] sm:$0xf]
        %v2550 = vld [vmem:[%s7 + $0x10] sm:$0xf]
        %v2551 = vld [vmem:[%s7 + $0x14] sm:$0xf]
        %v2552 = vld [vmem:[%s7 + $0x18] sm:$0xf]
        %v2553 = vld [vmem:[%s7 + $0x1c] sm:$0xf]
        %v2554 = vld [vmem:[%s7 + $0x20] sm:$0xf]
        %v2555 = vld [vmem:[%s7 + $0x24] sm:$0xf]
        %v2556 = vld [vmem:[%s7 + $0x28] sm:$0xf]
        %v2557 = vld [vmem:[%s7 + $0x2c] sm:$0xf]
        %v2558 = vld [vmem:[%s7 + $0x30] sm:$0xf]
        %v2559 = vld [vmem:[%s7 + $0x34] sm:$0xf]
        %v2560 = vld [vmem:[%s7 + $0x38] sm:$0xf]
        %s2561 = scalar_lea.vmem %s7, 60
        %v2562 = vld [vmem:[%s2561] sm:$0xf]
        %v2563 = vld [vmem:[%s2561 + $0x4] sm:$0xf]
        %v2564 = vld [vmem:[%s2561 + $0x8] sm:$0xf]
        %v2565 = vld [vmem:[%s2561 + $0xc] sm:$0xf]
        %v2566 = vld [vmem:[%s2561 + $0x10] sm:$0xf]
        %v2567 = vld [vmem:[%s2561 + $0x14] sm:$0xf]
        %v2568 = vld [vmem:[%s2561 + $0x18] sm:$0xf]
        %v2569 = vld [vmem:[%s2561 + $0x1c] sm:$0xf]
        %v2570 = vld [vmem:[%s2561 + $0x20] sm:$0xf]
        %v2571 = vld [vmem:[%s2561 + $0x24] sm:$0xf]
        %v2572 = vld [vmem:[%s2561 + $0x28] sm:$0xf]
        %v2573 = vld [vmem:[%s2561 + $0x2c] sm:$0xf]
        %v2574 = vld [vmem:[%s2561 + $0x30] sm:$0xf]
        %v2575 = vld [vmem:[%s2561 + $0x34] sm:$0xf]
        %v2576 = vld [vmem:[%s2561 + $0x38] sm:$0xf]
        %v2579 = vunpack.c.l.b16 %v2544
        %v2580 = vunpack.c.l.b16 %v2545
        %v2581 = vpack.c.b16 %v2580, %v2579
        %v2583 = vshrl.u32 %v2581, 16
        %v2585 = vshll.u32 %v2581, 16
        %v2587 = vrot.slane %v2585, 1
        %v2588 = vor.u32 %v2583, %v2587
        %v2604 = vunpack.c.l.b16 %v2562
        %v2605 = vunpack.c.l.b16 %v2563
        %v2606 = vunpack.c.l.b16 %v2564
        %v2607 = vunpack.c.l.b16 %v2565
        %v2608 = vunpack.c.l.b16 %v2566
        %v2609 = vunpack.c.l.b16 %v2567
        %v2610 = vunpack.c.l.b16 %v2568
        %v2611 = vunpack.c.l.b16 %v2569
        %v2612 = vunpack.c.l.b16 %v2570
        %v2613 = vunpack.c.l.b16 %v2571
        %v2614 = vunpack.c.l.b16 %v2572
        %v2615 = vunpack.c.l.b16 %v2573
        %v2616 = vunpack.c.l.b16 %v2574
        %v2617 = vunpack.c.l.b16 %v2575
        %v2618 = vunpack.c.l.b16 %v2576
        %v2619 = vpack.c.b16 %v2605, %v2604
        %v2620 = vpack.c.b16 %v2607, %v2606
        %v2621 = vpack.c.b16 %v2609, %v2608
        %v2622 = vpack.c.b16 %v2611, %v2610
        %v2623 = vpack.c.b16 %v2613, %v2612
        %v2624 = vpack.c.b16 %v2615, %v2614
        %v2625 = vpack.c.b16 %v2617, %v2616
        %v2626 = vpack.c.b16 %v2618, %v2618
        %vm2634 = vcmask 982016
        %v2636 = vsel %vm2634, %v2588, 0
        %v2639 = vsel %vm2159, %v2626, 0
        %2641 = vmatpush.bf16.msra.mxu0 %v2639
        %2642 = vmatpush.bf16.msra.mxu0 %v2625
        %2643 = vmatpush.bf16.msra.mxu0 %v2624
        %2644 = vmatpush.bf16.msra.mxu0 %v2623
        %2645 = vmatpush.bf16.msra.mxu0 %v2622
        %2646 = vmatpush.bf16.msra.mxu0 %v2621
        %2647 = vmatpush.bf16.msra.mxu0 %v2620
        %2648 = vmatpush.bf16.msra.mxu0 %v2619
        %2649 = vmatmul.bf16.gmra.mxu0 %v2636
        %v2650 = vpop.f32.mrf.mxu0
        %v2651 = vadd.f32 0.0, %v2650
        %v2652 = vpop.f32.mrf.mxu0
        %2653 = vdwg.mxu0
        %v2669 = vunpack.c.l.b16 %v2546
        %v2670 = vunpack.c.l.b16 %v2547
        %v2671 = vunpack.c.l.b16 %v2548
        %v2672 = vunpack.c.l.b16 %v2549
        %v2673 = vunpack.c.l.b16 %v2550
        %v2674 = vunpack.c.l.b16 %v2551
        %v2675 = vunpack.c.l.b16 %v2552
        %v2676 = vunpack.c.l.b16 %v2553
        %v2677 = vunpack.c.l.b16 %v2554
        %v2678 = vunpack.c.l.b16 %v2555
        %v2679 = vunpack.c.l.b16 %v2556
        %v2680 = vunpack.c.l.b16 %v2557
        %v2681 = vunpack.c.l.b16 %v2558
        %v2682 = vunpack.c.l.b16 %v2559
        %v2683 = vunpack.c.l.b16 %v2560
        %v2684 = vpack.c.b16 %v2670, %v2669
        %v2685 = vpack.c.b16 %v2672, %v2671
        %v2686 = vpack.c.b16 %v2674, %v2673
        %v2687 = vpack.c.b16 %v2676, %v2675
        %v2688 = vpack.c.b16 %v2678, %v2677
        %v2689 = vpack.c.b16 %v2680, %v2679
        %v2690 = vpack.c.b16 %v2682, %v2681
        %v2691 = vpack.c.b16 %v2683, %v2683
        %v2700 = vsel %vm2634, %v2544, 0
        %v2703 = vsel %vm2159, %v2691, 0
        %2705 = vmatpush.bf16.msra.mxu0 %v2703
        %2706 = vmatpush.bf16.msra.mxu0 %v2690
        %2707 = vmatpush.bf16.msra.mxu0 %v2689
        %2708 = vmatpush.bf16.msra.mxu0 %v2688
        %2709 = vmatpush.bf16.msra.mxu0 %v2687
        %2710 = vmatpush.bf16.msra.mxu0 %v2686
        %2711 = vmatpush.bf16.msra.mxu0 %v2685
        %2712 = vmatpush.bf16.msra.mxu0 %v2684
        %2713 = vmatmul.bf16.gmra.mxu0 %v2700
        %v2714 = vpop.f32.mrf.mxu0
        %v2715 = vadd.f32 %v2651, %v2714
        %v2716 = vpop.f32.mrf.mxu0
        %2717 = vdwg.mxu0
        %s2718 = scalar_lea.vmem %s7, 120
        %v2719 = vld [vmem:[%s2718] sm:$0xf]
        %v2720 = vld [vmem:[%s2718 + $0x4] sm:$0xf]
        %v2721 = vld [vmem:[%s2718 + $0x8] sm:$0xf]
        %v2722 = vld [vmem:[%s2718 + $0xc] sm:$0xf]
        %v2723 = vld [vmem:[%s2718 + $0x10] sm:$0xf]
        %v2724 = vld [vmem:[%s2718 + $0x14] sm:$0xf]
        %v2725 = vld [vmem:[%s2718 + $0x18] sm:$0xf]
        %v2726 = vld [vmem:[%s2718 + $0x1c] sm:$0xf]
        %v2727 = vld [vmem:[%s2718 + $0x20] sm:$0xf]
        %v2728 = vld [vmem:[%s2718 + $0x24] sm:$0xf]
        %v2729 = vld [vmem:[%s2718 + $0x28] sm:$0xf]
        %v2730 = vld [vmem:[%s2718 + $0x2c] sm:$0xf]
        %v2731 = vld [vmem:[%s2718 + $0x30] sm:$0xf]
        %v2732 = vld [vmem:[%s2718 + $0x34] sm:$0xf]
        %v2733 = vld [vmem:[%s2718 + $0x38] sm:$0xf]
        %v2734 = vrot.slane %v2581, 1
        %v2750 = vunpack.c.l.b16 %v2719
        %v2751 = vunpack.c.l.b16 %v2720
        %v2752 = vunpack.c.l.b16 %v2721
        %v2753 = vunpack.c.l.b16 %v2722
        %v2754 = vunpack.c.l.b16 %v2723
        %v2755 = vunpack.c.l.b16 %v2724
        %v2756 = vunpack.c.l.b16 %v2725
        %v2757 = vunpack.c.l.b16 %v2726
        %v2758 = vunpack.c.l.b16 %v2727
        %v2759 = vunpack.c.l.b16 %v2728
        %v2760 = vunpack.c.l.b16 %v2729
        %v2761 = vunpack.c.l.b16 %v2730
        %v2762 = vunpack.c.l.b16 %v2731
        %v2763 = vunpack.c.l.b16 %v2732
        %v2764 = vunpack.c.l.b16 %v2733
        %v2765 = vpack.c.b16 %v2751, %v2750
        %v2766 = vpack.c.b16 %v2753, %v2752
        %v2767 = vpack.c.b16 %v2755, %v2754
        %v2768 = vpack.c.b16 %v2757, %v2756
        %v2769 = vpack.c.b16 %v2759, %v2758
        %v2770 = vpack.c.b16 %v2761, %v2760
        %v2771 = vpack.c.b16 %v2763, %v2762
        %v2772 = vpack.c.b16 %v2764, %v2764
        %v2781 = vsel %vm2634, %v2734, 0
        %v2784 = vsel %vm2159, %v2772, 0
        %2786 = vmatpush.bf16.msra.mxu0 %v2784
        %2787 = vmatpush.bf16.msra.mxu0 %v2771
        %2788 = vmatpush.bf16.msra.mxu0 %v2770
        %2789 = vmatpush.bf16.msra.mxu0 %v2769
        %2790 = vmatpush.bf16.msra.mxu0 %v2768
        %2791 = vmatpush.bf16.msra.mxu0 %v2767
        %2792 = vmatpush.bf16.msra.mxu0 %v2766
        %2793 = vmatpush.bf16.msra.mxu0 %v2765
        %2794 = vmatmul.bf16.gmra.mxu0 %v2781
        %v2795 = vpop.f32.mrf.mxu0
        %v2796 = vadd.f32 0.0, %v2795
        %v2797 = vpop.f32.mrf.mxu0
        %2798 = vdwg.mxu0
        %v2799 = vadd.f32 %v2715, %v2796
        %v2800 = vmax.f32 %v2799, 0.0
        %v2801 = vpack.c.bf16 %v2800, %v2800
        %v2802 = vld [vmem:[%s8] sm:$0xf]
        %v2803 = vld [vmem:[%s8 + $0x4] sm:$0xf]
        %v2804 = vld [vmem:[%s8 + $0x8] sm:$0xf]
        %v2805 = vld [vmem:[%s8 + $0xc] sm:$0xf]
        %v2806 = vld [vmem:[%s8 + $0x10] sm:$0xf]
        %v2807 = vld [vmem:[%s8 + $0x14] sm:$0xf]
        %v2808 = vld [vmem:[%s8 + $0x18] sm:$0xf]
        %v2809 = vld [vmem:[%s8 + $0x1c] sm:$0xf]
        %v2810 = vld [vmem:[%s8 + $0x20] sm:$0xf]
        %v2811 = vld [vmem:[%s8 + $0x24] sm:$0xf]
        %v2812 = vld [vmem:[%s8 + $0x28] sm:$0xf]
        %v2813 = vld [vmem:[%s8 + $0x2c] sm:$0xf]
        %v2814 = vld [vmem:[%s8 + $0x30] sm:$0xf]
        %v2815 = vld [vmem:[%s8 + $0x34] sm:$0xf]
        %v2816 = vld [vmem:[%s8 + $0x38] sm:$0xf]
        %v2817 = vld [vmem:[%s8 + $0x3c] sm:$0xf]
        %s2818 = scalar_lea.vmem %s8, 64
        %v2819 = vld [vmem:[%s2818] sm:$0xf]
        %v2820 = vld [vmem:[%s2818 + $0x4] sm:$0xf]
        %v2821 = vld [vmem:[%s2818 + $0x8] sm:$0xf]
        %v2822 = vld [vmem:[%s2818 + $0xc] sm:$0xf]
        %v2823 = vld [vmem:[%s2818 + $0x10] sm:$0xf]
        %v2824 = vld [vmem:[%s2818 + $0x14] sm:$0xf]
        %v2825 = vld [vmem:[%s2818 + $0x18] sm:$0xf]
        %v2826 = vld [vmem:[%s2818 + $0x1c] sm:$0xf]
        %v2827 = vld [vmem:[%s2818 + $0x20] sm:$0xf]
        %v2828 = vld [vmem:[%s2818 + $0x24] sm:$0xf]
        %v2829 = vld [vmem:[%s2818 + $0x28] sm:$0xf]
        %v2830 = vld [vmem:[%s2818 + $0x2c] sm:$0xf]
        %v2831 = vld [vmem:[%s2818 + $0x30] sm:$0xf]
        %v2832 = vld [vmem:[%s2818 + $0x34] sm:$0xf]
        %v2833 = vld [vmem:[%s2818 + $0x38] sm:$0xf]
        %v2834 = vld [vmem:[%s2818 + $0x3c] sm:$0xf]
        %v2836 = vunpack.c.l.b16 %v2801
        %v2837 = vpack.c.b16 %v2836, %v2836
        %v2839 = vshrl.u32 %v2837, 16
        %v2841 = vshll.u32 %v2837, 16
        %v2843 = vrot.slane %v2841, 1
        %v2844 = vor.u32 %v2839, %v2843
        %v2862 = vunpack.c.l.b16 %v2819
        %v2863 = vunpack.c.l.b16 %v2820
        %v2864 = vunpack.c.l.b16 %v2821
        %v2865 = vunpack.c.l.b16 %v2822
        %v2866 = vunpack.c.l.b16 %v2823
        %v2867 = vunpack.c.l.b16 %v2824
        %v2868 = vunpack.c.l.b16 %v2825
        %v2869 = vunpack.c.l.b16 %v2826
        %v2870 = vunpack.c.l.b16 %v2827
        %v2871 = vunpack.c.l.b16 %v2828
        %v2872 = vunpack.c.l.b16 %v2829
        %v2873 = vunpack.c.l.b16 %v2830
        %v2874 = vunpack.c.l.b16 %v2831
        %v2875 = vunpack.c.l.b16 %v2832
        %v2876 = vunpack.c.l.b16 %v2833
        %v2877 = vunpack.c.l.b16 %v2834
        %v2878 = vpack.c.b16 %v2863, %v2862
        %v2879 = vpack.c.b16 %v2865, %v2864
        %v2880 = vpack.c.b16 %v2867, %v2866
        %v2881 = vpack.c.b16 %v2869, %v2868
        %v2882 = vpack.c.b16 %v2871, %v2870
        %v2883 = vpack.c.b16 %v2873, %v2872
        %v2884 = vpack.c.b16 %v2875, %v2874
        %v2885 = vpack.c.b16 %v2877, %v2876
        %2894 = vmatpush.bf16.msra.mxu0 %v2885
        %2895 = vmatpush.bf16.msra.mxu0 %v2884
        %2896 = vmatpush.bf16.msra.mxu0 %v2883
        %2897 = vmatpush.bf16.msra.mxu0 %v2882
        %2898 = vmatpush.bf16.msra.mxu0 %v2881
        %2899 = vmatpush.bf16.msra.mxu0 %v2880
        %2900 = vmatpush.bf16.msra.mxu0 %v2879
        %2901 = vmatpush.bf16.msra.mxu0 %v2878
        %2902 = vmatmul.bf16.gmra.mxu0 %v2844
        %v2903 = vpop.f32.mrf.mxu0
        %v2904 = vadd.f32 0.0, %v2903
        %v2905 = vpop.f32.mrf.mxu0
        %2906 = vdwg.mxu0
        %v2923 = vunpack.c.l.b16 %v2802
        %v2924 = vunpack.c.l.b16 %v2803
        %v2925 = vunpack.c.l.b16 %v2804
        %v2926 = vunpack.c.l.b16 %v2805
        %v2927 = vunpack.c.l.b16 %v2806
        %v2928 = vunpack.c.l.b16 %v2807
        %v2929 = vunpack.c.l.b16 %v2808
        %v2930 = vunpack.c.l.b16 %v2809
        %v2931 = vunpack.c.l.b16 %v2810
        %v2932 = vunpack.c.l.b16 %v2811
        %v2933 = vunpack.c.l.b16 %v2812
        %v2934 = vunpack.c.l.b16 %v2813
        %v2935 = vunpack.c.l.b16 %v2814
        %v2936 = vunpack.c.l.b16 %v2815
        %v2937 = vunpack.c.l.b16 %v2816
        %v2938 = vunpack.c.l.b16 %v2817
        %v2939 = vpack.c.b16 %v2924, %v2923
        %v2940 = vpack.c.b16 %v2926, %v2925
        %v2941 = vpack.c.b16 %v2928, %v2927
        %v2942 = vpack.c.b16 %v2930, %v2929
        %v2943 = vpack.c.b16 %v2932, %v2931
        %v2944 = vpack.c.b16 %v2934, %v2933
        %v2945 = vpack.c.b16 %v2936, %v2935
        %v2946 = vpack.c.b16 %v2938, %v2937
        %2955 = vmatpush.bf16.msra.mxu0 %v2946
        %2956 = vmatpush.bf16.msra.mxu0 %v2945
        %2957 = vmatpush.bf16.msra.mxu0 %v2944
        %2958 = vmatpush.bf16.msra.mxu0 %v2943
        %2959 = vmatpush.bf16.msra.mxu0 %v2942
        %2960 = vmatpush.bf16.msra.mxu0 %v2941
        %2961 = vmatpush.bf16.msra.mxu0 %v2940
        %2962 = vmatpush.bf16.msra.mxu0 %v2939
        %2963 = vmatmul.bf16.gmra.mxu0 %v2801
        %v2964 = vpop.f32.mrf.mxu0
        %v2965 = vadd.f32 %v2904, %v2964
        %v2966 = vpop.f32.mrf.mxu0
        %2967 = vdwg.mxu0
        %s2968 = scalar_lea.vmem %s8, 128
        %v2969 = vld [vmem:[%s2968] sm:$0xf]
        %v2970 = vld [vmem:[%s2968 + $0x4] sm:$0xf]
        %v2971 = vld [vmem:[%s2968 + $0x8] sm:$0xf]
        %v2972 = vld [vmem:[%s2968 + $0xc] sm:$0xf]
        %v2973 = vld [vmem:[%s2968 + $0x10] sm:$0xf]
        %v2974 = vld [vmem:[%s2968 + $0x14] sm:$0xf]
        %v2975 = vld [vmem:[%s2968 + $0x18] sm:$0xf]
        %v2976 = vld [vmem:[%s2968 + $0x1c] sm:$0xf]
        %v2977 = vld [vmem:[%s2968 + $0x20] sm:$0xf]
        %v2978 = vld [vmem:[%s2968 + $0x24] sm:$0xf]
        %v2979 = vld [vmem:[%s2968 + $0x28] sm:$0xf]
        %v2980 = vld [vmem:[%s2968 + $0x2c] sm:$0xf]
        %v2981 = vld [vmem:[%s2968 + $0x30] sm:$0xf]
        %v2982 = vld [vmem:[%s2968 + $0x34] sm:$0xf]
        %v2983 = vld [vmem:[%s2968 + $0x38] sm:$0xf]
        %v2984 = vld [vmem:[%s2968 + $0x3c] sm:$0xf]
        %v2985 = vrot.slane %v2837, 1
        %v3003 = vunpack.c.l.b16 %v2969
        %v3004 = vunpack.c.l.b16 %v2970
        %v3005 = vunpack.c.l.b16 %v2971
        %v3006 = vunpack.c.l.b16 %v2972
        %v3007 = vunpack.c.l.b16 %v2973
        %v3008 = vunpack.c.l.b16 %v2974
        %v3009 = vunpack.c.l.b16 %v2975
        %v3010 = vunpack.c.l.b16 %v2976
        %v3011 = vunpack.c.l.b16 %v2977
        %v3012 = vunpack.c.l.b16 %v2978
        %v3013 = vunpack.c.l.b16 %v2979
        %v3014 = vunpack.c.l.b16 %v2980
        %v3015 = vunpack.c.l.b16 %v2981
        %v3016 = vunpack.c.l.b16 %v2982
        %v3017 = vunpack.c.l.b16 %v2983
        %v3018 = vunpack.c.l.b16 %v2984
        %v3019 = vpack.c.b16 %v3004, %v3003
        %v3020 = vpack.c.b16 %v3006, %v3005
        %v3021 = vpack.c.b16 %v3008, %v3007
        %v3022 = vpack.c.b16 %v3010, %v3009
        %v3023 = vpack.c.b16 %v3012, %v3011
        %v3024 = vpack.c.b16 %v3014, %v3013
        %v3025 = vpack.c.b16 %v3016, %v3015
        %v3026 = vpack.c.b16 %v3018, %v3017
        %3035 = vmatpush.bf16.msra.mxu0 %v3026
        %3036 = vmatpush.bf16.msra.mxu0 %v3025
        %3037 = vmatpush.bf16.msra.mxu0 %v3024
        %3038 = vmatpush.bf16.msra.mxu0 %v3023
        %3039 = vmatpush.bf16.msra.mxu0 %v3022
        %3040 = vmatpush.bf16.msra.mxu0 %v3021
        %3041 = vmatpush.bf16.msra.mxu0 %v3020
        %3042 = vmatpush.bf16.msra.mxu0 %v3019
        %3043 = vmatmul.bf16.gmra.mxu0 %v2985
        %v3044 = vpop.f32.mrf.mxu0
        %v3045 = vadd.f32 0.0, %v3044
        %v3046 = vpop.f32.mrf.mxu0
        %3047 = vdwg.mxu0
        %v3048 = vadd.f32 %v2965, %v3045
        %v3049 = vmax.f32 %v3048, 0.0
        %v3050 = vpack.c.bf16 %v3049, %v3049
        %v3051 = vld [vmem:[%s9] sm:$0xf]
        %v3052 = vld [vmem:[%s9 + $0x4] sm:$0xf]
        %v3053 = vld [vmem:[%s9 + $0x8] sm:$0xf]
        %v3054 = vld [vmem:[%s9 + $0xc] sm:$0xf]
        %v3055 = vld [vmem:[%s9 + $0x10] sm:$0xf]
        %v3056 = vld [vmem:[%s9 + $0x14] sm:$0xf]
        %v3057 = vld [vmem:[%s9 + $0x18] sm:$0xf]
        %v3058 = vld [vmem:[%s9 + $0x1c] sm:$0xf]
        %v3059 = vld [vmem:[%s9 + $0x20] sm:$0xf]
        %v3060 = vld [vmem:[%s9 + $0x24] sm:$0xf]
        %v3061 = vld [vmem:[%s9 + $0x28] sm:$0xf]
        %v3062 = vld [vmem:[%s9 + $0x2c] sm:$0xf]
        %v3063 = vld [vmem:[%s9 + $0x30] sm:$0xf]
        %v3064 = vld [vmem:[%s9 + $0x34] sm:$0xf]
        %v3065 = vld [vmem:[%s9 + $0x38] sm:$0xf]
        %s3066 = scalar_lea.vmem %s9, 60
        %v3067 = vld [vmem:[%s3066] sm:$0xf]
        %v3068 = vld [vmem:[%s3066 + $0x4] sm:$0xf]
        %v3069 = vld [vmem:[%s3066 + $0x8] sm:$0xf]
        %v3070 = vld [vmem:[%s3066 + $0xc] sm:$0xf]
        %v3071 = vld [vmem:[%s3066 + $0x10] sm:$0xf]
        %v3072 = vld [vmem:[%s3066 + $0x14] sm:$0xf]
        %v3073 = vld [vmem:[%s3066 + $0x18] sm:$0xf]
        %v3074 = vld [vmem:[%s3066 + $0x1c] sm:$0xf]
        %v3075 = vld [vmem:[%s3066 + $0x20] sm:$0xf]
        %v3076 = vld [vmem:[%s3066 + $0x24] sm:$0xf]
        %v3077 = vld [vmem:[%s3066 + $0x28] sm:$0xf]
        %v3078 = vld [vmem:[%s3066 + $0x2c] sm:$0xf]
        %v3079 = vld [vmem:[%s3066 + $0x30] sm:$0xf]
        %v3080 = vld [vmem:[%s3066 + $0x34] sm:$0xf]
        %v3081 = vld [vmem:[%s3066 + $0x38] sm:$0xf]
        %v3083 = vunpack.c.l.b16 %v3050
        %v3084 = vpack.c.b16 %v3083, %v3083
        %v3086 = vshrl.u32 %v3084, 16
        %v3103 = vunpack.c.l.b16 %v3067
        %v3104 = vunpack.c.l.b16 %v3068
        %v3105 = vunpack.c.l.b16 %v3069
        %v3106 = vunpack.c.l.b16 %v3070
        %v3107 = vunpack.c.l.b16 %v3071
        %v3108 = vunpack.c.l.b16 %v3072
        %v3109 = vunpack.c.l.b16 %v3073
        %v3110 = vunpack.c.l.b16 %v3074
        %v3111 = vunpack.c.l.b16 %v3075
        %v3112 = vunpack.c.l.b16 %v3076
        %v3113 = vunpack.c.l.b16 %v3077
        %v3114 = vunpack.c.l.b16 %v3078
        %v3115 = vunpack.c.l.b16 %v3079
        %v3116 = vunpack.c.l.b16 %v3080
        %v3117 = vunpack.c.l.b16 %v3081
        %v3118 = vpack.c.b16 %v3104, %v3103
        %v3119 = vpack.c.b16 %v3106, %v3105
        %v3120 = vpack.c.b16 %v3108, %v3107
        %v3121 = vpack.c.b16 %v3110, %v3109
        %v3122 = vpack.c.b16 %v3112, %v3111
        %v3123 = vpack.c.b16 %v3114, %v3113
        %v3124 = vpack.c.b16 %v3116, %v3115
        %v3125 = vpack.c.b16 %v3117, %v3117
        %v3134 = vsel %vm2634, %v3086, 0
        %v3137 = vsel %vm2159, %v3125, 0
        %3139 = vmatpush.bf16.msra.mxu0 %v3137
        %3140 = vmatpush.bf16.msra.mxu0 %v3124
        %3141 = vmatpush.bf16.msra.mxu0 %v3123
        %3142 = vmatpush.bf16.msra.mxu0 %v3122
        %3143 = vmatpush.bf16.msra.mxu0 %v3121
        %3144 = vmatpush.bf16.msra.mxu0 %v3120
        %3145 = vmatpush.bf16.msra.mxu0 %v3119
        %3146 = vmatpush.bf16.msra.mxu0 %v3118
        %3147 = vmatmul.bf16.gmra.mxu0 %v3134
        %v3148 = vpop.f32.mrf.mxu0
        %v3149 = vadd.f32 0.0, %v3148
        %v3150 = vpop.f32.mrf.mxu0
        %3151 = vdwg.mxu0
        %v3167 = vunpack.c.l.b16 %v3051
        %v3168 = vunpack.c.l.b16 %v3052
        %v3169 = vunpack.c.l.b16 %v3053
        %v3170 = vunpack.c.l.b16 %v3054
        %v3171 = vunpack.c.l.b16 %v3055
        %v3172 = vunpack.c.l.b16 %v3056
        %v3173 = vunpack.c.l.b16 %v3057
        %v3174 = vunpack.c.l.b16 %v3058
        %v3175 = vunpack.c.l.b16 %v3059
        %v3176 = vunpack.c.l.b16 %v3060
        %v3177 = vunpack.c.l.b16 %v3061
        %v3178 = vunpack.c.l.b16 %v3062
        %v3179 = vunpack.c.l.b16 %v3063
        %v3180 = vunpack.c.l.b16 %v3064
        %v3181 = vunpack.c.l.b16 %v3065
        %v3182 = vpack.c.b16 %v3168, %v3167
        %v3183 = vpack.c.b16 %v3170, %v3169
        %v3184 = vpack.c.b16 %v3172, %v3171
        %v3185 = vpack.c.b16 %v3174, %v3173
        %v3186 = vpack.c.b16 %v3176, %v3175
        %v3187 = vpack.c.b16 %v3178, %v3177
        %v3188 = vpack.c.b16 %v3180, %v3179
        %v3189 = vpack.c.b16 %v3181, %v3181
        %v3198 = vsel %vm2634, %v3050, 0
        %v3201 = vsel %vm2159, %v3189, 0
        %3203 = vmatpush.bf16.msra.mxu0 %v3201
        %3204 = vmatpush.bf16.msra.mxu0 %v3188
        %3205 = vmatpush.bf16.msra.mxu0 %v3187
        %3206 = vmatpush.bf16.msra.mxu0 %v3186
        %3207 = vmatpush.bf16.msra.mxu0 %v3185
        %3208 = vmatpush.bf16.msra.mxu0 %v3184
        %3209 = vmatpush.bf16.msra.mxu0 %v3183
        %3210 = vmatpush.bf16.msra.mxu0 %v3182
        %3211 = vmatmul.bf16.gmra.mxu0 %v3198
        %v3212 = vpop.f32.mrf.mxu0
        %v3213 = vadd.f32 %v3149, %v3212
        %v3214 = vpop.f32.mrf.mxu0
        %3215 = vdwg.mxu0
        %s3216 = scalar_lea.vmem %s9, 120
        %v3217 = vld [vmem:[%s3216] sm:$0xf]
        %v3218 = vld [vmem:[%s3216 + $0x4] sm:$0xf]
        %v3219 = vld [vmem:[%s3216 + $0x8] sm:$0xf]
        %v3220 = vld [vmem:[%s3216 + $0xc] sm:$0xf]
        %v3221 = vld [vmem:[%s3216 + $0x10] sm:$0xf]
        %v3222 = vld [vmem:[%s3216 + $0x14] sm:$0xf]
        %v3223 = vld [vmem:[%s3216 + $0x18] sm:$0xf]
        %v3224 = vld [vmem:[%s3216 + $0x1c] sm:$0xf]
        %v3225 = vld [vmem:[%s3216 + $0x20] sm:$0xf]
        %v3226 = vld [vmem:[%s3216 + $0x24] sm:$0xf]
        %v3227 = vld [vmem:[%s3216 + $0x28] sm:$0xf]
        %v3228 = vld [vmem:[%s3216 + $0x2c] sm:$0xf]
        %v3229 = vld [vmem:[%s3216 + $0x30] sm:$0xf]
        %v3230 = vld [vmem:[%s3216 + $0x34] sm:$0xf]
        %v3231 = vld [vmem:[%s3216 + $0x38] sm:$0xf]
        %v3232 = vrot.slane %v3084, 1
        %v3248 = vunpack.c.l.b16 %v3217
        %v3249 = vunpack.c.l.b16 %v3218
        %v3250 = vunpack.c.l.b16 %v3219
        %v3251 = vunpack.c.l.b16 %v3220
        %v3252 = vunpack.c.l.b16 %v3221
        %v3253 = vunpack.c.l.b16 %v3222
        %v3254 = vunpack.c.l.b16 %v3223
        %v3255 = vunpack.c.l.b16 %v3224
        %v3256 = vunpack.c.l.b16 %v3225
        %v3257 = vunpack.c.l.b16 %v3226
        %v3258 = vunpack.c.l.b16 %v3227
        %v3259 = vunpack.c.l.b16 %v3228
        %v3260 = vunpack.c.l.b16 %v3229
        %v3261 = vunpack.c.l.b16 %v3230
        %v3262 = vunpack.c.l.b16 %v3231
        %v3263 = vpack.c.b16 %v3249, %v3248
        %v3264 = vpack.c.b16 %v3251, %v3250
        %v3265 = vpack.c.b16 %v3253, %v3252
        %v3266 = vpack.c.b16 %v3255, %v3254
        %v3267 = vpack.c.b16 %v3257, %v3256
        %v3268 = vpack.c.b16 %v3259, %v3258
        %v3269 = vpack.c.b16 %v3261, %v3260
        %v3270 = vpack.c.b16 %v3262, %v3262
        %v3279 = vsel %vm2634, %v3232, 0
        %v3282 = vsel %vm2159, %v3270, 0
        %3284 = vmatpush.bf16.msra.mxu0 %v3282
        %3285 = vmatpush.bf16.msra.mxu0 %v3269
        %3286 = vmatpush.bf16.msra.mxu0 %v3268
        %3287 = vmatpush.bf16.msra.mxu0 %v3267
        %3288 = vmatpush.bf16.msra.mxu0 %v3266
        %3289 = vmatpush.bf16.msra.mxu0 %v3265
        %3290 = vmatpush.bf16.msra.mxu0 %v3264
        %3291 = vmatpush.bf16.msra.mxu0 %v3263
        %3292 = vmatmul.bf16.gmra.mxu0 %v3279
        %v3293 = vpop.f32.mrf.mxu0
        %v3294 = vadd.f32 0.0, %v3293
        %v3295 = vpop.f32.mrf.mxu0
        %3296 = vdwg.mxu0
        %v3297 = vadd.f32 %v3213, %v3294
        %s3298 = scalar_lea.vmem %s9, 180
        %v3299 = vld [vmem:[%s3298] sm:$0xf]
        %v3300 = vld [vmem:[%s3298 + $0x4] sm:$0xf]
        %v3301 = vld [vmem:[%s3298 + $0x8] sm:$0xf]
        %v3302 = vld [vmem:[%s3298 + $0xc] sm:$0xf]
        %v3303 = vld [vmem:[%s3298 + $0x10] sm:$0xf]
        %v3304 = vld [vmem:[%s3298 + $0x14] sm:$0xf]
        %v3305 = vld [vmem:[%s3298 + $0x18] sm:$0xf]
        %v3306 = vld [vmem:[%s3298 + $0x1c] sm:$0xf]
        %v3307 = vld [vmem:[%s3298 + $0x20] sm:$0xf]
        %v3308 = vld [vmem:[%s3298 + $0x24] sm:$0xf]
        %v3309 = vld [vmem:[%s3298 + $0x28] sm:$0xf]
        %v3310 = vld [vmem:[%s3298 + $0x2c] sm:$0xf]
        %v3311 = vld [vmem:[%s3298 + $0x30] sm:$0xf]
        %v3312 = vld [vmem:[%s3298 + $0x34] sm:$0xf]
        %v3313 = vld [vmem:[%s3298 + $0x38] sm:$0xf]
        %v3314 = vrot.slane %v3086, 1
        %v3330 = vunpack.c.l.b16 %v3299
        %v3331 = vunpack.c.l.b16 %v3300
        %v3332 = vunpack.c.l.b16 %v3301
        %v3333 = vunpack.c.l.b16 %v3302
        %v3334 = vunpack.c.l.b16 %v3303
        %v3335 = vunpack.c.l.b16 %v3304
        %v3336 = vunpack.c.l.b16 %v3305
        %v3337 = vunpack.c.l.b16 %v3306
        %v3338 = vunpack.c.l.b16 %v3307
        %v3339 = vunpack.c.l.b16 %v3308
        %v3340 = vunpack.c.l.b16 %v3309
        %v3341 = vunpack.c.l.b16 %v3310
        %v3342 = vunpack.c.l.b16 %v3311
        %v3343 = vunpack.c.l.b16 %v3312
        %v3344 = vunpack.c.l.b16 %v3313
        %v3345 = vpack.c.b16 %v3331, %v3330
        %v3346 = vpack.c.b16 %v3333, %v3332
        %v3347 = vpack.c.b16 %v3335, %v3334
        %v3348 = vpack.c.b16 %v3337, %v3336
        %v3349 = vpack.c.b16 %v3339, %v3338
        %v3350 = vpack.c.b16 %v3341, %v3340
        %v3351 = vpack.c.b16 %v3343, %v3342
        %v3352 = vpack.c.b16 %v3344, %v3344
        %v3361 = vsel %vm2634, %v3314, 0
        %v3364 = vsel %vm2159, %v3352, 0
        %3366 = vmatpush.bf16.msra.mxu0 %v3364
        %3367 = vmatpush.bf16.msra.mxu0 %v3351
        %3368 = vmatpush.bf16.msra.mxu0 %v3350
        %3369 = vmatpush.bf16.msra.mxu0 %v3349
        %3370 = vmatpush.bf16.msra.mxu0 %v3348
        %3371 = vmatpush.bf16.msra.mxu0 %v3347
        %3372 = vmatpush.bf16.msra.mxu0 %v3346
        %3373 = vmatpush.bf16.msra.mxu0 %v3345
        %3374 = vmatmul.bf16.gmra.mxu0 %v3361
        %v3375 = vpop.f32.mrf.mxu0
        %v3376 = vadd.f32 0.0, %v3375
        %v3377 = vpop.f32.mrf.mxu0
        %3378 = vdwg.mxu0
        %v3379 = vadd.f32 %v3297, %v3376
        %s3380 = scalar_lea.vmem %s9, 240
        %v3381 = vld [vmem:[%s3380] sm:$0xf]
        %v3382 = vld [vmem:[%s3380 + $0x4] sm:$0xf]
        %v3383 = vld [vmem:[%s3380 + $0x8] sm:$0xf]
        %v3384 = vld [vmem:[%s3380 + $0xc] sm:$0xf]
        %v3385 = vld [vmem:[%s3380 + $0x10] sm:$0xf]
        %v3386 = vld [vmem:[%s3380 + $0x14] sm:$0xf]
        %v3387 = vld [vmem:[%s3380 + $0x18] sm:$0xf]
        %v3388 = vld [vmem:[%s3380 + $0x1c] sm:$0xf]
        %v3389 = vld [vmem:[%s3380 + $0x20] sm:$0xf]
        %v3390 = vld [vmem:[%s3380 + $0x24] sm:$0xf]
        %v3391 = vld [vmem:[%s3380 + $0x28] sm:$0xf]
        %v3392 = vld [vmem:[%s3380 + $0x2c] sm:$0xf]
        %v3393 = vld [vmem:[%s3380 + $0x30] sm:$0xf]
        %v3394 = vld [vmem:[%s3380 + $0x34] sm:$0xf]
        %v3395 = vld [vmem:[%s3380 + $0x38] sm:$0xf]
        %v3396 = vrot.slane %v3084, 2
        %v3412 = vunpack.c.l.b16 %v3381
        %v3413 = vunpack.c.l.b16 %v3382
        %v3414 = vunpack.c.l.b16 %v3383
        %v3415 = vunpack.c.l.b16 %v3384
        %v3416 = vunpack.c.l.b16 %v3385
        %v3417 = vunpack.c.l.b16 %v3386
        %v3418 = vunpack.c.l.b16 %v3387
        %v3419 = vunpack.c.l.b16 %v3388
        %v3420 = vunpack.c.l.b16 %v3389
        %v3421 = vunpack.c.l.b16 %v3390
        %v3422 = vunpack.c.l.b16 %v3391
        %v3423 = vunpack.c.l.b16 %v3392
        %v3424 = vunpack.c.l.b16 %v3393
        %v3425 = vunpack.c.l.b16 %v3394
        %v3426 = vunpack.c.l.b16 %v3395
        %v3427 = vpack.c.b16 %v3413, %v3412
        %v3428 = vpack.c.b16 %v3415, %v3414
        %v3429 = vpack.c.b16 %v3417, %v3416
        %v3430 = vpack.c.b16 %v3419, %v3418
        %v3431 = vpack.c.b16 %v3421, %v3420
        %v3432 = vpack.c.b16 %v3423, %v3422
        %v3433 = vpack.c.b16 %v3425, %v3424
        %v3434 = vpack.c.b16 %v3426, %v3426
        %v3443 = vsel %vm2634, %v3396, 0
        %v3446 = vsel %vm2159, %v3434, 0
        %3448 = vmatpush.bf16.msra.mxu0 %v3446
        %3449 = vmatpush.bf16.msra.mxu0 %v3433
        %3450 = vmatpush.bf16.msra.mxu0 %v3432
        %3451 = vmatpush.bf16.msra.mxu0 %v3431
        %3452 = vmatpush.bf16.msra.mxu0 %v3430
        %3453 = vmatpush.bf16.msra.mxu0 %v3429
        %3454 = vmatpush.bf16.msra.mxu0 %v3428
        %3455 = vmatpush.bf16.msra.mxu0 %v3427
        %3456 = vmatmul.bf16.gmra.mxu0 %v3443
        %v3457 = vpop.f32.mrf.mxu0
        %v3458 = vadd.f32 0.0, %v3457
        %v3459 = vpop.f32.mrf.mxu0
        %3460 = vdwg.mxu0
        %v3461 = vadd.f32 %v3379, %v3458
        %s3462 = scalar_lea.vmem %s9, 300
        %v3463 = vld [vmem:[%s3462] sm:$0xf]
        %v3464 = vld [vmem:[%s3462 + $0x4] sm:$0xf]
        %v3465 = vld [vmem:[%s3462 + $0x8] sm:$0xf]
        %v3466 = vld [vmem:[%s3462 + $0xc] sm:$0xf]
        %v3467 = vld [vmem:[%s3462 + $0x10] sm:$0xf]
        %v3468 = vld [vmem:[%s3462 + $0x14] sm:$0xf]
        %v3469 = vld [vmem:[%s3462 + $0x18] sm:$0xf]
        %v3470 = vld [vmem:[%s3462 + $0x1c] sm:$0xf]
        %v3471 = vld [vmem:[%s3462 + $0x20] sm:$0xf]
        %v3472 = vld [vmem:[%s3462 + $0x24] sm:$0xf]
        %v3473 = vld [vmem:[%s3462 + $0x28] sm:$0xf]
        %v3474 = vld [vmem:[%s3462 + $0x2c] sm:$0xf]
        %v3475 = vld [vmem:[%s3462 + $0x30] sm:$0xf]
        %v3476 = vld [vmem:[%s3462 + $0x34] sm:$0xf]
        %v3477 = vld [vmem:[%s3462 + $0x38] sm:$0xf]
        %v3478 = vrot.slane %v3086, 2
        %v3494 = vunpack.c.l.b16 %v3463
        %v3495 = vunpack.c.l.b16 %v3464
        %v3496 = vunpack.c.l.b16 %v3465
        %v3497 = vunpack.c.l.b16 %v3466
        %v3498 = vunpack.c.l.b16 %v3467
        %v3499 = vunpack.c.l.b16 %v3468
        %v3500 = vunpack.c.l.b16 %v3469
        %v3501 = vunpack.c.l.b16 %v3470
        %v3502 = vunpack.c.l.b16 %v3471
        %v3503 = vunpack.c.l.b16 %v3472
        %v3504 = vunpack.c.l.b16 %v3473
        %v3505 = vunpack.c.l.b16 %v3474
        %v3506 = vunpack.c.l.b16 %v3475
        %v3507 = vunpack.c.l.b16 %v3476
        %v3508 = vunpack.c.l.b16 %v3477
        %v3509 = vpack.c.b16 %v3495, %v3494
        %v3510 = vpack.c.b16 %v3497, %v3496
        %v3511 = vpack.c.b16 %v3499, %v3498
        %v3512 = vpack.c.b16 %v3501, %v3500
        %v3513 = vpack.c.b16 %v3503, %v3502
        %v3514 = vpack.c.b16 %v3505, %v3504
        %v3515 = vpack.c.b16 %v3507, %v3506
        %v3516 = vpack.c.b16 %v3508, %v3508
        %v3525 = vsel %vm2634, %v3478, 0
        %v3528 = vsel %vm2159, %v3516, 0
        %3530 = vmatpush.bf16.msra.mxu0 %v3528
        %3531 = vmatpush.bf16.msra.mxu0 %v3515
        %3532 = vmatpush.bf16.msra.mxu0 %v3514
        %3533 = vmatpush.bf16.msra.mxu0 %v3513
        %3534 = vmatpush.bf16.msra.mxu0 %v3512
        %3535 = vmatpush.bf16.msra.mxu0 %v3511
        %3536 = vmatpush.bf16.msra.mxu0 %v3510
        %3537 = vmatpush.bf16.msra.mxu0 %v3509
        %3538 = vmatmul.bf16.gmra.mxu0 %v3525
        %v3539 = vpop.f32.mrf.mxu0
        %v3540 = vadd.f32 0.0, %v3539
        %v3541 = vpop.f32.mrf.mxu0
        %3542 = vdwg.mxu0
        %v3543 = vadd.f32 %v3461, %v3540
        %vm3544 = vcmask 122880
        %v3545 = vsel %vm3544, %v3543, -inf
        %3546 = vmax.xlane.f32.xlu0 %v3545
        %v3547 = vpop.xlane.xlu0 %3546
        %v3548 = vsub.f32 %v3543, %v3547
        %v3549 = vmul.f32 %v3548, 1.442695
        %v3550 = vpow.pop %v3549
        %v3551 = vsel %vm3544, %v3550, 0.0
        %3552 = vadd.xlane.f32.xlu0 %v3551
        %v3553 = vpop.xlane.xlu0 %3552
        %v3554 = vlog2.pop %v3553
        %v3555 = vmul.f32 %v3554, 0.6931472
        %v3556 = vsub.f32 %v3548, %v3555
        %3557 = vst.msk [vmem:[%s351] sm:$0x1] %vm3544, %v3556
        %s3558 = sand.u32 %s247, 1
        %s3559 = scalar_lea.sflag [#allocation3], %s3558
        %s3560 = sand.u32 %s247, 1
        %s3561 = scalar_lea.vmem [#allocation2], %s3560
        // Predicated region
        $region61: #{net_forward.1} parent=59 // pred_check
          %p3562 = pneg %p257
        $region62: #{net_forward.1} parent=59 // pred_check_branch
          %3564 = sbr.rel (%p3562) target = $region64
        $region63: #{net_forward.1} parent=59 // pred_region
          %3566 = vsyncadd %s3559, 0
          %s3567 = scalar_lea.hbm %s10, %s24
          %s3569 = sshll.u32 %s3561, 4
          %s3570 = int_to_ptr.vmem [resolvable:$true] %s3569
          %s3571 = sshll.u32 %s3567, 4
          %s3572 = int_to_ptr.hbm [resolvable:$true] %s3571
          %3574 = dma.vmem_to_hbm [thread:$0]  %s3570, 16, %s3572, %s3559
        $region64: #{net_forward.1} parent=59 // pred_fallthru
          _
      $region60: #{net_forward.1} parent=5 // pred_fallthru
        _
      %p3575 = scmp.le.s32.totalorder 2, %s19
      // Predicated region
      $region65: #{net_forward.1} parent=5 // pred_check
        %p3576 = pneg %p3575
      $region66: #{net_forward.1} parent=5 // pred_check_branch
        %3578 = sbr.rel (%p3576) target = $region68
      $region67: #{net_forward.1} parent=5 // pred_region
        %s3579 = ssub.s32 %s19, 2
        // Predicated region
        $region69: #{net_forward.1} parent=67 // pred_check
          %p3580 = pneg %p263
        $region70: #{net_forward.1} parent=67 // pred_check_branch
          %3582 = sbr.rel (%p3580) target = $region72
        $region71: #{net_forward.1} parent=67 // pred_region
          %s3583 = sand.u32 %s248, 1
          %s3584 = scalar_lea.sflag [#allocation3], %s3583
          %s3585 = sand.u32 %s248, 1
          %s3586 = scalar_lea.vmem [#allocation2], %s3585
          %3588 = dma.done %s3584, 16
        $region72: #{net_forward.1} parent=67 // pred_fallthru
          _
      $region68: #{net_forward.1} parent=5 // pred_fallthru
        _
    $region6: #{net_forward.1} parent=1 // loop_footer
      %s23 = sadd.s32 1, %s19
    $region7: #{net_forward.1} parent=1 // loop_footer_branch
      %18 = sbr.rel target = $region3
    $region8: #{net_forward.1} parent=1 // loop_exit
      _
    %3589 = vsyncpa [#allocation3], 1
    %s3590 = scalar_lea.sflag [#allocation3], 1
    %3591 = vsyncpa %s3590, 1

</llo_original>
